<compile_context>
chip_gen: v7x
topology: tpu7x:2x2x1
jax: 0.10.0
libtpu: 0.0.40
codegen_flags: <defaults>
</compile_context>

<pallas_src>
import functools

import jax
import jax.numpy as jnp
from jax import lax
from jax.experimental import pallas as pl
from jax.experimental.pallas import tpu as pltpu


def _round_up(x: int, m: int) -> int:
    return -(-x // m) * m


def _device_kind() -> str:
    try:
        return jax.devices()[0].device_kind.lower()
    except Exception:
        return ""


def _num_tensorcores() -> int:
    """2 only on v7x-like chips; 1 on v5e/v6e (grid would serialize there)."""
    kind = _device_kind()
    if "7x" in kind or "v7" in kind:
        return 2
    return 1


def _vmem_limit_cap_bytes() -> int:
    """Per-generation VMEM cap with headroom for Mosaic internal scratch."""
    phys = None
    try:
        phys = int(pltpu.get_tpu_info().vmem_capacity_bytes)
    except Exception:
        phys = None
    if not phys:
        kind = _device_kind()
        phys = (64 << 20) if ("7x" in kind or "v7" in kind) else (128 << 20)
    return phys - max(8 << 20, phys // 8)    # v7x: ~56 MiB, v5e/v6e: ~112 MiB


def _pick_proj_chunk(seq: int, batch_tile: int, target_rows: int = 512) -> int:
    """Largest divisor of seq whose slab (chunk*batch_tile rows) is <= target."""
    best = 1
    for c in range(1, seq + 1):
        if seq % c == 0 and c * batch_tile <= target_rows:
            best = c
    return best


def _make_rnn_kernel(num_layers: int, seq: int, batch_tile: int, hidden_p: int,
                     chunk_t: int, mm_dtype):
    """Kernel body. Ref order (inputs..., outputs..., scratch...):
      x (seq, bt, inp_p) [mm_dtype],
      [w_ih (in_p, hid_p) mm, w_hh (hid_p, hid_p) mm, bias (1, hid_p) f32]*L,
      fc_w (hid_p, ncls_p) mm, fc_b (1, ncls_p) f32,
      out (bt, ncls_p) f32,
      buf scratch (seq, bt, hid_p) f32.
    """
    n_chunks = seq // chunk_t
    unroll = True if seq <= 32 else 8

    def kernel(*refs):
        x_ref = refs[0]
        layer_refs = [refs[1 + 3 * l: 4 + 3 * l] for l in range(num_layers)]
        fc_w_ref = refs[1 + 3 * num_layers]
        fc_b_ref = refs[2 + 3 * num_layers]
        out_ref = refs[3 + 3 * num_layers]
        buf = refs[4 + 3 * num_layers]            # (seq, bt, hid_p) f32 scratch

        inp_p = x_ref.shape[2]

        h_final = None
        for li, (w_ih_ref, w_hh_ref, b_ref) in enumerate(layer_refs):
            first = (li == 0)
            last = (li == num_layers - 1)
            w_ih = w_ih_ref[...]                  # loaded once per layer
            bias = b_ref[...]                     # f32

            # (1) Hoisted input projection + bias, chunked over seq so only
            #     one slab of xin/proj is live (bounds VMEM temporaries).
            def project(t0, *, first=first, w_ih=w_ih, bias=bias):
                if first:
                    xin = x_ref[pl.ds(t0, chunk_t)].reshape(
                        chunk_t * batch_tile, inp_p)
                else:
                    xin = buf[pl.ds(t0, chunk_t)].reshape(
                        chunk_t * batch_tile, hidden_p)
                proj = jnp.dot(xin.astype(mm_dtype), w_ih,
                               preferred_element_type=jnp.float32) + bias
                buf[pl.ds(t0, chunk_t)] = proj.reshape(
                    chunk_t, batch_tile, hidden_p)

            if n_chunks == 1:
                project(0)
            else:
                def proj_body(c, carry, *, project=project):
                    project(pl.multiple_of(c * chunk_t, chunk_t))
                    return carry
                lax.fori_loop(0, n_chunks, proj_body, 0)

            # (2) Serial recurrence: only h @ W_hh (bf16 MXU, f32 acc), a f32
            #     add and a f32 tanh per time step on the critical path.
            w_hh = w_hh_ref[...]

            def step(t, h, *, w_hh=w_hh, last=last):
                h_new = jnp.tanh(
                    buf[t] + jnp.dot(h.astype(mm_dtype), w_hh,
                                     preferred_element_type=jnp.float32))
                if not last:
                    buf[t] = h_new        # becomes the next layer's input seq
                return h_new

            h0 = jnp.zeros((batch_tile, hidden_p), jnp.float32)
            h_final = lax.fori_loop(0, seq, step, h0, unroll=unroll)

        # Final linear layer on the last time step of the last layer.
        out_ref[...] = (
            jnp.dot(h_final.astype(mm_dtype), fc_w_ref[...],
                    preferred_element_type=jnp.float32) + fc_b_ref[...])

    return kernel


def prepare_params(params, *, inp_size: int, hidden_size: int, num_layers: int,
                   num_classes: int, matmul_dtype=jnp.bfloat16):
    """One-time weight prep: transpose + zero-pad to lane/sublane multiples +
    cast matmul operands to `matmul_dtype`. Biases stay f32 (VPU work)."""
    inp_p = _round_up(inp_size, 128)
    hid_p = _round_up(hidden_size, 128)
    ncls_p = _round_up(num_classes, 128)
    prepped = []
    for l in range(num_layers):
        w_ih, w_hh, b_ih, b_hh = params[f"layer{l}"]
        in_feats = w_ih.shape[1]
        in_p = inp_p if l == 0 else hid_p
        prepped += [
            jnp.pad(jnp.transpose(w_ih),                        # (in_p, hid_p)
                    ((0, in_p - in_feats),
                     (0, hid_p - hidden_size))).astype(matmul_dtype),
            jnp.pad(jnp.transpose(w_hh),                        # (hid_p, hid_p)
                    ((0, hid_p - hidden_size),
                     (0, hid_p - hidden_size))).astype(matmul_dtype),
            jnp.pad((b_ih + b_hh).astype(jnp.float32).reshape(1, hidden_size),
                    ((0, 0), (0, hid_p - hidden_size))),        # (1, hid_p) f32
        ]
    fc_w, fc_b = params["fc"]
    prepped += [
        jnp.pad(jnp.transpose(fc_w),                            # (hid_p, ncls_p)
                ((0, hid_p - hidden_size),
                 (0, ncls_p - num_classes))).astype(matmul_dtype),
        jnp.pad(fc_b.astype(jnp.float32).reshape(1, num_classes),
                ((0, 0), (0, ncls_p - num_classes))),           # (1, ncls_p) f32
    ]
    return prepped


def rnn_forward(x_bsf, kernel_weights, *, num_classes: int,
                matmul_dtype=jnp.bfloat16, num_tensorcores=None,
                single_buffer_weights: bool = True):
    """x_bsf: (batch, seq, inp) f32; kernel_weights: output of prepare_params.
    Returns logits (batch, num_classes) f32."""
    batch, seq, inp = x_bsf.shape
    num_layers = (len(kernel_weights) - 2) // 3
    inp_p = kernel_weights[0].shape[0]
    hid_p = kernel_weights[-2].shape[0]
    ncls_p = kernel_weights[-2].shape[1]
    assert inp <= inp_p and num_classes <= ncls_p

    # Batch tiling: split across the grid only when the chip has 2 TCs (v7x)
    # and there is enough batch; on 1-TC chips the grid is a serial loop and
    # splitting would double the latency-bound recurrence.
    if num_tensorcores is None:
        num_tensorcores = _num_tensorcores()
    n_tiles = 2 if (num_tensorcores >= 2 and batch > 8) else 1
    batch_tile = _round_up(-(-batch // n_tiles), 8)
    batch_p = batch_tile * n_tiles

    # Time-major + zero padding (exact: padded weight rows/cols and bias lanes
    # are zero, so padded hidden lanes stay zero; padded batch rows are sliced
    # off at the end). x shipped in matmul dtype (only used as a dot operand).
    x = jnp.transpose(x_bsf, (1, 0, 2))
    x = jnp.pad(x, ((0, 0), (0, batch_p - batch),
                    (0, inp_p - inp))).astype(matmul_dtype)

    chunk_t = _pick_proj_chunk(seq, batch_tile)
    kernel = _make_rnn_kernel(num_layers, seq, batch_tile, hid_p, chunk_t,
                              matmul_dtype)
    kernel_inputs = [x] + list(kernel_weights)

    # Grid-invariant weights/biases: whole-array block, constant index map,
    # single-buffered (no point double-buffering something that never changes).
    def _const_spec(shape):
        nd = len(shape)
        idx = lambda b, _nd=nd: (0,) * _nd
        if single_buffer_weights:
            try:
                return pl.BlockSpec(shape, idx, pipeline_mode=pl.Buffered(1))
            except TypeError:
                pass
        return pl.BlockSpec(shape, idx)

    in_specs = [pl.BlockSpec((seq, batch_tile, inp_p), lambda b: (0, b, 0))]
    in_specs += [_const_spec(a.shape) for a in kernel_weights]
    out_spec = pl.BlockSpec((batch_tile, ncls_p), lambda b: (b, 0))

    # VMEM budget: weights (single- or double-buffered), double-buffered x/out
    # blocks, the full-sequence f32 scratch, and the live projection slab.
    mm_isz = jnp.dtype(matmul_dtype).itemsize
    weight_bytes = sum(int(a.size) * a.dtype.itemsize for a in kernel_weights)
    weight_mult = 1 if single_buffer_weights else 2
    x_block_bytes = 2 * seq * batch_tile * inp_p * mm_isz
    out_block_bytes = 2 * batch_tile * ncls_p * 4
    scratch_bytes = seq * batch_tile * hid_p * 4
    proj_live_bytes = chunk_t * batch_tile * (2 * hid_p * 4
                                              + max(inp_p, hid_p) * mm_isz)
    vmem_needed = (weight_mult * weight_bytes + x_block_bytes + out_block_bytes
                   + scratch_bytes + proj_live_bytes)
    vmem_limit = int(min(max(vmem_needed + (4 << 20), 16 << 20),
                         _vmem_limit_cap_bytes()))

    grid_spec = pltpu.PrefetchScalarGridSpec(
        num_scalar_prefetch=0,
        grid=(n_tiles,),
        in_specs=in_specs,
        out_specs=out_spec,
        scratch_shapes=[pltpu.VMEM((seq, batch_tile, hid_p), jnp.float32)],
    )

    out = pl.pallas_call(
        kernel,
        out_shape=jax.ShapeDtypeStruct((batch_p, ncls_p), jnp.float32),
        grid_spec=grid_spec,
        compiler_params=pltpu.CompilerParams(
            dimension_semantics=("parallel",),
            vmem_limit_bytes=vmem_limit),
    )(*kernel_inputs)
    return out[:batch, :num_classes]


def rnn_reference(x_bsf, params, *, hidden_size: int, num_layers: int):
    """Pure-JAX f32 reference matching torch.nn.RNN (tanh) + Linear on last step."""
    batch, seq, _ = x_bsf.shape
    layer_in = jnp.transpose(x_bsf, (1, 0, 2)).astype(jnp.float32)
    for l in range(num_layers):
        w_ih, w_hh, b_ih, b_hh = params[f"layer{l}"]
        h = jnp.zeros((batch, hidden_size), jnp.float32)
        outs = []
        for t in range(seq):
            h = jnp.tanh(layer_in[t] @ w_ih.T + b_ih + h @ w_hh.T + b_hh)
            outs.append(h)
        layer_in = jnp.stack(outs, axis=0)
    fc_w, fc_b = params["fc"]
    return layer_in[-1] @ fc_w.T + fc_b


def init_params(key, inp_size, hidden_size, num_layers, num_classes):
    """Deterministic init mimicking PyTorch's U(-1/sqrt(H), 1/sqrt(H))."""
    params = {}
    bound = 1.0 / jnp.sqrt(jnp.float32(hidden_size))
    for l in range(num_layers):
        in_feats = inp_size if l == 0 else hidden_size
        key, k1, k2, k3, k4 = jax.random.split(key, 5)
        params[f"layer{l}"] = (
            jax.random.uniform(k1, (hidden_size, in_feats), jnp.float32, -bound, bound),
            jax.random.uniform(k2, (hidden_size, hidden_size), jnp.float32, -bound, bound),
            jax.random.uniform(k3, (hidden_size,), jnp.float32, -bound, bound),
            jax.random.uniform(k4, (hidden_size,), jnp.float32, -bound, bound),
        )
    key, k1, k2 = jax.random.split(key, 3)
    params["fc"] = (
        jax.random.uniform(k1, (num_classes, hidden_size), jnp.float32, -bound, bound),
        jax.random.uniform(k2, (num_classes,), jnp.float32, -bound, bound),
    )
    return params


if __name__ == "__main__":
    # Small shapes consistent with the module's forward.
    batch, seq_len = 4, 8
    inp_size, hidden_size, num_layers, num_classes = 16, 32, 2, 10

    key = jax.random.PRNGKey(0)
    key, kx = jax.random.split(key)
    x = jax.random.normal(kx, (batch, seq_len, inp_size), jnp.float32)
    params = init_params(key, inp_size, hidden_size, num_layers, num_classes)

    # One-time weight prep (transpose + pad + bf16 cast) outside the jitted fwd.
    kernel_weights = prepare_params(
        params, inp_size=inp_size, hidden_size=hidden_size,
        num_layers=num_layers, num_classes=num_classes,
        matmul_dtype=jnp.bfloat16)

    fwd = jax.jit(functools.partial(
        rnn_forward, num_classes=num_classes, matmul_dtype=jnp.bfloat16))
    try:
        out = jax.block_until_ready(fwd(x, kernel_weights))
    except Exception:
        # Fallback if this JAX/Mosaic build rejects single-buffered weight specs.
        fwd = jax.jit(functools.partial(
            rnn_forward, num_classes=num_classes, matmul_dtype=jnp.bfloat16,
            single_buffer_weights=False))
        out = jax.block_until_ready(fwd(x, kernel_weights))

    ref = rnn_reference(x, params, hidden_size=hidden_size,
                        num_layers=num_layers)
    assert out.shape == (batch, num_classes)
    # bf16 MXU operands (f32 accumulate) vs f32 reference -> relaxed tolerance.
    assert jnp.allclose(out, ref, atol=5e-2, rtol=5e-2), "mismatch vs JAX reference"

    print("KERNEL_OK")
</pallas_src>

<mosaic_0001>
module attributes {stable_mosaic.version = 11 : i64} {
  func.func @kernel(%arg0: i32, %arg1: memref<8x8x128xbf16, #tpu.memory_space<vmem>>, %arg2: memref<128x128xbf16, #tpu.memory_space<vmem>>, %arg3: memref<128x128xbf16, #tpu.memory_space<vmem>>, %arg4: memref<1x128xf32, #tpu.memory_space<vmem>>, %arg5: memref<128x128xbf16, #tpu.memory_space<vmem>>, %arg6: memref<128x128xbf16, #tpu.memory_space<vmem>>, %arg7: memref<1x128xf32, #tpu.memory_space<vmem>>, %arg8: memref<128x128xbf16, #tpu.memory_space<vmem>>, %arg9: memref<1x128xf32, #tpu.memory_space<vmem>>, %arg10: memref<8x128xf32, #tpu.memory_space<vmem>>, %arg11: memref<8x8x128xf32, #tpu.memory_space<vmem>>) attributes {dimension_semantics = [#tpu.dimension_semantics<parallel>], iteration_bounds = array<i64: 1>, scalar_prefetch = 0 : i64, scratch_operands = 1 : i64, tpu.core_type = #tpu.core_type<tc>, window_params = [{transform_indices = @transform_0, window_bounds = array<i64: 8, 8, 128>}, {pipeline_mode = #tpu.pipeline_mode<synchronous>, transform_indices = @transform_1, window_bounds = array<i64: 128, 128>}, {pipeline_mode = #tpu.pipeline_mode<synchronous>, transform_indices = @transform_2, window_bounds = array<i64: 128, 128>}, {pipeline_mode = #tpu.pipeline_mode<synchronous>, transform_indices = @transform_3, window_bounds = array<i64: 1, 128>}, {pipeline_mode = #tpu.pipeline_mode<synchronous>, transform_indices = @transform_4, window_bounds = array<i64: 128, 128>}, {pipeline_mode = #tpu.pipeline_mode<synchronous>, transform_indices = @transform_5, window_bounds = array<i64: 128, 128>}, {pipeline_mode = #tpu.pipeline_mode<synchronous>, transform_indices = @transform_6, window_bounds = array<i64: 1, 128>}, {pipeline_mode = #tpu.pipeline_mode<synchronous>, transform_indices = @transform_7, window_bounds = array<i64: 128, 128>}, {pipeline_mode = #tpu.pipeline_mode<synchronous>, transform_indices = @transform_8, window_bounds = array<i64: 1, 128>}, {transform_indices = @transform_9, window_bounds = array<i64: 8, 128>}]} {
    %c0 = arith.constant 0 : index
    %c0_0 = arith.constant 0 : index
    %0 = vector.load %arg2[%c0, %c0_0] : memref<128x128xbf16, #tpu.memory_space<vmem>>, vector<128x128xbf16>
    %c0_1 = arith.constant 0 : index
    %c0_2 = arith.constant 0 : index
    %1 = vector.load %arg4[%c0_1, %c0_2] : memref<1x128xf32, #tpu.memory_space<vmem>>, vector<1x128xf32>
    %c0_3 = arith.constant 0 : index
    %c0_4 = arith.constant 0 : index
    %c0_5 = arith.constant 0 : index
    %2 = vector.load %arg1[%c0_3, %c0_4, %c0_5] : memref<8x8x128xbf16, #tpu.memory_space<vmem>>, vector<8x8x128xbf16>
    %3 = vector.shape_cast %2 : vector<8x8x128xbf16> to vector<64x128xbf16>
    %cst = arith.constant dense<0.000000e+00> : vector<64x128xf32>
    %4 = tpu.matmul %3, %0, %cst {dimension_numbers = #tpu.dot_dimension_numbers<[1], [0], [0], [1], [0, 0, 1, 1], [], []>} : vector<64x128xbf16>, vector<128x128xbf16>, vector<64x128xf32> -> vector<64x128xf32>
    %5 = vector.broadcast %1 : vector<1x128xf32> to vector<64x128xf32>
    %6 = arith.addf %4, %5 : vector<64x128xf32>
    %7 = vector.shape_cast %6 : vector<64x128xf32> to vector<8x8x128xf32>
    %c0_6 = arith.constant 0 : index
    %c0_7 = arith.constant 0 : index
    %c0_8 = arith.constant 0 : index
    %8 = vector.load %arg11[%c0_6, %c0_7, %c0_8] : memref<8x8x128xf32, #tpu.memory_space<vmem>>, vector<8x8x128xf32>
    tpu.vector_store %arg11[%c0_6, %c0_7, %c0_8], %7 {strides = array<i32>} : memref<8x8x128xf32, #tpu.memory_space<vmem>>, vector<8x8x128xf32>,
    %c0_9 = arith.constant 0 : index
    %c0_10 = arith.constant 0 : index
    %9 = vector.load %arg3[%c0_9, %c0_10] : memref<128x128xbf16, #tpu.memory_space<vmem>>, vector<128x128xbf16>
    %cst_11 = arith.constant 0.000000e+00 : f32
    %10 = vector.broadcast %cst_11 : f32 to vector<8x128xf32>
    %c0_i32 = arith.constant 0 : i32
    %11 = arith.index_cast %c0_i32 : i32 to index
    %c0_12 = arith.constant 0 : index
    %c0_13 = arith.constant 0 : index
    %12 = vector.load %arg11[%11, %c0_12, %c0_13] : memref<8x8x128xf32, #tpu.memory_space<vmem>>, vector<1x8x128xf32>
    %13 = vector.shape_cast %12 : vector<1x8x128xf32> to vector<8x128xf32>
    %14 = arith.truncf %10 : vector<8x128xf32> to vector<8x128xbf16>
    %cst_14 = arith.constant dense<0.000000e+00> : vector<8x128xf32>
    %15 = tpu.matmul %14, %9, %cst_14 {dimension_numbers = #tpu.dot_dimension_numbers<[1], [0], [0], [1], [0, 0, 1, 1], [], []>} : vector<8x128xbf16>, vector<128x128xbf16>, vector<8x128xf32> -> vector<8x128xf32>
    %16 = arith.addf %13, %15 : vector<8x128xf32>
    %17 = math.tanh %16 : vector<8x128xf32>
    %18 = arith.index_cast %c0_i32 : i32 to index
    %c0_15 = arith.constant 0 : index
    %c0_16 = arith.constant 0 : index
    %19 = vector.load %arg11[%18, %c0_15, %c0_16] : memref<8x8x128xf32, #tpu.memory_space<vmem>>, vector<1x8x128xf32>
    %20 = vector.shape_cast %19 : vector<1x8x128xf32> to vector<8x128xf32>
    %21 = vector.shape_cast %17 : vector<8x128xf32> to vector<1x8x128xf32>
    tpu.vector_store %arg11[%18, %c0_15, %c0_16], %21 {strides = array<i32>} : memref<8x8x128xf32, #tpu.memory_space<vmem>>, vector<1x8x128xf32>,
    %c1_i32 = arith.constant 1 : i32
    %22 = arith.index_cast %c1_i32 : i32 to index
    %c0_17 = arith.constant 0 : index
    %c0_18 = arith.constant 0 : index
    %23 = vector.load %arg11[%22, %c0_17, %c0_18] : memref<8x8x128xf32, #tpu.memory_space<vmem>>, vector<1x8x128xf32>
    %24 = vector.shape_cast %23 : vector<1x8x128xf32> to vector<8x128xf32>
    %25 = arith.truncf %17 : vector<8x128xf32> to vector<8x128xbf16>
    %cst_19 = arith.constant dense<0.000000e+00> : vector<8x128xf32>
    %26 = tpu.matmul %25, %9, %cst_19 {dimension_numbers = #tpu.dot_dimension_numbers<[1], [0], [0], [1], [0, 0, 1, 1], [], []>} : vector<8x128xbf16>, vector<128x128xbf16>, vector<8x128xf32> -> vector<8x128xf32>
    %27 = arith.addf %24, %26 : vector<8x128xf32>
    %28 = math.tanh %27 : vector<8x128xf32>
    %29 = arith.index_cast %c1_i32 : i32 to index
    %c0_20 = arith.constant 0 : index
    %c0_21 = arith.constant 0 : index
    %30 = vector.load %arg11[%29, %c0_20, %c0_21] : memref<8x8x128xf32, #tpu.memory_space<vmem>>, vector<1x8x128xf32>
    %31 = vector.shape_cast %30 : vector<1x8x128xf32> to vector<8x128xf32>
    %32 = vector.shape_cast %28 : vector<8x128xf32> to vector<1x8x128xf32>
    tpu.vector_store %arg11[%29, %c0_20, %c0_21], %32 {strides = array<i32>} : memref<8x8x128xf32, #tpu.memory_space<vmem>>, vector<1x8x128xf32>,
    %c2_i32 = arith.constant 2 : i32
    %33 = arith.index_cast %c2_i32 : i32 to index
    %c0_22 = arith.constant 0 : index
    %c0_23 = arith.constant 0 : index
    %34 = vector.load %arg11[%33, %c0_22, %c0_23] : memref<8x8x128xf32, #tpu.memory_space<vmem>>, vector<1x8x128xf32>
    %35 = vector.shape_cast %34 : vector<1x8x128xf32> to vector<8x128xf32>
    %36 = arith.truncf %28 : vector<8x128xf32> to vector<8x128xbf16>
    %cst_24 = arith.constant dense<0.000000e+00> : vector<8x128xf32>
    %37 = tpu.matmul %36, %9, %cst_24 {dimension_numbers = #tpu.dot_dimension_numbers<[1], [0], [0], [1], [0, 0, 1, 1], [], []>} : vector<8x128xbf16>, vector<128x128xbf16>, vector<8x128xf32> -> vector<8x128xf32>
    %38 = arith.addf %35, %37 : vector<8x128xf32>
    %39 = math.tanh %38 : vector<8x128xf32>
    %40 = arith.index_cast %c2_i32 : i32 to index
    %c0_25 = arith.constant 0 : index
    %c0_26 = arith.constant 0 : index
    %41 = vector.load %arg11[%40, %c0_25, %c0_26] : memref<8x8x128xf32, #tpu.memory_space<vmem>>, vector<1x8x128xf32>
    %42 = vector.shape_cast %41 : vector<1x8x128xf32> to vector<8x128xf32>
    %43 = vector.shape_cast %39 : vector<8x128xf32> to vector<1x8x128xf32>
    tpu.vector_store %arg11[%40, %c0_25, %c0_26], %43 {strides = array<i32>} : memref<8x8x128xf32, #tpu.memory_space<vmem>>, vector<1x8x128xf32>,
    %c3_i32 = arith.constant 3 : i32
    %44 = arith.index_cast %c3_i32 : i32 to index
    %c0_27 = arith.constant 0 : index
    %c0_28 = arith.constant 0 : index
    %45 = vector.load %arg11[%44, %c0_27, %c0_28] : memref<8x8x128xf32, #tpu.memory_space<vmem>>, vector<1x8x128xf32>
    %46 = vector.shape_cast %45 : vector<1x8x128xf32> to vector<8x128xf32>
    %47 = arith.truncf %39 : vector<8x128xf32> to vector<8x128xbf16>
    %cst_29 = arith.constant dense<0.000000e+00> : vector<8x128xf32>
    %48 = tpu.matmul %47, %9, %cst_29 {dimension_numbers = #tpu.dot_dimension_numbers<[1], [0], [0], [1], [0, 0, 1, 1], [], []>} : vector<8x128xbf16>, vector<128x128xbf16>, vector<8x128xf32> -> vector<8x128xf32>
    %49 = arith.addf %46, %48 : vector<8x128xf32>
    %50 = math.tanh %49 : vector<8x128xf32>
    %51 = arith.index_cast %c3_i32 : i32 to index
    %c0_30 = arith.constant 0 : index
    %c0_31 = arith.constant 0 : index
    %52 = vector.load %arg11[%51, %c0_30, %c0_31] : memref<8x8x128xf32, #tpu.memory_space<vmem>>, vector<1x8x128xf32>
    %53 = vector.shape_cast %52 : vector<1x8x128xf32> to vector<8x128xf32>
    %54 = vector.shape_cast %50 : vector<8x128xf32> to vector<1x8x128xf32>
    tpu.vector_store %arg11[%51, %c0_30, %c0_31], %54 {strides = array<i32>} : memref<8x8x128xf32, #tpu.memory_space<vmem>>, vector<1x8x128xf32>,
    %c4_i32 = arith.constant 4 : i32
    %55 = arith.index_cast %c4_i32 : i32 to index
    %c0_32 = arith.constant 0 : index
    %c0_33 = arith.constant 0 : index
    %56 = vector.load %arg11[%55, %c0_32, %c0_33] : memref<8x8x128xf32, #tpu.memory_space<vmem>>, vector<1x8x128xf32>
    %57 = vector.shape_cast %56 : vector<1x8x128xf32> to vector<8x128xf32>
    %58 = arith.truncf %50 : vector<8x128xf32> to vector<8x128xbf16>
    %cst_34 = arith.constant dense<0.000000e+00> : vector<8x128xf32>
    %59 = tpu.matmul %58, %9, %cst_34 {dimension_numbers = #tpu.dot_dimension_numbers<[1], [0], [0], [1], [0, 0, 1, 1], [], []>} : vector<8x128xbf16>, vector<128x128xbf16>, vector<8x128xf32> -> vector<8x128xf32>
    %60 = arith.addf %57, %59 : vector<8x128xf32>
    %61 = math.tanh %60 : vector<8x128xf32>
    %62 = arith.index_cast %c4_i32 : i32 to index
    %c0_35 = arith.constant 0 : index
    %c0_36 = arith.constant 0 : index
    %63 = vector.load %arg11[%62, %c0_35, %c0_36] : memref<8x8x128xf32, #tpu.memory_space<vmem>>, vector<1x8x128xf32>
    %64 = vector.shape_cast %63 : vector<1x8x128xf32> to vector<8x128xf32>
    %65 = vector.shape_cast %61 : vector<8x128xf32> to vector<1x8x128xf32>
    tpu.vector_store %arg11[%62, %c0_35, %c0_36], %65 {strides = array<i32>} : memref<8x8x128xf32, #tpu.memory_space<vmem>>, vector<1x8x128xf32>,
    %c5_i32 = arith.constant 5 : i32
    %66 = arith.index_cast %c5_i32 : i32 to index
    %c0_37 = arith.constant 0 : index
    %c0_38 = arith.constant 0 : index
    %67 = vector.load %arg11[%66, %c0_37, %c0_38] : memref<8x8x128xf32, #tpu.memory_space<vmem>>, vector<1x8x128xf32>
    %68 = vector.shape_cast %67 : vector<1x8x128xf32> to vector<8x128xf32>
    %69 = arith.truncf %61 : vector<8x128xf32> to vector<8x128xbf16>
    %cst_39 = arith.constant dense<0.000000e+00> : vector<8x128xf32>
    %70 = tpu.matmul %69, %9, %cst_39 {dimension_numbers = #tpu.dot_dimension_numbers<[1], [0], [0], [1], [0, 0, 1, 1], [], []>} : vector<8x128xbf16>, vector<128x128xbf16>, vector<8x128xf32> -> vector<8x128xf32>
    %71 = arith.addf %68, %70 : vector<8x128xf32>
    %72 = math.tanh %71 : vector<8x128xf32>
    %73 = arith.index_cast %c5_i32 : i32 to index
    %c0_40 = arith.constant 0 : index
    %c0_41 = arith.constant 0 : index
    %74 = vector.load %arg11[%73, %c0_40, %c0_41] : memref<8x8x128xf32, #tpu.memory_space<vmem>>, vector<1x8x128xf32>
    %75 = vector.shape_cast %74 : vector<1x8x128xf32> to vector<8x128xf32>
    %76 = vector.shape_cast %72 : vector<8x128xf32> to vector<1x8x128xf32>
    tpu.vector_store %arg11[%73, %c0_40, %c0_41], %76 {strides = array<i32>} : memref<8x8x128xf32, #tpu.memory_space<vmem>>, vector<1x8x128xf32>,
    %c6_i32 = arith.constant 6 : i32
    %77 = arith.index_cast %c6_i32 : i32 to index
    %c0_42 = arith.constant 0 : index
    %c0_43 = arith.constant 0 : index
    %78 = vector.load %arg11[%77, %c0_42, %c0_43] : memref<8x8x128xf32, #tpu.memory_space<vmem>>, vector<1x8x128xf32>
    %79 = vector.shape_cast %78 : vector<1x8x128xf32> to vector<8x128xf32>
    %80 = arith.truncf %72 : vector<8x128xf32> to vector<8x128xbf16>
    %cst_44 = arith.constant dense<0.000000e+00> : vector<8x128xf32>
    %81 = tpu.matmul %80, %9, %cst_44 {dimension_numbers = #tpu.dot_dimension_numbers<[1], [0], [0], [1], [0, 0, 1, 1], [], []>} : vector<8x128xbf16>, vector<128x128xbf16>, vector<8x128xf32> -> vector<8x128xf32>
    %82 = arith.addf %79, %81 : vector<8x128xf32>
    %83 = math.tanh %82 : vector<8x128xf32>
    %84 = arith.index_cast %c6_i32 : i32 to index
    %c0_45 = arith.constant 0 : index
    %c0_46 = arith.constant 0 : index
    %85 = vector.load %arg11[%84, %c0_45, %c0_46] : memref<8x8x128xf32, #tpu.memory_space<vmem>>, vector<1x8x128xf32>
    %86 = vector.shape_cast %85 : vector<1x8x128xf32> to vector<8x128xf32>
    %87 = vector.shape_cast %83 : vector<8x128xf32> to vector<1x8x128xf32>
    tpu.vector_store %arg11[%84, %c0_45, %c0_46], %87 {strides = array<i32>} : memref<8x8x128xf32, #tpu.memory_space<vmem>>, vector<1x8x128xf32>,
    %c7_i32 = arith.constant 7 : i32
    %88 = arith.index_cast %c7_i32 : i32 to index
    %c0_47 = arith.constant 0 : index
    %c0_48 = arith.constant 0 : index
    %89 = vector.load %arg11[%88, %c0_47, %c0_48] : memref<8x8x128xf32, #tpu.memory_space<vmem>>, vector<1x8x128xf32>
    %90 = vector.shape_cast %89 : vector<1x8x128xf32> to vector<8x128xf32>
    %91 = arith.truncf %83 : vector<8x128xf32> to vector<8x128xbf16>
    %cst_49 = arith.constant dense<0.000000e+00> : vector<8x128xf32>
    %92 = tpu.matmul %91, %9, %cst_49 {dimension_numbers = #tpu.dot_dimension_numbers<[1], [0], [0], [1], [0, 0, 1, 1], [], []>} : vector<8x128xbf16>, vector<128x128xbf16>, vector<8x128xf32> -> vector<8x128xf32>
    %93 = arith.addf %90, %92 : vector<8x128xf32>
    %94 = math.tanh %93 : vector<8x128xf32>
    %95 = arith.index_cast %c7_i32 : i32 to index
    %c0_50 = arith.constant 0 : index
    %c0_51 = arith.constant 0 : index
    %96 = vector.load %arg11[%95, %c0_50, %c0_51] : memref<8x8x128xf32, #tpu.memory_space<vmem>>, vector<1x8x128xf32>
    %97 = vector.shape_cast %96 : vector<1x8x128xf32> to vector<8x128xf32>
    %98 = vector.shape_cast %94 : vector<8x128xf32> to vector<1x8x128xf32>
    tpu.vector_store %arg11[%95, %c0_50, %c0_51], %98 {strides = array<i32>} : memref<8x8x128xf32, #tpu.memory_space<vmem>>, vector<1x8x128xf32>,
    %c8_i32 = arith.constant 8 : i32
    %c0_52 = arith.constant 0 : index
    %c0_53 = arith.constant 0 : index
    %99 = vector.load %arg5[%c0_52, %c0_53] : memref<128x128xbf16, #tpu.memory_space<vmem>>, vector<128x128xbf16>
    %c0_54 = arith.constant 0 : index
    %c0_55 = arith.constant 0 : index
    %100 = vector.load %arg7[%c0_54, %c0_55] : memref<1x128xf32, #tpu.memory_space<vmem>>, vector<1x128xf32>
    %c0_56 = arith.constant 0 : index
    %c0_57 = arith.constant 0 : index
    %c0_58 = arith.constant 0 : index
    %101 = vector.load %arg11[%c0_56, %c0_57, %c0_58] : memref<8x8x128xf32, #tpu.memory_space<vmem>>, vector<8x8x128xf32>
    %102 = vector.shape_cast %101 : vector<8x8x128xf32> to vector<64x128xf32>
    %103 = arith.truncf %102 : vector<64x128xf32> to vector<64x128xbf16>
    %cst_59 = arith.constant dense<0.000000e+00> : vector<64x128xf32>
    %104 = tpu.matmul %103, %99, %cst_59 {dimension_numbers = #tpu.dot_dimension_numbers<[1], [0], [0], [1], [0, 0, 1, 1], [], []>} : vector<64x128xbf16>, vector<128x128xbf16>, vector<64x128xf32> -> vector<64x128xf32>
    %105 = vector.broadcast %100 : vector<1x128xf32> to vector<64x128xf32>
    %106 = arith.addf %104, %105 : vector<64x128xf32>
    %107 = vector.shape_cast %106 : vector<64x128xf32> to vector<8x8x128xf32>
    %c0_60 = arith.constant 0 : index
    %c0_61 = arith.constant 0 : index
    %c0_62 = arith.constant 0 : index
    %108 = vector.load %arg11[%c0_60, %c0_61, %c0_62] : memref<8x8x128xf32, #tpu.memory_space<vmem>>, vector<8x8x128xf32>
    tpu.vector_store %arg11[%c0_60, %c0_61, %c0_62], %107 {strides = array<i32>} : memref<8x8x128xf32, #tpu.memory_space<vmem>>, vector<8x8x128xf32>,
    %c0_63 = arith.constant 0 : index
    %c0_64 = arith.constant 0 : index
    %109 = vector.load %arg6[%c0_63, %c0_64] : memref<128x128xbf16, #tpu.memory_space<vmem>>, vector<128x128xbf16>
    %cst_65 = arith.constant 0.000000e+00 : f32
    %110 = vector.broadcast %cst_65 : f32 to vector<8x128xf32>
    %c0_i32_66 = arith.constant 0 : i32
    %111 = arith.index_cast %c0_i32_66 : i32 to index
    %c0_67 = arith.constant 0 : index
    %c0_68 = arith.constant 0 : index
    %112 = vector.load %arg11[%111, %c0_67, %c0_68] : memref<8x8x128xf32, #tpu.memory_space<vmem>>, vector<1x8x128xf32>
    %113 = vector.shape_cast %112 : vector<1x8x128xf32> to vector<8x128xf32>
    %114 = arith.truncf %110 : vector<8x128xf32> to vector<8x128xbf16>
    %cst_69 = arith.constant dense<0.000000e+00> : vector<8x128xf32>
    %115 = tpu.matmul %114, %109, %cst_69 {dimension_numbers = #tpu.dot_dimension_numbers<[1], [0], [0], [1], [0, 0, 1, 1], [], []>} : vector<8x128xbf16>, vector<128x128xbf16>, vector<8x128xf32> -> vector<8x128xf32>
    %116 = arith.addf %113, %115 : vector<8x128xf32>
    %117 = math.tanh %116 : vector<8x128xf32>
    %c1_i32_70 = arith.constant 1 : i32
    %118 = arith.index_cast %c1_i32_70 : i32 to index
    %c0_71 = arith.constant 0 : index
    %c0_72 = arith.constant 0 : index
    %119 = vector.load %arg11[%118, %c0_71, %c0_72] : memref<8x8x128xf32, #tpu.memory_space<vmem>>, vector<1x8x128xf32>
    %120 = vector.shape_cast %119 : vector<1x8x128xf32> to vector<8x128xf32>
    %121 = arith.truncf %117 : vector<8x128xf32> to vector<8x128xbf16>
    %cst_73 = arith.constant dense<0.000000e+00> : vector<8x128xf32>
    %122 = tpu.matmul %121, %109, %cst_73 {dimension_numbers = #tpu.dot_dimension_numbers<[1], [0], [0], [1], [0, 0, 1, 1], [], []>} : vector<8x128xbf16>, vector<128x128xbf16>, vector<8x128xf32> -> vector<8x128xf32>
    %123 = arith.addf %120, %122 : vector<8x128xf32>
    %124 = math.tanh %123 : vector<8x128xf32>
    %c2_i32_74 = arith.constant 2 : i32
    %125 = arith.index_cast %c2_i32_74 : i32 to index
    %c0_75 = arith.constant 0 : index
    %c0_76 = arith.constant 0 : index
    %126 = vector.load %arg11[%125, %c0_75, %c0_76] : memref<8x8x128xf32, #tpu.memory_space<vmem>>, vector<1x8x128xf32>
    %127 = vector.shape_cast %126 : vector<1x8x128xf32> to vector<8x128xf32>
    %128 = arith.truncf %124 : vector<8x128xf32> to vector<8x128xbf16>
    %cst_77 = arith.constant dense<0.000000e+00> : vector<8x128xf32>
    %129 = tpu.matmul %128, %109, %cst_77 {dimension_numbers = #tpu.dot_dimension_numbers<[1], [0], [0], [1], [0, 0, 1, 1], [], []>} : vector<8x128xbf16>, vector<128x128xbf16>, vector<8x128xf32> -> vector<8x128xf32>
    %130 = arith.addf %127, %129 : vector<8x128xf32>
    %131 = math.tanh %130 : vector<8x128xf32>
    %c3_i32_78 = arith.constant 3 : i32
    %132 = arith.index_cast %c3_i32_78 : i32 to index
    %c0_79 = arith.constant 0 : index
    %c0_80 = arith.constant 0 : index
    %133 = vector.load %arg11[%132, %c0_79, %c0_80] : memref<8x8x128xf32, #tpu.memory_space<vmem>>, vector<1x8x128xf32>
    %134 = vector.shape_cast %133 : vector<1x8x128xf32> to vector<8x128xf32>
    %135 = arith.truncf %131 : vector<8x128xf32> to vector<8x128xbf16>
    %cst_81 = arith.constant dense<0.000000e+00> : vector<8x128xf32>
    %136 = tpu.matmul %135, %109, %cst_81 {dimension_numbers = #tpu.dot_dimension_numbers<[1], [0], [0], [1], [0, 0, 1, 1], [], []>} : vector<8x128xbf16>, vector<128x128xbf16>, vector<8x128xf32> -> vector<8x128xf32>
    %137 = arith.addf %134, %136 : vector<8x128xf32>
    %138 = math.tanh %137 : vector<8x128xf32>
    %c4_i32_82 = arith.constant 4 : i32
    %139 = arith.index_cast %c4_i32_82 : i32 to index
    %c0_83 = arith.constant 0 : index
    %c0_84 = arith.constant 0 : index
    %140 = vector.load %arg11[%139, %c0_83, %c0_84] : memref<8x8x128xf32, #tpu.memory_space<vmem>>, vector<1x8x128xf32>
    %141 = vector.shape_cast %140 : vector<1x8x128xf32> to vector<8x128xf32>
    %142 = arith.truncf %138 : vector<8x128xf32> to vector<8x128xbf16>
    %cst_85 = arith.constant dense<0.000000e+00> : vector<8x128xf32>
    %143 = tpu.matmul %142, %109, %cst_85 {dimension_numbers = #tpu.dot_dimension_numbers<[1], [0], [0], [1], [0, 0, 1, 1], [], []>} : vector<8x128xbf16>, vector<128x128xbf16>, vector<8x128xf32> -> vector<8x128xf32>
    %144 = arith.addf %141, %143 : vector<8x128xf32>
    %145 = math.tanh %144 : vector<8x128xf32>
    %c5_i32_86 = arith.constant 5 : i32
    %146 = arith.index_cast %c5_i32_86 : i32 to index
    %c0_87 = arith.constant 0 : index
    %c0_88 = arith.constant 0 : index
    %147 = vector.load %arg11[%146, %c0_87, %c0_88] : memref<8x8x128xf32, #tpu.memory_space<vmem>>, vector<1x8x128xf32>
    %148 = vector.shape_cast %147 : vector<1x8x128xf32> to vector<8x128xf32>
    %149 = arith.truncf %145 : vector<8x128xf32> to vector<8x128xbf16>
    %cst_89 = arith.constant dense<0.000000e+00> : vector<8x128xf32>
    %150 = tpu.matmul %149, %109, %cst_89 {dimension_numbers = #tpu.dot_dimension_numbers<[1], [0], [0], [1], [0, 0, 1, 1], [], []>} : vector<8x128xbf16>, vector<128x128xbf16>, vector<8x128xf32> -> vector<8x128xf32>
    %151 = arith.addf %148, %150 : vector<8x128xf32>
    %152 = math.tanh %151 : vector<8x128xf32>
    %c6_i32_90 = arith.constant 6 : i32
    %153 = arith.index_cast %c6_i32_90 : i32 to index
    %c0_91 = arith.constant 0 : index
    %c0_92 = arith.constant 0 : index
    %154 = vector.load %arg11[%153, %c0_91, %c0_92] : memref<8x8x128xf32, #tpu.memory_space<vmem>>, vector<1x8x128xf32>
    %155 = vector.shape_cast %154 : vector<1x8x128xf32> to vector<8x128xf32>
    %156 = arith.truncf %152 : vector<8x128xf32> to vector<8x128xbf16>
    %cst_93 = arith.constant dense<0.000000e+00> : vector<8x128xf32>
    %157 = tpu.matmul %156, %109, %cst_93 {dimension_numbers = #tpu.dot_dimension_numbers<[1], [0], [0], [1], [0, 0, 1, 1], [], []>} : vector<8x128xbf16>, vector<128x128xbf16>, vector<8x128xf32> -> vector<8x128xf32>
    %158 = arith.addf %155, %157 : vector<8x128xf32>
    %159 = math.tanh %158 : vector<8x128xf32>
    %c7_i32_94 = arith.constant 7 : i32
    %160 = arith.index_cast %c7_i32_94 : i32 to index
    %c0_95 = arith.constant 0 : index
    %c0_96 = arith.constant 0 : index
    %161 = vector.load %arg11[%160, %c0_95, %c0_96] : memref<8x8x128xf32, #tpu.memory_space<vmem>>, vector<1x8x128xf32>
    %162 = vector.shape_cast %161 : vector<1x8x128xf32> to vector<8x128xf32>
    %163 = arith.truncf %159 : vector<8x128xf32> to vector<8x128xbf16>
    %cst_97 = arith.constant dense<0.000000e+00> : vector<8x128xf32>
    %164 = tpu.matmul %163, %109, %cst_97 {dimension_numbers = #tpu.dot_dimension_numbers<[1], [0], [0], [1], [0, 0, 1, 1], [], []>} : vector<8x128xbf16>, vector<128x128xbf16>, vector<8x128xf32> -> vector<8x128xf32>
    %165 = arith.addf %162, %164 : vector<8x128xf32>
    %166 = math.tanh %165 : vector<8x128xf32>
    %c8_i32_98 = arith.constant 8 : i32
    %167 = arith.truncf %166 : vector<8x128xf32> to vector<8x128xbf16>
    %c0_99 = arith.constant 0 : index
    %c0_100 = arith.constant 0 : index
    %168 = vector.load %arg8[%c0_99, %c0_100] : memref<128x128xbf16, #tpu.memory_space<vmem>>, vector<128x128xbf16>
    %cst_101 = arith.constant dense<0.000000e+00> : vector<8x128xf32>
    %169 = tpu.matmul %167, %168, %cst_101 {dimension_numbers = #tpu.dot_dimension_numbers<[1], [0], [0], [1], [0, 0, 1, 1], [], []>} : vector<8x128xbf16>, vector<128x128xbf16>, vector<8x128xf32> -> vector<8x128xf32>
    %c0_102 = arith.constant 0 : index
    %c0_103 = arith.constant 0 : index
    %170 = vector.load %arg9[%c0_102, %c0_103] : memref<1x128xf32, #tpu.memory_space<vmem>>, vector<1x128xf32>
    %171 = vector.broadcast %170 : vector<1x128xf32> to vector<8x128xf32>
    %172 = arith.addf %169, %171 : vector<8x128xf32>
    %c0_104 = arith.constant 0 : index
    %c0_105 = arith.constant 0 : index
    %173 = vector.load %arg10[%c0_104, %c0_105] : memref<8x128xf32, #tpu.memory_space<vmem>>, vector<8x128xf32>
    tpu.vector_store %arg10[%c0_104, %c0_105], %172 {strides = array<i32>} : memref<8x128xf32, #tpu.memory_space<vmem>>, vector<8x128xf32>,
    return
  }
  func.func @transform_0(%arg0: i32) -> (i32, i32, i32) {
    %c0_i32 = arith.constant 0 : i32
    %c0_i32_0 = arith.constant 0 : i32
    %c0_i32_1 = arith.constant 0 : i32
    return %c0_i32, %arg0, %c0_i32_0 : i32, i32, i32
  }
  func.func @transform_1(%arg0: i32) -> (i32, i32) {
    %c0_i32 = arith.constant 0 : i32
    %c0_i32_0 = arith.constant 0 : i32
    %c0_i32_1 = arith.constant 0 : i32
    return %c0_i32, %c0_i32_0 : i32, i32
  }
  func.func @transform_2(%arg0: i32) -> (i32, i32) {
    %c0_i32 = arith.constant 0 : i32
    %c0_i32_0 = arith.constant 0 : i32
    %c0_i32_1 = arith.constant 0 : i32
    return %c0_i32, %c0_i32_0 : i32, i32
  }
  func.func @transform_3(%arg0: i32) -> (i32, i32) {
    %c0_i32 = arith.constant 0 : i32
    %c0_i32_0 = arith.constant 0 : i32
    %c0_i32_1 = arith.constant 0 : i32
    return %c0_i32, %c0_i32_0 : i32, i32
  }
  func.func @transform_4(%arg0: i32) -> (i32, i32) {
    %c0_i32 = arith.constant 0 : i32
    %c0_i32_0 = arith.constant 0 : i32
    %c0_i32_1 = arith.constant 0 : i32
    return %c0_i32, %c0_i32_0 : i32, i32
  }
  func.func @transform_5(%arg0: i32) -> (i32, i32) {
    %c0_i32 = arith.constant 0 : i32
    %c0_i32_0 = arith.constant 0 : i32
    %c0_i32_1 = arith.constant 0 : i32
    return %c0_i32, %c0_i32_0 : i32, i32
  }
  func.func @transform_6(%arg0: i32) -> (i32, i32) {
    %c0_i32 = arith.constant 0 : i32
    %c0_i32_0 = arith.constant 0 : i32
    %c0_i32_1 = arith.constant 0 : i32
    return %c0_i32, %c0_i32_0 : i32, i32
  }
  func.func @transform_7(%arg0: i32) -> (i32, i32) {
    %c0_i32 = arith.constant 0 : i32
    %c0_i32_0 = arith.constant 0 : i32
    %c0_i32_1 = arith.constant 0 : i32
    return %c0_i32, %c0_i32_0 : i32, i32
  }
  func.func @transform_8(%arg0: i32) -> (i32, i32) {
    %c0_i32 = arith.constant 0 : i32
    %c0_i32_0 = arith.constant 0 : i32
    %c0_i32_1 = arith.constant 0 : i32
    return %c0_i32, %c0_i32_0 : i32, i32
  }
  func.func @transform_9(%arg0: i32) -> (i32, i32) {
    %c0_i32 = arith.constant 0 : i32
    %c0_i32_0 = arith.constant 0 : i32
    return %arg0, %c0_i32 : i32, i32
  }
}

module attributes {stable_mosaic.version = 11 : i64} {
  func.func @kernel(%arg0: i32, %arg1: memref<8x8x128xbf16, #tpu.memory_space<vmem>>, %arg2: memref<128x128xbf16, #tpu.memory_space<vmem>>, %arg3: memref<128x128xbf16, #tpu.memory_space<vmem>>, %arg4: memref<1x128xf32, #tpu.memory_space<vmem>>, %arg5: memref<128x128xbf16, #tpu.memory_space<vmem>>, %arg6: memref<128x128xbf16, #tpu.memory_space<vmem>>, %arg7: memref<1x128xf32, #tpu.memory_space<vmem>>, %arg8: memref<128x128xbf16, #tpu.memory_space<vmem>>, %arg9: memref<1x128xf32, #tpu.memory_space<vmem>>, %arg10: memref<8x128xf32, #tpu.memory_space<vmem>>, %arg11: memref<8x8x128xf32, #tpu.memory_space<vmem>>) attributes {dimension_semantics = [#tpu.dimension_semantics<parallel>], iteration_bounds = array<i64: 1>, scalar_prefetch = 0 : i64, scratch_operands = 1 : i64, tpu.core_type = #tpu.core_type<tc>, window_params = [{transform_indices = @transform_0, window_bounds = array<i64: 8, 8, 128>}, {pipeline_mode = #tpu.pipeline_mode<synchronous>, transform_indices = @transform_1, window_bounds = array<i64: 128, 128>}, {pipeline_mode = #tpu.pipeline_mode<synchronous>, transform_indices = @transform_2, window_bounds = array<i64: 128, 128>}, {pipeline_mode = #tpu.pipeline_mode<synchronous>, transform_indices = @transform_3, window_bounds = array<i64: 1, 128>}, {pipeline_mode = #tpu.pipeline_mode<synchronous>, transform_indices = @transform_4, window_bounds = array<i64: 128, 128>}, {pipeline_mode = #tpu.pipeline_mode<synchronous>, transform_indices = @transform_5, window_bounds = array<i64: 128, 128>}, {pipeline_mode = #tpu.pipeline_mode<synchronous>, transform_indices = @transform_6, window_bounds = array<i64: 1, 128>}, {pipeline_mode = #tpu.pipeline_mode<synchronous>, transform_indices = @transform_7, window_bounds = array<i64: 128, 128>}, {pipeline_mode = #tpu.pipeline_mode<synchronous>, transform_indices = @transform_8, window_bounds = array<i64: 1, 128>}, {transform_indices = @transform_9, window_bounds = array<i64: 8, 128>}]} {
    %c0 = arith.constant 0 : index
    %c0_0 = arith.constant 0 : index
    %0 = vector.load %arg2[%c0, %c0_0] : memref<128x128xbf16, #tpu.memory_space<vmem>>, vector<128x128xbf16>
    %c0_1 = arith.constant 0 : index
    %c0_2 = arith.constant 0 : index
    %1 = vector.load %arg4[%c0_1, %c0_2] : memref<1x128xf32, #tpu.memory_space<vmem>>, vector<1x128xf32>
    %c0_3 = arith.constant 0 : index
    %c0_4 = arith.constant 0 : index
    %c0_5 = arith.constant 0 : index
    %2 = vector.load %arg1[%c0_3, %c0_4, %c0_5] : memref<8x8x128xbf16, #tpu.memory_space<vmem>>, vector<8x8x128xbf16>
    %3 = vector.shape_cast %2 : vector<8x8x128xbf16> to vector<64x128xbf16>
    %cst = arith.constant dense<0.000000e+00> : vector<64x128xf32>
    %4 = tpu.matmul %3, %0, %cst {dimension_numbers = #tpu.dot_dimension_numbers<[1], [0], [0], [1], [0, 0, 1, 1], [], []>} : vector<64x128xbf16>, vector<128x128xbf16>, vector<64x128xf32> -> vector<64x128xf32>
    %5 = vector.broadcast %1 : vector<1x128xf32> to vector<64x128xf32>
    %6 = arith.addf %4, %5 : vector<64x128xf32>
    %7 = vector.shape_cast %6 : vector<64x128xf32> to vector<8x8x128xf32>
    %c0_6 = arith.constant 0 : index
    %c0_7 = arith.constant 0 : index
    %c0_8 = arith.constant 0 : index
    %8 = vector.load %arg11[%c0_6, %c0_7, %c0_8] : memref<8x8x128xf32, #tpu.memory_space<vmem>>, vector<8x8x128xf32>
    tpu.vector_store %arg11[%c0_6, %c0_7, %c0_8], %7 {strides = array<i32>} : memref<8x8x128xf32, #tpu.memory_space<vmem>>, vector<8x8x128xf32>,
    %c0_9 = arith.constant 0 : index
    %c0_10 = arith.constant 0 : index
    %9 = vector.load %arg3[%c0_9, %c0_10] : memref<128x128xbf16, #tpu.memory_space<vmem>>, vector<128x128xbf16>
    %cst_11 = arith.constant 0.000000e+00 : f32
    %10 = vector.broadcast %cst_11 : f32 to vector<8x128xf32>
    %c0_i32 = arith.constant 0 : i32
    %11 = arith.index_cast %c0_i32 : i32 to index
    %c0_12 = arith.constant 0 : index
    %c0_13 = arith.constant 0 : index
    %12 = vector.load %arg11[%11, %c0_12, %c0_13] : memref<8x8x128xf32, #tpu.memory_space<vmem>>, vector<1x8x128xf32>
    %13 = vector.shape_cast %12 : vector<1x8x128xf32> to vector<8x128xf32>
    %14 = arith.truncf %10 : vector<8x128xf32> to vector<8x128xbf16>
    %cst_14 = arith.constant dense<0.000000e+00> : vector<8x128xf32>
    %15 = tpu.matmul %14, %9, %cst_14 {dimension_numbers = #tpu.dot_dimension_numbers<[1], [0], [0], [1], [0, 0, 1, 1], [], []>} : vector<8x128xbf16>, vector<128x128xbf16>, vector<8x128xf32> -> vector<8x128xf32>
    %16 = arith.addf %13, %15 : vector<8x128xf32>
    %17 = math.tanh %16 : vector<8x128xf32>
    %18 = arith.index_cast %c0_i32 : i32 to index
    %c0_15 = arith.constant 0 : index
    %c0_16 = arith.constant 0 : index
    %19 = vector.load %arg11[%18, %c0_15, %c0_16] : memref<8x8x128xf32, #tpu.memory_space<vmem>>, vector<1x8x128xf32>
    %20 = vector.shape_cast %19 : vector<1x8x128xf32> to vector<8x128xf32>
    %21 = vector.shape_cast %17 : vector<8x128xf32> to vector<1x8x128xf32>
    tpu.vector_store %arg11[%18, %c0_15, %c0_16], %21 {strides = array<i32>} : memref<8x8x128xf32, #tpu.memory_space<vmem>>, vector<1x8x128xf32>,
    %c1_i32 = arith.constant 1 : i32
    %22 = arith.index_cast %c1_i32 : i32 to index
    %c0_17 = arith.constant 0 : index
    %c0_18 = arith.constant 0 : index
    %23 = vector.load %arg11[%22, %c0_17, %c0_18] : memref<8x8x128xf32, #tpu.memory_space<vmem>>, vector<1x8x128xf32>
    %24 = vector.shape_cast %23 : vector<1x8x128xf32> to vector<8x128xf32>
    %25 = arith.truncf %17 : vector<8x128xf32> to vector<8x128xbf16>
    %cst_19 = arith.constant dense<0.000000e+00> : vector<8x128xf32>
    %26 = tpu.matmul %25, %9, %cst_19 {dimension_numbers = #tpu.dot_dimension_numbers<[1], [0], [0], [1], [0, 0, 1, 1], [], []>} : vector<8x128xbf16>, vector<128x128xbf16>, vector<8x128xf32> -> vector<8x128xf32>
    %27 = arith.addf %24, %26 : vector<8x128xf32>
    %28 = math.tanh %27 : vector<8x128xf32>
    %29 = arith.index_cast %c1_i32 : i32 to index
    %c0_20 = arith.constant 0 : index
    %c0_21 = arith.constant 0 : index
    %30 = vector.load %arg11[%29, %c0_20, %c0_21] : memref<8x8x128xf32, #tpu.memory_space<vmem>>, vector<1x8x128xf32>
    %31 = vector.shape_cast %30 : vector<1x8x128xf32> to vector<8x128xf32>
    %32 = vector.shape_cast %28 : vector<8x128xf32> to vector<1x8x128xf32>
    tpu.vector_store %arg11[%29, %c0_20, %c0_21], %32 {strides = array<i32>} : memref<8x8x128xf32, #tpu.memory_space<vmem>>, vector<1x8x128xf32>,
    %c2_i32 = arith.constant 2 : i32
    %33 = arith.index_cast %c2_i32 : i32 to index
    %c0_22 = arith.constant 0 : index
    %c0_23 = arith.constant 0 : index
    %34 = vector.load %arg11[%33, %c0_22, %c0_23] : memref<8x8x128xf32, #tpu.memory_space<vmem>>, vector<1x8x128xf32>
    %35 = vector.shape_cast %34 : vector<1x8x128xf32> to vector<8x128xf32>
    %36 = arith.truncf %28 : vector<8x128xf32> to vector<8x128xbf16>
    %cst_24 = arith.constant dense<0.000000e+00> : vector<8x128xf32>
    %37 = tpu.matmul %36, %9, %cst_24 {dimension_numbers = #tpu.dot_dimension_numbers<[1], [0], [0], [1], [0, 0, 1, 1], [], []>} : vector<8x128xbf16>, vector<128x128xbf16>, vector<8x128xf32> -> vector<8x128xf32>
    %38 = arith.addf %35, %37 : vector<8x128xf32>
    %39 = math.tanh %38 : vector<8x128xf32>
    %40 = arith.index_cast %c2_i32 : i32 to index
    %c0_25 = arith.constant 0 : index
    %c0_26 = arith.constant 0 : index
    %41 = vector.load %arg11[%40, %c0_25, %c0_26] : memref<8x8x128xf32, #tpu.memory_space<vmem>>, vector<1x8x128xf32>
    %42 = vector.shape_cast %41 : vector<1x8x128xf32> to vector<8x128xf32>
    %43 = vector.shape_cast %39 : vector<8x128xf32> to vector<1x8x128xf32>
    tpu.vector_store %arg11[%40, %c0_25, %c0_26], %43 {strides = array<i32>} : memref<8x8x128xf32, #tpu.memory_space<vmem>>, vector<1x8x128xf32>,
    %c3_i32 = arith.constant 3 : i32
    %44 = arith.index_cast %c3_i32 : i32 to index
    %c0_27 = arith.constant 0 : index
    %c0_28 = arith.constant 0 : index
    %45 = vector.load %arg11[%44, %c0_27, %c0_28] : memref<8x8x128xf32, #tpu.memory_space<vmem>>, vector<1x8x128xf32>
    %46 = vector.shape_cast %45 : vector<1x8x128xf32> to vector<8x128xf32>
    %47 = arith.truncf %39 : vector<8x128xf32> to vector<8x128xbf16>
    %cst_29 = arith.constant dense<0.000000e+00> : vector<8x128xf32>
    %48 = tpu.matmul %47, %9, %cst_29 {dimension_numbers = #tpu.dot_dimension_numbers<[1], [0], [0], [1], [0, 0, 1, 1], [], []>} : vector<8x128xbf16>, vector<128x128xbf16>, vector<8x128xf32> -> vector<8x128xf32>
    %49 = arith.addf %46, %48 : vector<8x128xf32>
    %50 = math.tanh %49 : vector<8x128xf32>
    %51 = arith.index_cast %c3_i32 : i32 to index
    %c0_30 = arith.constant 0 : index
    %c0_31 = arith.constant 0 : index
    %52 = vector.load %arg11[%51, %c0_30, %c0_31] : memref<8x8x128xf32, #tpu.memory_space<vmem>>, vector<1x8x128xf32>
    %53 = vector.shape_cast %52 : vector<1x8x128xf32> to vector<8x128xf32>
    %54 = vector.shape_cast %50 : vector<8x128xf32> to vector<1x8x128xf32>
    tpu.vector_store %arg11[%51, %c0_30, %c0_31], %54 {strides = array<i32>} : memref<8x8x128xf32, #tpu.memory_space<vmem>>, vector<1x8x128xf32>,
    %c4_i32 = arith.constant 4 : i32
    %55 = arith.index_cast %c4_i32 : i32 to index
    %c0_32 = arith.constant 0 : index
    %c0_33 = arith.constant 0 : index
    %56 = vector.load %arg11[%55, %c0_32, %c0_33] : memref<8x8x128xf32, #tpu.memory_space<vmem>>, vector<1x8x128xf32>
    %57 = vector.shape_cast %56 : vector<1x8x128xf32> to vector<8x128xf32>
    %58 = arith.truncf %50 : vector<8x128xf32> to vector<8x128xbf16>
    %cst_34 = arith.constant dense<0.000000e+00> : vector<8x128xf32>
    %59 = tpu.matmul %58, %9, %cst_34 {dimension_numbers = #tpu.dot_dimension_numbers<[1], [0], [0], [1], [0, 0, 1, 1], [], []>} : vector<8x128xbf16>, vector<128x128xbf16>, vector<8x128xf32> -> vector<8x128xf32>
    %60 = arith.addf %57, %59 : vector<8x128xf32>
    %61 = math.tanh %60 : vector<8x128xf32>
    %62 = arith.index_cast %c4_i32 : i32 to index
    %c0_35 = arith.constant 0 : index
    %c0_36 = arith.constant 0 : index
    %63 = vector.load %arg11[%62, %c0_35, %c0_36] : memref<8x8x128xf32, #tpu.memory_space<vmem>>, vector<1x8x128xf32>
    %64 = vector.shape_cast %63 : vector<1x8x128xf32> to vector<8x128xf32>
    %65 = vector.shape_cast %61 : vector<8x128xf32> to vector<1x8x128xf32>
    tpu.vector_store %arg11[%62, %c0_35, %c0_36], %65 {strides = array<i32>} : memref<8x8x128xf32, #tpu.memory_space<vmem>>, vector<1x8x128xf32>,
    %c5_i32 = arith.constant 5 : i32
    %66 = arith.index_cast %c5_i32 : i32 to index
    %c0_37 = arith.constant 0 : index
    %c0_38 = arith.constant 0 : index
    %67 = vector.load %arg11[%66, %c0_37, %c0_38] : memref<8x8x128xf32, #tpu.memory_space<vmem>>, vector<1x8x128xf32>
    %68 = vector.shape_cast %67 : vector<1x8x128xf32> to vector<8x128xf32>
    %69 = arith.truncf %61 : vector<8x128xf32> to vector<8x128xbf16>
    %cst_39 = arith.constant dense<0.000000e+00> : vector<8x128xf32>
    %70 = tpu.matmul %69, %9, %cst_39 {dimension_numbers = #tpu.dot_dimension_numbers<[1], [0], [0], [1], [0, 0, 1, 1], [], []>} : vector<8x128xbf16>, vector<128x128xbf16>, vector<8x128xf32> -> vector<8x128xf32>
    %71 = arith.addf %68, %70 : vector<8x128xf32>
    %72 = math.tanh %71 : vector<8x128xf32>
    %73 = arith.index_cast %c5_i32 : i32 to index
    %c0_40 = arith.constant 0 : index
    %c0_41 = arith.constant 0 : index
    %74 = vector.load %arg11[%73, %c0_40, %c0_41] : memref<8x8x128xf32, #tpu.memory_space<vmem>>, vector<1x8x128xf32>
    %75 = vector.shape_cast %74 : vector<1x8x128xf32> to vector<8x128xf32>
    %76 = vector.shape_cast %72 : vector<8x128xf32> to vector<1x8x128xf32>
    tpu.vector_store %arg11[%73, %c0_40, %c0_41], %76 {strides = array<i32>} : memref<8x8x128xf32, #tpu.memory_space<vmem>>, vector<1x8x128xf32>,
    %c6_i32 = arith.constant 6 : i32
    %77 = arith.index_cast %c6_i32 : i32 to index
    %c0_42 = arith.constant 0 : index
    %c0_43 = arith.constant 0 : index
    %78 = vector.load %arg11[%77, %c0_42, %c0_43] : memref<8x8x128xf32, #tpu.memory_space<vmem>>, vector<1x8x128xf32>
    %79 = vector.shape_cast %78 : vector<1x8x128xf32> to vector<8x128xf32>
    %80 = arith.truncf %72 : vector<8x128xf32> to vector<8x128xbf16>
    %cst_44 = arith.constant dense<0.000000e+00> : vector<8x128xf32>
    %81 = tpu.matmul %80, %9, %cst_44 {dimension_numbers = #tpu.dot_dimension_numbers<[1], [0], [0], [1], [0, 0, 1, 1], [], []>} : vector<8x128xbf16>, vector<128x128xbf16>, vector<8x128xf32> -> vector<8x128xf32>
    %82 = arith.addf %79, %81 : vector<8x128xf32>
    %83 = math.tanh %82 : vector<8x128xf32>
    %84 = arith.index_cast %c6_i32 : i32 to index
    %c0_45 = arith.constant 0 : index
    %c0_46 = arith.constant 0 : index
    %85 = vector.load %arg11[%84, %c0_45, %c0_46] : memref<8x8x128xf32, #tpu.memory_space<vmem>>, vector<1x8x128xf32>
    %86 = vector.shape_cast %85 : vector<1x8x128xf32> to vector<8x128xf32>
    %87 = vector.shape_cast %83 : vector<8x128xf32> to vector<1x8x128xf32>
    tpu.vector_store %arg11[%84, %c0_45, %c0_46], %87 {strides = array<i32>} : memref<8x8x128xf32, #tpu.memory_space<vmem>>, vector<1x8x128xf32>,
    %c7_i32 = arith.constant 7 : i32
    %88 = arith.index_cast %c7_i32 : i32 to index
    %c0_47 = arith.constant 0 : index
    %c0_48 = arith.constant 0 : index
    %89 = vector.load %arg11[%88, %c0_47, %c0_48] : memref<8x8x128xf32, #tpu.memory_space<vmem>>, vector<1x8x128xf32>
    %90 = vector.shape_cast %89 : vector<1x8x128xf32> to vector<8x128xf32>
    %91 = arith.truncf %83 : vector<8x128xf32> to vector<8x128xbf16>
    %cst_49 = arith.constant dense<0.000000e+00> : vector<8x128xf32>
    %92 = tpu.matmul %91, %9, %cst_49 {dimension_numbers = #tpu.dot_dimension_numbers<[1], [0], [0], [1], [0, 0, 1, 1], [], []>} : vector<8x128xbf16>, vector<128x128xbf16>, vector<8x128xf32> -> vector<8x128xf32>
    %93 = arith.addf %90, %92 : vector<8x128xf32>
    %94 = math.tanh %93 : vector<8x128xf32>
    %95 = arith.index_cast %c7_i32 : i32 to index
    %c0_50 = arith.constant 0 : index
    %c0_51 = arith.constant 0 : index
    %96 = vector.load %arg11[%95, %c0_50, %c0_51] : memref<8x8x128xf32, #tpu.memory_space<vmem>>, vector<1x8x128xf32>
    %97 = vector.shape_cast %96 : vector<1x8x128xf32> to vector<8x128xf32>
    %98 = vector.shape_cast %94 : vector<8x128xf32> to vector<1x8x128xf32>
    tpu.vector_store %arg11[%95, %c0_50, %c0_51], %98 {strides = array<i32>} : memref<8x8x128xf32, #tpu.memory_space<vmem>>, vector<1x8x128xf32>,
    %c8_i32 = arith.constant 8 : i32
    %c0_52 = arith.constant 0 : index
    %c0_53 = arith.constant 0 : index
    %99 = vector.load %arg5[%c0_52, %c0_53] : memref<128x128xbf16, #tpu.memory_space<vmem>>, vector<128x128xbf16>
    %c0_54 = arith.constant 0 : index
    %c0_55 = arith.constant 0 : index
    %100 = vector.load %arg7[%c0_54, %c0_55] : memref<1x128xf32, #tpu.memory_space<vmem>>, vector<1x128xf32>
    %c0_56 = arith.constant 0 : index
    %c0_57 = arith.constant 0 : index
    %c0_58 = arith.constant 0 : index
    %101 = vector.load %arg11[%c0_56, %c0_57, %c0_58] : memref<8x8x128xf32, #tpu.memory_space<vmem>>, vector<8x8x128xf32>
    %102 = vector.shape_cast %101 : vector<8x8x128xf32> to vector<64x128xf32>
    %103 = arith.truncf %102 : vector<64x128xf32> to vector<64x128xbf16>
    %cst_59 = arith.constant dense<0.000000e+00> : vector<64x128xf32>
    %104 = tpu.matmul %103, %99, %cst_59 {dimension_numbers = #tpu.dot_dimension_numbers<[1], [0], [0], [1], [0, 0, 1, 1], [], []>} : vector<64x128xbf16>, vector<128x128xbf16>, vector<64x128xf32> -> vector<64x128xf32>
    %105 = vector.broadcast %100 : vector<1x128xf32> to vector<64x128xf32>
    %106 = arith.addf %104, %105 : vector<64x128xf32>
    %107 = vector.shape_cast %106 : vector<64x128xf32> to vector<8x8x128xf32>
    %c0_60 = arith.constant 0 : index
    %c0_61 = arith.constant 0 : index
    %c0_62 = arith.constant 0 : index
    %108 = vector.load %arg11[%c0_60, %c0_61, %c0_62] : memref<8x8x128xf32, #tpu.memory_space<vmem>>, vector<8x8x128xf32>
    tpu.vector_store %arg11[%c0_60, %c0_61, %c0_62], %107 {strides = array<i32>} : memref<8x8x128xf32, #tpu.memory_space<vmem>>, vector<8x8x128xf32>,
    %c0_63 = arith.constant 0 : index
    %c0_64 = arith.constant 0 : index
    %109 = vector.load %arg6[%c0_63, %c0_64] : memref<128x128xbf16, #tpu.memory_space<vmem>>, vector<128x128xbf16>
    %cst_65 = arith.constant 0.000000e+00 : f32
    %110 = vector.broadcast %cst_65 : f32 to vector<8x128xf32>
    %c0_i32_66 = arith.constant 0 : i32
    %111 = arith.index_cast %c0_i32_66 : i32 to index
    %c0_67 = arith.constant 0 : index
    %c0_68 = arith.constant 0 : index
    %112 = vector.load %arg11[%111, %c0_67, %c0_68] : memref<8x8x128xf32, #tpu.memory_space<vmem>>, vector<1x8x128xf32>
    %113 = vector.shape_cast %112 : vector<1x8x128xf32> to vector<8x128xf32>
    %114 = arith.truncf %110 : vector<8x128xf32> to vector<8x128xbf16>
    %cst_69 = arith.constant dense<0.000000e+00> : vector<8x128xf32>
    %115 = tpu.matmul %114, %109, %cst_69 {dimension_numbers = #tpu.dot_dimension_numbers<[1], [0], [0], [1], [0, 0, 1, 1], [], []>} : vector<8x128xbf16>, vector<128x128xbf16>, vector<8x128xf32> -> vector<8x128xf32>
    %116 = arith.addf %113, %115 : vector<8x128xf32>
    %117 = math.tanh %116 : vector<8x128xf32>
    %c1_i32_70 = arith.constant 1 : i32
    %118 = arith.index_cast %c1_i32_70 : i32 to index
    %c0_71 = arith.constant 0 : index
    %c0_72 = arith.constant 0 : index
    %119 = vector.load %arg11[%118, %c0_71, %c0_72] : memref<8x8x128xf32, #tpu.memory_space<vmem>>, vector<1x8x128xf32>
    %120 = vector.shape_cast %119 : vector<1x8x128xf32> to vector<8x128xf32>
    %121 = arith.truncf %117 : vector<8x128xf32> to vector<8x128xbf16>
    %cst_73 = arith.constant dense<0.000000e+00> : vector<8x128xf32>
    %122 = tpu.matmul %121, %109, %cst_73 {dimension_numbers = #tpu.dot_dimension_numbers<[1], [0], [0], [1], [0, 0, 1, 1], [], []>} : vector<8x128xbf16>, vector<128x128xbf16>, vector<8x128xf32> -> vector<8x128xf32>
    %123 = arith.addf %120, %122 : vector<8x128xf32>
    %124 = math.tanh %123 : vector<8x128xf32>
    %c2_i32_74 = arith.constant 2 : i32
    %125 = arith.index_cast %c2_i32_74 : i32 to index
    %c0_75 = arith.constant 0 : index
    %c0_76 = arith.constant 0 : index
    %126 = vector.load %arg11[%125, %c0_75, %c0_76] : memref<8x8x128xf32, #tpu.memory_space<vmem>>, vector<1x8x128xf32>
    %127 = vector.shape_cast %126 : vector<1x8x128xf32> to vector<8x128xf32>
    %128 = arith.truncf %124 : vector<8x128xf32> to vector<8x128xbf16>
    %cst_77 = arith.constant dense<0.000000e+00> : vector<8x128xf32>
    %129 = tpu.matmul %128, %109, %cst_77 {dimension_numbers = #tpu.dot_dimension_numbers<[1], [0], [0], [1], [0, 0, 1, 1], [], []>} : vector<8x128xbf16>, vector<128x128xbf16>, vector<8x128xf32> -> vector<8x128xf32>
    %130 = arith.addf %127, %129 : vector<8x128xf32>
    %131 = math.tanh %130 : vector<8x128xf32>
    %c3_i32_78 = arith.constant 3 : i32
    %132 = arith.index_cast %c3_i32_78 : i32 to index
    %c0_79 = arith.constant 0 : index
    %c0_80 = arith.constant 0 : index
    %133 = vector.load %arg11[%132, %c0_79, %c0_80] : memref<8x8x128xf32, #tpu.memory_space<vmem>>, vector<1x8x128xf32>
    %134 = vector.shape_cast %133 : vector<1x8x128xf32> to vector<8x128xf32>
    %135 = arith.truncf %131 : vector<8x128xf32> to vector<8x128xbf16>
    %cst_81 = arith.constant dense<0.000000e+00> : vector<8x128xf32>
    %136 = tpu.matmul %135, %109, %cst_81 {dimension_numbers = #tpu.dot_dimension_numbers<[1], [0], [0], [1], [0, 0, 1, 1], [], []>} : vector<8x128xbf16>, vector<128x128xbf16>, vector<8x128xf32> -> vector<8x128xf32>
    %137 = arith.addf %134, %136 : vector<8x128xf32>
    %138 = math.tanh %137 : vector<8x128xf32>
    %c4_i32_82 = arith.constant 4 : i32
    %139 = arith.index_cast %c4_i32_82 : i32 to index
    %c0_83 = arith.constant 0 : index
    %c0_84 = arith.constant 0 : index
    %140 = vector.load %arg11[%139, %c0_83, %c0_84] : memref<8x8x128xf32, #tpu.memory_space<vmem>>, vector<1x8x128xf32>
    %141 = vector.shape_cast %140 : vector<1x8x128xf32> to vector<8x128xf32>
    %142 = arith.truncf %138 : vector<8x128xf32> to vector<8x128xbf16>
    %cst_85 = arith.constant dense<0.000000e+00> : vector<8x128xf32>
    %143 = tpu.matmul %142, %109, %cst_85 {dimension_numbers = #tpu.dot_dimension_numbers<[1], [0], [0], [1], [0, 0, 1, 1], [], []>} : vector<8x128xbf16>, vector<128x128xbf16>, vector<8x128xf32> -> vector<8x128xf32>
    %144 = arith.addf %141, %143 : vector<8x128xf32>
    %145 = math.tanh %144 : vector<8x128xf32>
    %c5_i32_86 = arith.constant 5 : i32
    %146 = arith.index_cast %c5_i32_86 : i32 to index
    %c0_87 = arith.constant 0 : index
    %c0_88 = arith.constant 0 : index
    %147 = vector.load %arg11[%146, %c0_87, %c0_88] : memref<8x8x128xf32, #tpu.memory_space<vmem>>, vector<1x8x128xf32>
    %148 = vector.shape_cast %147 : vector<1x8x128xf32> to vector<8x128xf32>
    %149 = arith.truncf %145 : vector<8x128xf32> to vector<8x128xbf16>
    %cst_89 = arith.constant dense<0.000000e+00> : vector<8x128xf32>
    %150 = tpu.matmul %149, %109, %cst_89 {dimension_numbers = #tpu.dot_dimension_numbers<[1], [0], [0], [1], [0, 0, 1, 1], [], []>} : vector<8x128xbf16>, vector<128x128xbf16>, vector<8x128xf32> -> vector<8x128xf32>
    %151 = arith.addf %148, %150 : vector<8x128xf32>
    %152 = math.tanh %151 : vector<8x128xf32>
    %c6_i32_90 = arith.constant 6 : i32
    %153 = arith.index_cast %c6_i32_90 : i32 to index
    %c0_91 = arith.constant 0 : index
    %c0_92 = arith.constant 0 : index
    %154 = vector.load %arg11[%153, %c0_91, %c0_92] : memref<8x8x128xf32, #tpu.memory_space<vmem>>, vector<1x8x128xf32>
    %155 = vector.shape_cast %154 : vector<1x8x128xf32> to vector<8x128xf32>
    %156 = arith.truncf %152 : vector<8x128xf32> to vector<8x128xbf16>
    %cst_93 = arith.constant dense<0.000000e+00> : vector<8x128xf32>
    %157 = tpu.matmul %156, %109, %cst_93 {dimension_numbers = #tpu.dot_dimension_numbers<[1], [0], [0], [1], [0, 0, 1, 1], [], []>} : vector<8x128xbf16>, vector<128x128xbf16>, vector<8x128xf32> -> vector<8x128xf32>
    %158 = arith.addf %155, %157 : vector<8x128xf32>
    %159 = math.tanh %158 : vector<8x128xf32>
    %c7_i32_94 = arith.constant 7 : i32
    %160 = arith.index_cast %c7_i32_94 : i32 to index
    %c0_95 = arith.constant 0 : index
    %c0_96 = arith.constant 0 : index
    %161 = vector.load %arg11[%160, %c0_95, %c0_96] : memref<8x8x128xf32, #tpu.memory_space<vmem>>, vector<1x8x128xf32>
    %162 = vector.shape_cast %161 : vector<1x8x128xf32> to vector<8x128xf32>
    %163 = arith.truncf %159 : vector<8x128xf32> to vector<8x128xbf16>
    %cst_97 = arith.constant dense<0.000000e+00> : vector<8x128xf32>
    %164 = tpu.matmul %163, %109, %cst_97 {dimension_numbers = #tpu.dot_dimension_numbers<[1], [0], [0], [1], [0, 0, 1, 1], [], []>} : vector<8x128xbf16>, vector<128x128xbf16>, vector<8x128xf32> -> vector<8x128xf32>
    %165 = arith.addf %162, %164 : vector<8x128xf32>
    %166 = math.tanh %165 : vector<8x128xf32>
    %c8_i32_98 = arith.constant 8 : i32
    %167 = arith.truncf %166 : vector<8x128xf32> to vector<8x128xbf16>
    %c0_99 = arith.constant 0 : index
    %c0_100 = arith.constant 0 : index
    %168 = vector.load %arg8[%c0_99, %c0_100] : memref<128x128xbf16, #tpu.memory_space<vmem>>, vector<128x128xbf16>
    %cst_101 = arith.constant dense<0.000000e+00> : vector<8x128xf32>
    %169 = tpu.matmul %167, %168, %cst_101 {dimension_numbers = #tpu.dot_dimension_numbers<[1], [0], [0], [1], [0, 0, 1, 1], [], []>} : vector<8x128xbf16>, vector<128x128xbf16>, vector<8x128xf32> -> vector<8x128xf32>
    %c0_102 = arith.constant 0 : index
    %c0_103 = arith.constant 0 : index
    %170 = vector.load %arg9[%c0_102, %c0_103] : memref<1x128xf32, #tpu.memory_space<vmem>>, vector<1x128xf32>
    %171 = vector.broadcast %170 : vector<1x128xf32> to vector<8x128xf32>
    %172 = arith.addf %169, %171 : vector<8x128xf32>
    %c0_104 = arith.constant 0 : index
    %c0_105 = arith.constant 0 : index
    %173 = vector.load %arg10[%c0_104, %c0_105] : memref<8x128xf32, #tpu.memory_space<vmem>>, vector<8x128xf32>
    tpu.vector_store %arg10[%c0_104, %c0_105], %172 {strides = array<i32>} : memref<8x128xf32, #tpu.memory_space<vmem>>, vector<8x128xf32>,
    return
  }
  func.func @transform_0(%arg0: i32) -> (i32, i32, i32) {
    %c0_i32 = arith.constant 0 : i32
    %c0_i32_0 = arith.constant 0 : i32
    %c0_i32_1 = arith.constant 0 : i32
    return %c0_i32, %arg0, %c0_i32_0 : i32, i32, i32
  }
  func.func @transform_1(%arg0: i32) -> (i32, i32) {
    %c0_i32 = arith.constant 0 : i32
    %c0_i32_0 = arith.constant 0 : i32
    %c0_i32_1 = arith.constant 0 : i32
    return %c0_i32, %c0_i32_0 : i32, i32
  }
  func.func @transform_2(%arg0: i32) -> (i32, i32) {
    %c0_i32 = arith.constant 0 : i32
    %c0_i32_0 = arith.constant 0 : i32
    %c0_i32_1 = arith.constant 0 : i32
    return %c0_i32, %c0_i32_0 : i32, i32
  }
  func.func @transform_3(%arg0: i32) -> (i32, i32) {
    %c0_i32 = arith.constant 0 : i32
    %c0_i32_0 = arith.constant 0 : i32
    %c0_i32_1 = arith.constant 0 : i32
    return %c0_i32, %c0_i32_0 : i32, i32
  }
  func.func @transform_4(%arg0: i32) -> (i32, i32) {
    %c0_i32 = arith.constant 0 : i32
    %c0_i32_0 = arith.constant 0 : i32
    %c0_i32_1 = arith.constant 0 : i32
    return %c0_i32, %c0_i32_0 : i32, i32
  }
  func.func @transform_5(%arg0: i32) -> (i32, i32) {
    %c0_i32 = arith.constant 0 : i32
    %c0_i32_0 = arith.constant 0 : i32
    %c0_i32_1 = arith.constant 0 : i32
    return %c0_i32, %c0_i32_0 : i32, i32
  }
  func.func @transform_6(%arg0: i32) -> (i32, i32) {
    %c0_i32 = arith.constant 0 : i32
    %c0_i32_0 = arith.constant 0 : i32
    %c0_i32_1 = arith.constant 0 : i32
    return %c0_i32, %c0_i32_0 : i32, i32
  }
  func.func @transform_7(%arg0: i32) -> (i32, i32) {
    %c0_i32 = arith.constant 0 : i32
    %c0_i32_0 = arith.constant 0 : i32
    %c0_i32_1 = arith.constant 0 : i32
    return %c0_i32, %c0_i32_0 : i32, i32
  }
  func.func @transform_8(%arg0: i32) -> (i32, i32) {
    %c0_i32 = arith.constant 0 : i32
    %c0_i32_0 = arith.constant 0 : i32
    %c0_i32_1 = arith.constant 0 : i32
    return %c0_i32, %c0_i32_0 : i32, i32
  }
  func.func @transform_9(%arg0: i32) -> (i32, i32) {
    %c0_i32 = arith.constant 0 : i32
    %c0_i32_0 = arith.constant 0 : i32
    return %arg0, %c0_i32 : i32, i32
  }
}

</mosaic_0001>

<llo_original>
// kernel: rnn_forward.1
$region0: #{rnn_forward.1}
  #allocation0 [shape = 'u32[]', space=smem, size = 0x4, offset = 0x4, fixed_abs, tag = 'smem constant byte address 0x4 - core index']
  #allocation1 [shape = 'u32[144,128]{1,0:T(1,128)}', space=vmem, size = 0x12000, scoped, tag = 'internal scratch']
  #allocation2 [shape = 'f32[8,8,128]{2,1,0:T(8,128)}', space=vmem, size = 0x8000, scoped, tag = 'scratch operand']
  %s0 = inlined_call_operand.vmem [shape: bf16[8,8,128], index: 0, kind: input, shape index: {}]
  %s1 = inlined_call_operand.vmem [shape: bf16[128,128], index: 1, kind: input, shape index: {}]
  %s2 = inlined_call_operand.hbm [shape: bf16[128,128], index: 2, kind: input, shape index: {}]
  %s3 = inlined_call_operand.vmem [shape: f32[1,128], index: 3, kind: input, shape index: {}]
  %s4 = inlined_call_operand.hbm [shape: bf16[128,128], index: 4, kind: input, shape index: {}]
  %s5 = inlined_call_operand.hbm [shape: bf16[128,128], index: 5, kind: input, shape index: {}]
  %s6 = inlined_call_operand.vmem [shape: f32[1,128], index: 6, kind: input, shape index: {}]
  %s7 = inlined_call_operand.hbm [shape: bf16[128,128], index: 7, kind: input, shape index: {}]
  %s8 = inlined_call_operand.vmem [shape: f32[1,128], index: 8, kind: input, shape index: {}]
  %s9 = inlined_call_operand.vmem [shape: f32[8,128], index: 9, kind: output, shape index: {}]
  %s10 = sld [smem:[#allocation0]]
  $region62: #{rnn_forward.1} parent=0
    _
  %s12 = ssub.s32 1, %s10
  %s13 = scalar_select 0, %s12, %s10
  $region1: #{rnn_forward.1} parent=0
    #allocation3 [shape = 'u8[32768]{0}', space=vmem, size = 0x8000, scoped, tag = 'input window, operand 2, single buffered']
    #allocation4 [shape = 's32[1]{0}', space=sflag, size = 0x4, scoped, tag = 'scoped memory for rnn_forward.1']
    #allocation5 [shape = 'u8[32768]{0}', space=vmem, size = 0x8000, scoped, tag = 'input window, operand 4, single buffered']
    #allocation6 [shape = 's32[1]{0}', space=sflag, size = 0x4, scoped, tag = 'scoped memory for rnn_forward.1']
    #allocation7 [shape = 'u8[32768]{0}', space=vmem, size = 0x8000, scoped, tag = 'input window, operand 5, single buffered']
    #allocation8 [shape = 'u8[32768]{0}', space=vmem, size = 0x8000, scoped, tag = 'input window, operand 7, single buffered']
    #allocation9 [shape = 's32[1]{0}', space=sflag, size = 0x4, scoped, tag = 'scoped memory for rnn_forward.1']
    %14 = vsyncpa [#allocation4], 0
    %15 = vsyncpa [#allocation6], 0
    %16 = vsyncpa [#allocation9], 0
    // Predicated region
    $region2: #{rnn_forward.1} parent=1 // pred_check
      _
    $region3: #{rnn_forward.1} parent=1 // pred_check_branch
      %18 = sbr.rel (0) target = $region5
    $region4: #{rnn_forward.1} parent=1 // pred_region
      _
    $region5: #{rnn_forward.1} parent=1 // pred_fallthru
      _
    // Predicated region
    $region6: #{rnn_forward.1} parent=1 // pred_check
      _
    $region7: #{rnn_forward.1} parent=1 // pred_check_branch
      %20 = sbr.rel (0) target = $region9
    $region8: #{rnn_forward.1} parent=1 // pred_region
      _
    $region9: #{rnn_forward.1} parent=1 // pred_fallthru
      _
    // Predicated region
    $region10: #{rnn_forward.1} parent=1 // pred_check
      _
    $region11: #{rnn_forward.1} parent=1 // pred_check_branch
      %22 = sbr.rel (0) target = $region13
    $region12: #{rnn_forward.1} parent=1 // pred_region
      %s24 = ssub.s32 1024, 1024
      %25 = vsyncadd [#allocation4], %s24
      %s26 = sshll.u32 [#allocation3], 4
      %s27 = int_to_ptr.vmem [resolvable:$true] %s26
      %32 = dma.hbm_to_vmem [thread:$0]  %s2, 1024, %s27, [#allocation4], 64, 64, 4
    $region13: #{rnn_forward.1} parent=1 // pred_fallthru
      _
    // Predicated region
    $region14: #{rnn_forward.1} parent=1 // pred_check
      _
    $region15: #{rnn_forward.1} parent=1 // pred_check_branch
      %34 = sbr.rel (0) target = $region17
    $region16: #{rnn_forward.1} parent=1 // pred_region
      _
    $region17: #{rnn_forward.1} parent=1 // pred_fallthru
      _
    // Predicated region
    $region18: #{rnn_forward.1} parent=1 // pred_check
      _
    $region19: #{rnn_forward.1} parent=1 // pred_check_branch
      %36 = sbr.rel (0) target = $region21
    $region20: #{rnn_forward.1} parent=1 // pred_region
      %s38 = ssub.s32 1024, 1024
      %39 = vsyncadd [#allocation6], %s38
      %s40 = sshll.u32 [#allocation5], 4
      %s41 = int_to_ptr.vmem [resolvable:$true] %s40
      %46 = dma.hbm_to_vmem [thread:$0]  %s4, 1024, %s41, [#allocation6], 64, 64, 4
    $region21: #{rnn_forward.1} parent=1 // pred_fallthru
      _
    // Predicated region
    $region22: #{rnn_forward.1} parent=1 // pred_check
      _
    $region23: #{rnn_forward.1} parent=1 // pred_check_branch
      %48 = sbr.rel (0) target = $region25
    $region24: #{rnn_forward.1} parent=1 // pred_region
      %s50 = ssub.s32 1024, 1024
      %51 = vsyncadd [#allocation6], %s50
      %s52 = sshll.u32 [#allocation7], 4
      %s53 = int_to_ptr.vmem [resolvable:$true] %s52
      %58 = dma.hbm_to_vmem [thread:$0]  %s5, 1024, %s53, [#allocation6], 64, 64, 4
    $region25: #{rnn_forward.1} parent=1 // pred_fallthru
      _
    // Predicated region
    $region26: #{rnn_forward.1} parent=1 // pred_check
      _
    $region27: #{rnn_forward.1} parent=1 // pred_check_branch
      %60 = sbr.rel (0) target = $region29
    $region28: #{rnn_forward.1} parent=1 // pred_region
      _
    $region29: #{rnn_forward.1} parent=1 // pred_fallthru
      _
    // Predicated region
    $region30: #{rnn_forward.1} parent=1 // pred_check
      _
    $region31: #{rnn_forward.1} parent=1 // pred_check_branch
      %62 = sbr.rel (0) target = $region33
    $region32: #{rnn_forward.1} parent=1 // pred_region
      %s64 = ssub.s32 1024, 1024
      %65 = vsyncadd [#allocation9], %s64
      %s66 = sshll.u32 [#allocation8], 4
      %s67 = int_to_ptr.vmem [resolvable:$true] %s66
      %72 = dma.hbm_to_vmem [thread:$0]  %s7, 1024, %s67, [#allocation9], 64, 64, 4
    $region33: #{rnn_forward.1} parent=1 // pred_fallthru
      _
    // Predicated region
    $region34: #{rnn_forward.1} parent=1 // pred_check
      _
    $region35: #{rnn_forward.1} parent=1 // pred_check_branch
      %74 = sbr.rel (0) target = $region37
    $region36: #{rnn_forward.1} parent=1 // pred_region
      _
    $region37: #{rnn_forward.1} parent=1 // pred_fallthru
      _
    // Predicated region
    $region38: #{rnn_forward.1} parent=1 // pred_check
      _
    $region39: #{rnn_forward.1} parent=1 // pred_check_branch
      %76 = sbr.rel (0) target = $region41
    $region40: #{rnn_forward.1} parent=1 // pred_region
      %77 = dma.done [#allocation4], 1024
    $region41: #{rnn_forward.1} parent=1 // pred_fallthru
      _
    // Predicated region
    $region42: #{rnn_forward.1} parent=1 // pred_check
      _
    $region43: #{rnn_forward.1} parent=1 // pred_check_branch
      %79 = sbr.rel (0) target = $region45
    $region44: #{rnn_forward.1} parent=1 // pred_region
      %80 = dma.done [#allocation6], 1024
    $region45: #{rnn_forward.1} parent=1 // pred_fallthru
      _
    // Predicated region
    $region46: #{rnn_forward.1} parent=1 // pred_check
      _
    $region47: #{rnn_forward.1} parent=1 // pred_check_branch
      %82 = sbr.rel (0) target = $region49
    $region48: #{rnn_forward.1} parent=1 // pred_region
      %83 = dma.done [#allocation6], 1024
    $region49: #{rnn_forward.1} parent=1 // pred_fallthru
      _
    // Predicated region
    $region50: #{rnn_forward.1} parent=1 // pred_check
      _
    $region51: #{rnn_forward.1} parent=1 // pred_check_branch
      %85 = sbr.rel (0) target = $region53
    $region52: #{rnn_forward.1} parent=1 // pred_region
      %86 = dma.done [#allocation9], 1024
    $region53: #{rnn_forward.1} parent=1 // pred_fallthru
      _
    %v88 = vld [vmem:[%s1] sm:$0xf]
    %v89 = vld [vmem:[%s1 + $0x4] sm:$0xf]
    %v90 = vld [vmem:[%s1 + $0x8] sm:$0xf]
    %v91 = vld [vmem:[%s1 + $0xc] sm:$0xf]
    %v92 = vld [vmem:[%s1 + $0x10] sm:$0xf]
    %v93 = vld [vmem:[%s1 + $0x14] sm:$0xf]
    %v94 = vld [vmem:[%s1 + $0x18] sm:$0xf]
    %v95 = vld [vmem:[%s1 + $0x1c] sm:$0xf]
    %v96 = vld [vmem:[%s1 + $0x20] sm:$0xf]
    %v97 = vld [vmem:[%s1 + $0x24] sm:$0xf]
    %v98 = vld [vmem:[%s1 + $0x28] sm:$0xf]
    %v99 = vld [vmem:[%s1 + $0x2c] sm:$0xf]
    %v100 = vld [vmem:[%s1 + $0x30] sm:$0xf]
    %v101 = vld [vmem:[%s1 + $0x34] sm:$0xf]
    %v102 = vld [vmem:[%s1 + $0x38] sm:$0xf]
    %v103 = vld [vmem:[%s1 + $0x3c] sm:$0xf]
    %v104 = vld [vmem:[%s3] sm:$0x1]
    %v105 = vld [vmem:[%s0] sm:$0xf]
    %v106 = vld [vmem:[%s0 + $0x4] sm:$0xf]
    %v107 = vld [vmem:[%s0 + $0x8] sm:$0xf]
    %v108 = vld [vmem:[%s0 + $0xc] sm:$0xf]
    %v109 = vld [vmem:[%s0 + $0x10] sm:$0xf]
    %v110 = vld [vmem:[%s0 + $0x14] sm:$0xf]
    %v111 = vld [vmem:[%s0 + $0x18] sm:$0xf]
    %v112 = vld [vmem:[%s0 + $0x1c] sm:$0xf]
    %v114 = vlaneseq
    %v115 = vshrl.u32 %v114, 7
    %v116 = vsub.s32 0, %v115
    %v117 = vrot.slane %v104, %v116
    %v127 = vunpack.c.l.b16 %v105
    %v128 = vunpack.c.l.b16 %v106
    %v129 = vunpack.c.l.b16 %v107
    %v130 = vunpack.c.l.b16 %v108
    %v131 = vunpack.c.l.b16 %v109
    %v132 = vunpack.c.l.b16 %v110
    %v133 = vunpack.c.l.b16 %v111
    %v134 = vunpack.c.l.b16 %v112
    %v135 = vpack.c.b16 %v128, %v127
    %v136 = vpack.c.b16 %v130, %v129
    %v137 = vpack.c.b16 %v132, %v131
    %v138 = vpack.c.b16 %v134, %v133
    %v159 = vunpack.c.l.b16 %v88
    %v160 = vunpack.c.l.b16 %v89
    %v161 = vunpack.c.l.b16 %v90
    %v162 = vunpack.c.l.b16 %v91
    %v163 = vunpack.c.l.b16 %v92
    %v164 = vunpack.c.l.b16 %v93
    %v165 = vunpack.c.l.b16 %v94
    %v166 = vunpack.c.l.b16 %v95
    %v167 = vunpack.c.l.b16 %v96
    %v168 = vunpack.c.l.b16 %v97
    %v169 = vunpack.c.l.b16 %v98
    %v170 = vunpack.c.l.b16 %v99
    %v171 = vunpack.c.l.b16 %v100
    %v172 = vunpack.c.l.b16 %v101
    %v173 = vunpack.c.l.b16 %v102
    %v174 = vunpack.c.l.b16 %v103
    %v175 = vpack.c.b16 %v160, %v159
    %v176 = vpack.c.b16 %v162, %v161
    %v177 = vpack.c.b16 %v164, %v163
    %v178 = vpack.c.b16 %v166, %v165
    %v179 = vpack.c.b16 %v168, %v167
    %v180 = vpack.c.b16 %v170, %v169
    %v181 = vpack.c.b16 %v172, %v171
    %v182 = vpack.c.b16 %v174, %v173
    %191 = vmatprep.subr.bf16.mxu0 0
    %192 = vmatpush1.bf16.msra.mxu0 %v175
    %193 = vmatprep.subr.bf16.mxu0 0
    %194 = vmatpush1.bf16.msra.mxu0 %v176
    %195 = vmatprep.subr.bf16.mxu0 0
    %196 = vmatpush1.bf16.msra.mxu0 %v177
    %197 = vmatprep.subr.bf16.mxu0 0
    %198 = vmatpush1.bf16.msra.mxu0 %v178
    %199 = vmatprep.subr.bf16.mxu0 0
    %200 = vmatpush1.bf16.msra.mxu0 %v179
    %201 = vmatprep.subr.bf16.mxu0 0
    %202 = vmatpush1.bf16.msra.mxu0 %v180
    %203 = vmatprep.subr.bf16.mxu0 0
    %204 = vmatpush1.bf16.msra.mxu0 %v181
    %205 = vmatprep.subr.bf16.mxu0 0
    %206 = vmatpush1.bf16.msra.mxu0 %v182
    %207 = vmatprep.subr.bf16.mxu0 0
    %208 = vmatpush1.bf16.msra.mxu0 0
    %209 = vmatprep.subr.bf16.mxu0 0
    %210 = vmatpush1.bf16.msra.mxu0 0
    %211 = vmatprep.subr.bf16.mxu0 0
    %212 = vmatpush1.bf16.msra.mxu0 0
    %213 = vmatprep.subr.bf16.mxu0 0
    %214 = vmatpush1.bf16.msra.mxu0 0
    %215 = vmatprep.subr.bf16.mxu0 0
    %216 = vmatpush1.bf16.msra.mxu0 0
    %217 = vmatprep.subr.bf16.mxu0 0
    %218 = vmatpush1.bf16.msra.mxu0 0
    %219 = vmatprep.subr.bf16.mxu0 0
    %220 = vmatpush1.bf16.msra.mxu0 0
    %221 = vmatprep.subr.bf16.mxu0 0
    %222 = vmatpush1.bf16.msra.mxu0 0
    %223 = vmatprep.mubr.bf16.mxu0 0
    %224 = vmatmul.mubr.bf16.gmra.mrb[0].mxu0 %v135
    %v225 = vpop.f32.mrb[0].mxu0
    %v226 = vadd.f32 %v117, %v225
    %v227 = vpop.f32.mrb[0].mxu0
    %v228 = vpop.f32.mrb[0].mxu0
    %v229 = vadd.f32 %v117, %v228
    %v230 = vpop.f32.mrb[0].mxu0
    %231 = vmatprep.mubr.bf16.mxu0 0
    %232 = vmatmul.mubr.bf16.gmra.mrb[0].mxu0 %v136
    %v233 = vpop.f32.mrb[0].mxu0
    %v234 = vadd.f32 %v117, %v233
    %v235 = vpop.f32.mrb[0].mxu0
    %v236 = vpop.f32.mrb[0].mxu0
    %v237 = vadd.f32 %v117, %v236
    %v238 = vpop.f32.mrb[0].mxu0
    %239 = vmatprep.mubr.bf16.mxu0 0
    %240 = vmatmul.mubr.bf16.gmra.mrb[0].mxu0 %v137
    %v241 = vpop.f32.mrb[0].mxu0
    %v242 = vadd.f32 %v117, %v241
    %v243 = vpop.f32.mrb[0].mxu0
    %v244 = vpop.f32.mrb[0].mxu0
    %v245 = vadd.f32 %v117, %v244
    %v246 = vpop.f32.mrb[0].mxu0
    %247 = vmatprep.mubr.bf16.mxu0 0
    %248 = vmatmul.mubr.bf16.gmra.mrb[0].mxu0 %v138
    %v249 = vpop.f32.mrb[0].mxu0
    %v250 = vadd.f32 %v117, %v249
    %v251 = vpop.f32.mrb[0].mxu0
    %v252 = vpop.f32.mrb[0].mxu0
    %v253 = vadd.f32 %v117, %v252
    %v254 = vpop.f32.mrb[0].mxu0
    %255 = vdwg.mxu0
    %256 = vst [vmem:[#allocation2] sm:$0xff] %v226
    %257 = vst [vmem:[#allocation2 + $0x8] sm:$0xff] %v229
    %258 = vst [vmem:[#allocation2 + $0x10] sm:$0xff] %v234
    %259 = vst [vmem:[#allocation2 + $0x18] sm:$0xff] %v237
    %260 = vst [vmem:[#allocation2 + $0x20] sm:$0xff] %v242
    %261 = vst [vmem:[#allocation2 + $0x28] sm:$0xff] %v245
    %262 = vst [vmem:[#allocation2 + $0x30] sm:$0xff] %v250
    %263 = vst [vmem:[#allocation2 + $0x38] sm:$0xff] %v253
    %v264 = vld [vmem:[#allocation3] sm:$0xf]
    %v265 = vld [vmem:[#allocation3 + $0x4] sm:$0xf]
    %v266 = vld [vmem:[#allocation3 + $0x8] sm:$0xf]
    %v267 = vld [vmem:[#allocation3 + $0xc] sm:$0xf]
    %v268 = vld [vmem:[#allocation3 + $0x10] sm:$0xf]
    %v269 = vld [vmem:[#allocation3 + $0x14] sm:$0xf]
    %v270 = vld [vmem:[#allocation3 + $0x18] sm:$0xf]
    %v271 = vld [vmem:[#allocation3 + $0x1c] sm:$0xf]
    %v272 = vld [vmem:[#allocation3 + $0x20] sm:$0xf]
    %v273 = vld [vmem:[#allocation3 + $0x24] sm:$0xf]
    %v274 = vld [vmem:[#allocation3 + $0x28] sm:$0xf]
    %v275 = vld [vmem:[#allocation3 + $0x2c] sm:$0xf]
    %v276 = vld [vmem:[#allocation3 + $0x30] sm:$0xf]
    %v277 = vld [vmem:[#allocation3 + $0x34] sm:$0xf]
    %v278 = vld [vmem:[#allocation3 + $0x38] sm:$0xf]
    %v279 = vld [vmem:[#allocation3 + $0x3c] sm:$0xf]
    %v280 = vld [vmem:[#allocation2] sm:$0xff]
    %v297 = vunpack.c.l.b16 %v264
    %v298 = vunpack.c.l.b16 %v265
    %v299 = vunpack.c.l.b16 %v266
    %v300 = vunpack.c.l.b16 %v267
    %v301 = vunpack.c.l.b16 %v268
    %v302 = vunpack.c.l.b16 %v269
    %v303 = vunpack.c.l.b16 %v270
    %v304 = vunpack.c.l.b16 %v271
    %v305 = vunpack.c.l.b16 %v272
    %v306 = vunpack.c.l.b16 %v273
    %v307 = vunpack.c.l.b16 %v274
    %v308 = vunpack.c.l.b16 %v275
    %v309 = vunpack.c.l.b16 %v276
    %v310 = vunpack.c.l.b16 %v277
    %v311 = vunpack.c.l.b16 %v278
    %v312 = vunpack.c.l.b16 %v279
    %v313 = vpack.c.b16 %v298, %v297
    %v314 = vpack.c.b16 %v300, %v299
    %v315 = vpack.c.b16 %v302, %v301
    %v316 = vpack.c.b16 %v304, %v303
    %v317 = vpack.c.b16 %v306, %v305
    %v318 = vpack.c.b16 %v308, %v307
    %v319 = vpack.c.b16 %v310, %v309
    %v320 = vpack.c.b16 %v312, %v311
    %329 = vmatprep.subr.bf16.mxu0 0
    %330 = vmatpush1.bf16.msra.mxu0 %v313
    %331 = vmatprep.subr.bf16.mxu0 0
    %332 = vmatpush1.bf16.msra.mxu0 %v314
    %333 = vmatprep.subr.bf16.mxu0 0
    %334 = vmatpush1.bf16.msra.mxu0 %v315
    %335 = vmatprep.subr.bf16.mxu0 0
    %336 = vmatpush1.bf16.msra.mxu0 %v316
    %337 = vmatprep.subr.bf16.mxu0 0
    %338 = vmatpush1.bf16.msra.mxu0 %v317
    %339 = vmatprep.subr.bf16.mxu0 0
    %340 = vmatpush1.bf16.msra.mxu0 %v318
    %341 = vmatprep.subr.bf16.mxu0 0
    %342 = vmatpush1.bf16.msra.mxu0 %v319
    %343 = vmatprep.subr.bf16.mxu0 0
    %344 = vmatpush1.bf16.msra.mxu0 %v320
    %345 = vmatprep.subr.bf16.mxu0 0
    %346 = vmatpush1.bf16.msra.mxu0 0
    %347 = vmatprep.subr.bf16.mxu0 0
    %348 = vmatpush1.bf16.msra.mxu0 0
    %349 = vmatprep.subr.bf16.mxu0 0
    %350 = vmatpush1.bf16.msra.mxu0 0
    %351 = vmatprep.subr.bf16.mxu0 0
    %352 = vmatpush1.bf16.msra.mxu0 0
    %353 = vmatprep.subr.bf16.mxu0 0
    %354 = vmatpush1.bf16.msra.mxu0 0
    %355 = vmatprep.subr.bf16.mxu0 0
    %356 = vmatpush1.bf16.msra.mxu0 0
    %357 = vmatprep.subr.bf16.mxu0 0
    %358 = vmatpush1.bf16.msra.mxu0 0
    %359 = vmatprep.subr.bf16.mxu0 0
    %360 = vmatpush1.bf16.msra.mxu0 0
    %361 = vmatprep.mubr.bf16.mxu0 0
    %362 = vmatmul.mubr.bf16.gmra.mrb[0].mxu0 0
    %v363 = vpop.f32.mrb[0].mxu0
    %v364 = vadd.f32 0.0, %v363
    %v365 = vpop.f32.mrb[0].mxu0
    %v366 = vpop.f32.mrb[0].mxu0
    %v367 = vpop.f32.mrb[0].mxu0
    %368 = vdwg.mxu0
    %v369 = vadd.f32 %v280, %v364
    %v370 = vtanh.pop %v369
    %371 = vst [vmem:[#allocation2] sm:$0xff] %v370
    %s372 = scalar_lea.vmem [#allocation2], 8
    %v373 = vld [vmem:[%s372] sm:$0xff]
    %v374 = vpack.c.bf16 %v370, %v370
    %375 = vmatprep.subr.bf16.mxu0 0
    %376 = vmatpush1.bf16.msra.mxu0 %v313
    %377 = vmatprep.subr.bf16.mxu0 0
    %378 = vmatpush1.bf16.msra.mxu0 %v314
    %379 = vmatprep.subr.bf16.mxu0 0
    %380 = vmatpush1.bf16.msra.mxu0 %v315
    %381 = vmatprep.subr.bf16.mxu0 0
    %382 = vmatpush1.bf16.msra.mxu0 %v316
    %383 = vmatprep.subr.bf16.mxu0 0
    %384 = vmatpush1.bf16.msra.mxu0 %v317
    %385 = vmatprep.subr.bf16.mxu0 0
    %386 = vmatpush1.bf16.msra.mxu0 %v318
    %387 = vmatprep.subr.bf16.mxu0 0
    %388 = vmatpush1.bf16.msra.mxu0 %v319
    %389 = vmatprep.subr.bf16.mxu0 0
    %390 = vmatpush1.bf16.msra.mxu0 %v320
    %391 = vmatprep.subr.bf16.mxu0 0
    %392 = vmatpush1.bf16.msra.mxu0 0
    %393 = vmatprep.subr.bf16.mxu0 0
    %394 = vmatpush1.bf16.msra.mxu0 0
    %395 = vmatprep.subr.bf16.mxu0 0
    %396 = vmatpush1.bf16.msra.mxu0 0
    %397 = vmatprep.subr.bf16.mxu0 0
    %398 = vmatpush1.bf16.msra.mxu0 0
    %399 = vmatprep.subr.bf16.mxu0 0
    %400 = vmatpush1.bf16.msra.mxu0 0
    %401 = vmatprep.subr.bf16.mxu0 0
    %402 = vmatpush1.bf16.msra.mxu0 0
    %403 = vmatprep.subr.bf16.mxu0 0
    %404 = vmatpush1.bf16.msra.mxu0 0
    %405 = vmatprep.subr.bf16.mxu0 0
    %406 = vmatpush1.bf16.msra.mxu0 0
    %407 = vmatprep.mubr.bf16.mxu0 0
    %408 = vmatmul.mubr.bf16.gmra.mrb[0].mxu0 %v374
    %v409 = vpop.f32.mrb[0].mxu0
    %v410 = vadd.f32 0.0, %v409
    %v411 = vpop.f32.mrb[0].mxu0
    %v412 = vpop.f32.mrb[0].mxu0
    %v413 = vpop.f32.mrb[0].mxu0
    %414 = vdwg.mxu0
    %v415 = vadd.f32 %v373, %v410
    %v416 = vtanh.pop %v415
    %417 = vst [vmem:[%s372] sm:$0xff] %v416
    %s418 = scalar_lea.vmem [#allocation2], 16
    %v419 = vld [vmem:[%s418] sm:$0xff]
    %v420 = vpack.c.bf16 %v416, %v416
    %421 = vmatprep.subr.bf16.mxu0 0
    %422 = vmatpush1.bf16.msra.mxu0 %v313
    %423 = vmatprep.subr.bf16.mxu0 0
    %424 = vmatpush1.bf16.msra.mxu0 %v314
    %425 = vmatprep.subr.bf16.mxu0 0
    %426 = vmatpush1.bf16.msra.mxu0 %v315
    %427 = vmatprep.subr.bf16.mxu0 0
    %428 = vmatpush1.bf16.msra.mxu0 %v316
    %429 = vmatprep.subr.bf16.mxu0 0
    %430 = vmatpush1.bf16.msra.mxu0 %v317
    %431 = vmatprep.subr.bf16.mxu0 0
    %432 = vmatpush1.bf16.msra.mxu0 %v318
    %433 = vmatprep.subr.bf16.mxu0 0
    %434 = vmatpush1.bf16.msra.mxu0 %v319
    %435 = vmatprep.subr.bf16.mxu0 0
    %436 = vmatpush1.bf16.msra.mxu0 %v320
    %437 = vmatprep.subr.bf16.mxu0 0
    %438 = vmatpush1.bf16.msra.mxu0 0
    %439 = vmatprep.subr.bf16.mxu0 0
    %440 = vmatpush1.bf16.msra.mxu0 0
    %441 = vmatprep.subr.bf16.mxu0 0
    %442 = vmatpush1.bf16.msra.mxu0 0
    %443 = vmatprep.subr.bf16.mxu0 0
    %444 = vmatpush1.bf16.msra.mxu0 0
    %445 = vmatprep.subr.bf16.mxu0 0
    %446 = vmatpush1.bf16.msra.mxu0 0
    %447 = vmatprep.subr.bf16.mxu0 0
    %448 = vmatpush1.bf16.msra.mxu0 0
    %449 = vmatprep.subr.bf16.mxu0 0
    %450 = vmatpush1.bf16.msra.mxu0 0
    %451 = vmatprep.subr.bf16.mxu0 0
    %452 = vmatpush1.bf16.msra.mxu0 0
    %453 = vmatprep.mubr.bf16.mxu0 0
    %454 = vmatmul.mubr.bf16.gmra.mrb[0].mxu0 %v420
    %v455 = vpop.f32.mrb[0].mxu0
    %v456 = vadd.f32 0.0, %v455
    %v457 = vpop.f32.mrb[0].mxu0
    %v458 = vpop.f32.mrb[0].mxu0
    %v459 = vpop.f32.mrb[0].mxu0
    %460 = vdwg.mxu0
    %v461 = vadd.f32 %v419, %v456
    %v462 = vtanh.pop %v461
    %463 = vst [vmem:[%s418] sm:$0xff] %v462
    %s464 = scalar_lea.vmem [#allocation2], 24
    %v465 = vld [vmem:[%s464] sm:$0xff]
    %v466 = vpack.c.bf16 %v462, %v462
    %467 = vmatprep.subr.bf16.mxu0 0
    %468 = vmatpush1.bf16.msra.mxu0 %v313
    %469 = vmatprep.subr.bf16.mxu0 0
    %470 = vmatpush1.bf16.msra.mxu0 %v314
    %471 = vmatprep.subr.bf16.mxu0 0
    %472 = vmatpush1.bf16.msra.mxu0 %v315
    %473 = vmatprep.subr.bf16.mxu0 0
    %474 = vmatpush1.bf16.msra.mxu0 %v316
    %475 = vmatprep.subr.bf16.mxu0 0
    %476 = vmatpush1.bf16.msra.mxu0 %v317
    %477 = vmatprep.subr.bf16.mxu0 0
    %478 = vmatpush1.bf16.msra.mxu0 %v318
    %479 = vmatprep.subr.bf16.mxu0 0
    %480 = vmatpush1.bf16.msra.mxu0 %v319
    %481 = vmatprep.subr.bf16.mxu0 0
    %482 = vmatpush1.bf16.msra.mxu0 %v320
    %483 = vmatprep.subr.bf16.mxu0 0
    %484 = vmatpush1.bf16.msra.mxu0 0
    %485 = vmatprep.subr.bf16.mxu0 0
    %486 = vmatpush1.bf16.msra.mxu0 0
    %487 = vmatprep.subr.bf16.mxu0 0
    %488 = vmatpush1.bf16.msra.mxu0 0
    %489 = vmatprep.subr.bf16.mxu0 0
    %490 = vmatpush1.bf16.msra.mxu0 0
    %491 = vmatprep.subr.bf16.mxu0 0
    %492 = vmatpush1.bf16.msra.mxu0 0
    %493 = vmatprep.subr.bf16.mxu0 0
    %494 = vmatpush1.bf16.msra.mxu0 0
    %495 = vmatprep.subr.bf16.mxu0 0
    %496 = vmatpush1.bf16.msra.mxu0 0
    %497 = vmatprep.subr.bf16.mxu0 0
    %498 = vmatpush1.bf16.msra.mxu0 0
    %499 = vmatprep.mubr.bf16.mxu0 0
    %500 = vmatmul.mubr.bf16.gmra.mrb[0].mxu0 %v466
    %v501 = vpop.f32.mrb[0].mxu0
    %v502 = vadd.f32 0.0, %v501
    %v503 = vpop.f32.mrb[0].mxu0
    %v504 = vpop.f32.mrb[0].mxu0
    %v505 = vpop.f32.mrb[0].mxu0
    %506 = vdwg.mxu0
    %v507 = vadd.f32 %v465, %v502
    %v508 = vtanh.pop %v507
    %509 = vst [vmem:[%s464] sm:$0xff] %v508
    %s510 = scalar_lea.vmem [#allocation2], 32
    %v511 = vld [vmem:[%s510] sm:$0xff]
    %v512 = vpack.c.bf16 %v508, %v508
    %513 = vmatprep.subr.bf16.mxu0 0
    %514 = vmatpush1.bf16.msra.mxu0 %v313
    %515 = vmatprep.subr.bf16.mxu0 0
    %516 = vmatpush1.bf16.msra.mxu0 %v314
    %517 = vmatprep.subr.bf16.mxu0 0
    %518 = vmatpush1.bf16.msra.mxu0 %v315
    %519 = vmatprep.subr.bf16.mxu0 0
    %520 = vmatpush1.bf16.msra.mxu0 %v316
    %521 = vmatprep.subr.bf16.mxu0 0
    %522 = vmatpush1.bf16.msra.mxu0 %v317
    %523 = vmatprep.subr.bf16.mxu0 0
    %524 = vmatpush1.bf16.msra.mxu0 %v318
    %525 = vmatprep.subr.bf16.mxu0 0
    %526 = vmatpush1.bf16.msra.mxu0 %v319
    %527 = vmatprep.subr.bf16.mxu0 0
    %528 = vmatpush1.bf16.msra.mxu0 %v320
    %529 = vmatprep.subr.bf16.mxu0 0
    %530 = vmatpush1.bf16.msra.mxu0 0
    %531 = vmatprep.subr.bf16.mxu0 0
    %532 = vmatpush1.bf16.msra.mxu0 0
    %533 = vmatprep.subr.bf16.mxu0 0
    %534 = vmatpush1.bf16.msra.mxu0 0
    %535 = vmatprep.subr.bf16.mxu0 0
    %536 = vmatpush1.bf16.msra.mxu0 0
    %537 = vmatprep.subr.bf16.mxu0 0
    %538 = vmatpush1.bf16.msra.mxu0 0
    %539 = vmatprep.subr.bf16.mxu0 0
    %540 = vmatpush1.bf16.msra.mxu0 0
    %541 = vmatprep.subr.bf16.mxu0 0
    %542 = vmatpush1.bf16.msra.mxu0 0
    %543 = vmatprep.subr.bf16.mxu0 0
    %544 = vmatpush1.bf16.msra.mxu0 0
    %545 = vmatprep.mubr.bf16.mxu0 0
    %546 = vmatmul.mubr.bf16.gmra.mrb[0].mxu0 %v512
    %v547 = vpop.f32.mrb[0].mxu0
    %v548 = vadd.f32 0.0, %v547
    %v549 = vpop.f32.mrb[0].mxu0
    %v550 = vpop.f32.mrb[0].mxu0
    %v551 = vpop.f32.mrb[0].mxu0
    %552 = vdwg.mxu0
    %v553 = vadd.f32 %v511, %v548
    %v554 = vtanh.pop %v553
    %555 = vst [vmem:[%s510] sm:$0xff] %v554
    %s556 = scalar_lea.vmem [#allocation2], 40
    %v557 = vld [vmem:[%s556] sm:$0xff]
    %v558 = vpack.c.bf16 %v554, %v554
    %559 = vmatprep.subr.bf16.mxu0 0
    %560 = vmatpush1.bf16.msra.mxu0 %v313
    %561 = vmatprep.subr.bf16.mxu0 0
    %562 = vmatpush1.bf16.msra.mxu0 %v314
    %563 = vmatprep.subr.bf16.mxu0 0
    %564 = vmatpush1.bf16.msra.mxu0 %v315
    %565 = vmatprep.subr.bf16.mxu0 0
    %566 = vmatpush1.bf16.msra.mxu0 %v316
    %567 = vmatprep.subr.bf16.mxu0 0
    %568 = vmatpush1.bf16.msra.mxu0 %v317
    %569 = vmatprep.subr.bf16.mxu0 0
    %570 = vmatpush1.bf16.msra.mxu0 %v318
    %571 = vmatprep.subr.bf16.mxu0 0
    %572 = vmatpush1.bf16.msra.mxu0 %v319
    %573 = vmatprep.subr.bf16.mxu0 0
    %574 = vmatpush1.bf16.msra.mxu0 %v320
    %575 = vmatprep.subr.bf16.mxu0 0
    %576 = vmatpush1.bf16.msra.mxu0 0
    %577 = vmatprep.subr.bf16.mxu0 0
    %578 = vmatpush1.bf16.msra.mxu0 0
    %579 = vmatprep.subr.bf16.mxu0 0
    %580 = vmatpush1.bf16.msra.mxu0 0
    %581 = vmatprep.subr.bf16.mxu0 0
    %582 = vmatpush1.bf16.msra.mxu0 0
    %583 = vmatprep.subr.bf16.mxu0 0
    %584 = vmatpush1.bf16.msra.mxu0 0
    %585 = vmatprep.subr.bf16.mxu0 0
    %586 = vmatpush1.bf16.msra.mxu0 0
    %587 = vmatprep.subr.bf16.mxu0 0
    %588 = vmatpush1.bf16.msra.mxu0 0
    %589 = vmatprep.subr.bf16.mxu0 0
    %590 = vmatpush1.bf16.msra.mxu0 0
    %591 = vmatprep.mubr.bf16.mxu0 0
    %592 = vmatmul.mubr.bf16.gmra.mrb[0].mxu0 %v558
    %v593 = vpop.f32.mrb[0].mxu0
    %v594 = vadd.f32 0.0, %v593
    %v595 = vpop.f32.mrb[0].mxu0
    %v596 = vpop.f32.mrb[0].mxu0
    %v597 = vpop.f32.mrb[0].mxu0
    %598 = vdwg.mxu0
    %v599 = vadd.f32 %v557, %v594
    %v600 = vtanh.pop %v599
    %601 = vst [vmem:[%s556] sm:$0xff] %v600
    %s602 = scalar_lea.vmem [#allocation2], 48
    %v603 = vld [vmem:[%s602] sm:$0xff]
    %v604 = vpack.c.bf16 %v600, %v600
    %605 = vmatprep.subr.bf16.mxu0 0
    %606 = vmatpush1.bf16.msra.mxu0 %v313
    %607 = vmatprep.subr.bf16.mxu0 0
    %608 = vmatpush1.bf16.msra.mxu0 %v314
    %609 = vmatprep.subr.bf16.mxu0 0
    %610 = vmatpush1.bf16.msra.mxu0 %v315
    %611 = vmatprep.subr.bf16.mxu0 0
    %612 = vmatpush1.bf16.msra.mxu0 %v316
    %613 = vmatprep.subr.bf16.mxu0 0
    %614 = vmatpush1.bf16.msra.mxu0 %v317
    %615 = vmatprep.subr.bf16.mxu0 0
    %616 = vmatpush1.bf16.msra.mxu0 %v318
    %617 = vmatprep.subr.bf16.mxu0 0
    %618 = vmatpush1.bf16.msra.mxu0 %v319
    %619 = vmatprep.subr.bf16.mxu0 0
    %620 = vmatpush1.bf16.msra.mxu0 %v320
    %621 = vmatprep.subr.bf16.mxu0 0
    %622 = vmatpush1.bf16.msra.mxu0 0
    %623 = vmatprep.subr.bf16.mxu0 0
    %624 = vmatpush1.bf16.msra.mxu0 0
    %625 = vmatprep.subr.bf16.mxu0 0
    %626 = vmatpush1.bf16.msra.mxu0 0
    %627 = vmatprep.subr.bf16.mxu0 0
    %628 = vmatpush1.bf16.msra.mxu0 0
    %629 = vmatprep.subr.bf16.mxu0 0
    %630 = vmatpush1.bf16.msra.mxu0 0
    %631 = vmatprep.subr.bf16.mxu0 0
    %632 = vmatpush1.bf16.msra.mxu0 0
    %633 = vmatprep.subr.bf16.mxu0 0
    %634 = vmatpush1.bf16.msra.mxu0 0
    %635 = vmatprep.subr.bf16.mxu0 0
    %636 = vmatpush1.bf16.msra.mxu0 0
    %637 = vmatprep.mubr.bf16.mxu0 0
    %638 = vmatmul.mubr.bf16.gmra.mrb[0].mxu0 %v604
    %v639 = vpop.f32.mrb[0].mxu0
    %v640 = vadd.f32 0.0, %v639
    %v641 = vpop.f32.mrb[0].mxu0
    %v642 = vpop.f32.mrb[0].mxu0
    %v643 = vpop.f32.mrb[0].mxu0
    %644 = vdwg.mxu0
    %v645 = vadd.f32 %v603, %v640
    %v646 = vtanh.pop %v645
    %647 = vst [vmem:[%s602] sm:$0xff] %v646
    %s648 = scalar_lea.vmem [#allocation2], 56
    %v649 = vld [vmem:[%s648] sm:$0xff]
    %v650 = vpack.c.bf16 %v646, %v646
    %651 = vmatprep.subr.bf16.mxu0 0
    %652 = vmatpush1.bf16.msra.mxu0 %v313
    %653 = vmatprep.subr.bf16.mxu0 0
    %654 = vmatpush1.bf16.msra.mxu0 %v314
    %655 = vmatprep.subr.bf16.mxu0 0
    %656 = vmatpush1.bf16.msra.mxu0 %v315
    %657 = vmatprep.subr.bf16.mxu0 0
    %658 = vmatpush1.bf16.msra.mxu0 %v316
    %659 = vmatprep.subr.bf16.mxu0 0
    %660 = vmatpush1.bf16.msra.mxu0 %v317
    %661 = vmatprep.subr.bf16.mxu0 0
    %662 = vmatpush1.bf16.msra.mxu0 %v318
    %663 = vmatprep.subr.bf16.mxu0 0
    %664 = vmatpush1.bf16.msra.mxu0 %v319
    %665 = vmatprep.subr.bf16.mxu0 0
    %666 = vmatpush1.bf16.msra.mxu0 %v320
    %667 = vmatprep.subr.bf16.mxu0 0
    %668 = vmatpush1.bf16.msra.mxu0 0
    %669 = vmatprep.subr.bf16.mxu0 0
    %670 = vmatpush1.bf16.msra.mxu0 0
    %671 = vmatprep.subr.bf16.mxu0 0
    %672 = vmatpush1.bf16.msra.mxu0 0
    %673 = vmatprep.subr.bf16.mxu0 0
    %674 = vmatpush1.bf16.msra.mxu0 0
    %675 = vmatprep.subr.bf16.mxu0 0
    %676 = vmatpush1.bf16.msra.mxu0 0
    %677 = vmatprep.subr.bf16.mxu0 0
    %678 = vmatpush1.bf16.msra.mxu0 0
    %679 = vmatprep.subr.bf16.mxu0 0
    %680 = vmatpush1.bf16.msra.mxu0 0
    %681 = vmatprep.subr.bf16.mxu0 0
    %682 = vmatpush1.bf16.msra.mxu0 0
    %683 = vmatprep.mubr.bf16.mxu0 0
    %684 = vmatmul.mubr.bf16.gmra.mrb[0].mxu0 %v650
    %v685 = vpop.f32.mrb[0].mxu0
    %v686 = vadd.f32 0.0, %v685
    %v687 = vpop.f32.mrb[0].mxu0
    %v688 = vpop.f32.mrb[0].mxu0
    %v689 = vpop.f32.mrb[0].mxu0
    %690 = vdwg.mxu0
    %v691 = vadd.f32 %v649, %v686
    %v692 = vtanh.pop %v691
    %693 = vst [vmem:[%s648] sm:$0xff] %v692
    %v694 = vld [vmem:[#allocation5] sm:$0xf]
    %v695 = vld [vmem:[#allocation5 + $0x4] sm:$0xf]
    %v696 = vld [vmem:[#allocation5 + $0x8] sm:$0xf]
    %v697 = vld [vmem:[#allocation5 + $0xc] sm:$0xf]
    %v698 = vld [vmem:[#allocation5 + $0x10] sm:$0xf]
    %v699 = vld [vmem:[#allocation5 + $0x14] sm:$0xf]
    %v700 = vld [vmem:[#allocation5 + $0x18] sm:$0xf]
    %v701 = vld [vmem:[#allocation5 + $0x1c] sm:$0xf]
    %v702 = vld [vmem:[#allocation5 + $0x20] sm:$0xf]
    %v703 = vld [vmem:[#allocation5 + $0x24] sm:$0xf]
    %v704 = vld [vmem:[#allocation5 + $0x28] sm:$0xf]
    %v705 = vld [vmem:[#allocation5 + $0x2c] sm:$0xf]
    %v706 = vld [vmem:[#allocation5 + $0x30] sm:$0xf]
    %v707 = vld [vmem:[#allocation5 + $0x34] sm:$0xf]
    %v708 = vld [vmem:[#allocation5 + $0x38] sm:$0xf]
    %v709 = vld [vmem:[#allocation5 + $0x3c] sm:$0xf]
    %v710 = vld [vmem:[%s6] sm:$0x1]
    %v711 = vld [vmem:[#allocation2] sm:$0xff]
    %v712 = vld [vmem:[#allocation2 + $0x8] sm:$0xff]
    %v713 = vld [vmem:[#allocation2 + $0x10] sm:$0xff]
    %v714 = vld [vmem:[#allocation2 + $0x18] sm:$0xff]
    %v715 = vld [vmem:[#allocation2 + $0x20] sm:$0xff]
    %v716 = vld [vmem:[#allocation2 + $0x28] sm:$0xff]
    %v717 = vld [vmem:[#allocation2 + $0x30] sm:$0xff]
    %v718 = vld [vmem:[#allocation2 + $0x38] sm:$0xff]
    %v719 = vpack.c.bf16 %v712, %v711
    %v720 = vpack.c.bf16 %v714, %v713
    %v721 = vpack.c.bf16 %v716, %v715
    %v722 = vpack.c.bf16 %v718, %v717
    %v724 = vlaneseq
    %v725 = vshrl.u32 %v724, 7
    %v726 = vsub.s32 0, %v725
    %v727 = vrot.slane %v710, %v726
    %v745 = vunpack.c.l.b16 %v694
    %v746 = vunpack.c.l.b16 %v695
    %v747 = vunpack.c.l.b16 %v696
    %v748 = vunpack.c.l.b16 %v697
    %v749 = vunpack.c.l.b16 %v698
    %v750 = vunpack.c.l.b16 %v699
    %v751 = vunpack.c.l.b16 %v700
    %v752 = vunpack.c.l.b16 %v701
    %v753 = vunpack.c.l.b16 %v702
    %v754 = vunpack.c.l.b16 %v703
    %v755 = vunpack.c.l.b16 %v704
    %v756 = vunpack.c.l.b16 %v705
    %v757 = vunpack.c.l.b16 %v706
    %v758 = vunpack.c.l.b16 %v707
    %v759 = vunpack.c.l.b16 %v708
    %v760 = vunpack.c.l.b16 %v709
    %v761 = vpack.c.b16 %v746, %v745
    %v762 = vpack.c.b16 %v748, %v747
    %v763 = vpack.c.b16 %v750, %v749
    %v764 = vpack.c.b16 %v752, %v751
    %v765 = vpack.c.b16 %v754, %v753
    %v766 = vpack.c.b16 %v756, %v755
    %v767 = vpack.c.b16 %v758, %v757
    %v768 = vpack.c.b16 %v760, %v759
    %777 = vmatprep.subr.bf16.mxu0 0
    %778 = vmatpush1.bf16.msra.mxu0 %v761
    %779 = vmatprep.subr.bf16.mxu0 0
    %780 = vmatpush1.bf16.msra.mxu0 %v762
    %781 = vmatprep.subr.bf16.mxu0 0
    %782 = vmatpush1.bf16.msra.mxu0 %v763
    %783 = vmatprep.subr.bf16.mxu0 0
    %784 = vmatpush1.bf16.msra.mxu0 %v764
    %785 = vmatprep.subr.bf16.mxu0 0
    %786 = vmatpush1.bf16.msra.mxu0 %v765
    %787 = vmatprep.subr.bf16.mxu0 0
    %788 = vmatpush1.bf16.msra.mxu0 %v766
    %789 = vmatprep.subr.bf16.mxu0 0
    %790 = vmatpush1.bf16.msra.mxu0 %v767
    %791 = vmatprep.subr.bf16.mxu0 0
    %792 = vmatpush1.bf16.msra.mxu0 %v768
    %793 = vmatprep.subr.bf16.mxu0 0
    %794 = vmatpush1.bf16.msra.mxu0 0
    %795 = vmatprep.subr.bf16.mxu0 0
    %796 = vmatpush1.bf16.msra.mxu0 0
    %797 = vmatprep.subr.bf16.mxu0 0
    %798 = vmatpush1.bf16.msra.mxu0 0
    %799 = vmatprep.subr.bf16.mxu0 0
    %800 = vmatpush1.bf16.msra.mxu0 0
    %801 = vmatprep.subr.bf16.mxu0 0
    %802 = vmatpush1.bf16.msra.mxu0 0
    %803 = vmatprep.subr.bf16.mxu0 0
    %804 = vmatpush1.bf16.msra.mxu0 0
    %805 = vmatprep.subr.bf16.mxu0 0
    %806 = vmatpush1.bf16.msra.mxu0 0
    %807 = vmatprep.subr.bf16.mxu0 0
    %808 = vmatpush1.bf16.msra.mxu0 0
    %809 = vmatprep.mubr.bf16.mxu0 0
    %810 = vmatmul.mubr.bf16.gmra.mrb[0].mxu0 %v719
    %v811 = vpop.f32.mrb[0].mxu0
    %v812 = vadd.f32 %v727, %v811
    %v813 = vpop.f32.mrb[0].mxu0
    %v814 = vpop.f32.mrb[0].mxu0
    %v815 = vadd.f32 %v727, %v814
    %v816 = vpop.f32.mrb[0].mxu0
    %817 = vmatprep.mubr.bf16.mxu0 0
    %818 = vmatmul.mubr.bf16.gmra.mrb[0].mxu0 %v720
    %v819 = vpop.f32.mrb[0].mxu0
    %v820 = vadd.f32 %v727, %v819
    %v821 = vpop.f32.mrb[0].mxu0
    %v822 = vpop.f32.mrb[0].mxu0
    %v823 = vadd.f32 %v727, %v822
    %v824 = vpop.f32.mrb[0].mxu0
    %825 = vmatprep.mubr.bf16.mxu0 0
    %826 = vmatmul.mubr.bf16.gmra.mrb[0].mxu0 %v721
    %v827 = vpop.f32.mrb[0].mxu0
    %v828 = vadd.f32 %v727, %v827
    %v829 = vpop.f32.mrb[0].mxu0
    %v830 = vpop.f32.mrb[0].mxu0
    %v831 = vadd.f32 %v727, %v830
    %v832 = vpop.f32.mrb[0].mxu0
    %833 = vmatprep.mubr.bf16.mxu0 0
    %834 = vmatmul.mubr.bf16.gmra.mrb[0].mxu0 %v722
    %v835 = vpop.f32.mrb[0].mxu0
    %v836 = vadd.f32 %v727, %v835
    %v837 = vpop.f32.mrb[0].mxu0
    %v838 = vpop.f32.mrb[0].mxu0
    %v839 = vadd.f32 %v727, %v838
    %v840 = vpop.f32.mrb[0].mxu0
    %841 = vdwg.mxu0
    %842 = vst [vmem:[#allocation2] sm:$0xff] %v812
    %843 = vst [vmem:[#allocation2 + $0x8] sm:$0xff] %v815
    %844 = vst [vmem:[#allocation2 + $0x10] sm:$0xff] %v820
    %845 = vst [vmem:[#allocation2 + $0x18] sm:$0xff] %v823
    %846 = vst [vmem:[#allocation2 + $0x20] sm:$0xff] %v828
    %847 = vst [vmem:[#allocation2 + $0x28] sm:$0xff] %v831
    %848 = vst [vmem:[#allocation2 + $0x30] sm:$0xff] %v836
    %849 = vst [vmem:[#allocation2 + $0x38] sm:$0xff] %v839
    %v850 = vld [vmem:[#allocation7] sm:$0xf]
    %v851 = vld [vmem:[#allocation7 + $0x4] sm:$0xf]
    %v852 = vld [vmem:[#allocation7 + $0x8] sm:$0xf]
    %v853 = vld [vmem:[#allocation7 + $0xc] sm:$0xf]
    %v854 = vld [vmem:[#allocation7 + $0x10] sm:$0xf]
    %v855 = vld [vmem:[#allocation7 + $0x14] sm:$0xf]
    %v856 = vld [vmem:[#allocation7 + $0x18] sm:$0xf]
    %v857 = vld [vmem:[#allocation7 + $0x1c] sm:$0xf]
    %v858 = vld [vmem:[#allocation7 + $0x20] sm:$0xf]
    %v859 = vld [vmem:[#allocation7 + $0x24] sm:$0xf]
    %v860 = vld [vmem:[#allocation7 + $0x28] sm:$0xf]
    %v861 = vld [vmem:[#allocation7 + $0x2c] sm:$0xf]
    %v862 = vld [vmem:[#allocation7 + $0x30] sm:$0xf]
    %v863 = vld [vmem:[#allocation7 + $0x34] sm:$0xf]
    %v864 = vld [vmem:[#allocation7 + $0x38] sm:$0xf]
    %v865 = vld [vmem:[#allocation7 + $0x3c] sm:$0xf]
    %v866 = vld [vmem:[#allocation2] sm:$0xff]
    %v883 = vunpack.c.l.b16 %v850
    %v884 = vunpack.c.l.b16 %v851
    %v885 = vunpack.c.l.b16 %v852
    %v886 = vunpack.c.l.b16 %v853
    %v887 = vunpack.c.l.b16 %v854
    %v888 = vunpack.c.l.b16 %v855
    %v889 = vunpack.c.l.b16 %v856
    %v890 = vunpack.c.l.b16 %v857
    %v891 = vunpack.c.l.b16 %v858
    %v892 = vunpack.c.l.b16 %v859
    %v893 = vunpack.c.l.b16 %v860
    %v894 = vunpack.c.l.b16 %v861
    %v895 = vunpack.c.l.b16 %v862
    %v896 = vunpack.c.l.b16 %v863
    %v897 = vunpack.c.l.b16 %v864
    %v898 = vunpack.c.l.b16 %v865
    %v899 = vpack.c.b16 %v884, %v883
    %v900 = vpack.c.b16 %v886, %v885
    %v901 = vpack.c.b16 %v888, %v887
    %v902 = vpack.c.b16 %v890, %v889
    %v903 = vpack.c.b16 %v892, %v891
    %v904 = vpack.c.b16 %v894, %v893
    %v905 = vpack.c.b16 %v896, %v895
    %v906 = vpack.c.b16 %v898, %v897
    %915 = vmatprep.subr.bf16.mxu0 0
    %916 = vmatpush1.bf16.msra.mxu0 %v899
    %917 = vmatprep.subr.bf16.mxu0 0
    %918 = vmatpush1.bf16.msra.mxu0 %v900
    %919 = vmatprep.subr.bf16.mxu0 0
    %920 = vmatpush1.bf16.msra.mxu0 %v901
    %921 = vmatprep.subr.bf16.mxu0 0
    %922 = vmatpush1.bf16.msra.mxu0 %v902
    %923 = vmatprep.subr.bf16.mxu0 0
    %924 = vmatpush1.bf16.msra.mxu0 %v903
    %925 = vmatprep.subr.bf16.mxu0 0
    %926 = vmatpush1.bf16.msra.mxu0 %v904
    %927 = vmatprep.subr.bf16.mxu0 0
    %928 = vmatpush1.bf16.msra.mxu0 %v905
    %929 = vmatprep.subr.bf16.mxu0 0
    %930 = vmatpush1.bf16.msra.mxu0 %v906
    %931 = vmatprep.subr.bf16.mxu0 0
    %932 = vmatpush1.bf16.msra.mxu0 0
    %933 = vmatprep.subr.bf16.mxu0 0
    %934 = vmatpush1.bf16.msra.mxu0 0
    %935 = vmatprep.subr.bf16.mxu0 0
    %936 = vmatpush1.bf16.msra.mxu0 0
    %937 = vmatprep.subr.bf16.mxu0 0
    %938 = vmatpush1.bf16.msra.mxu0 0
    %939 = vmatprep.subr.bf16.mxu0 0
    %940 = vmatpush1.bf16.msra.mxu0 0
    %941 = vmatprep.subr.bf16.mxu0 0
    %942 = vmatpush1.bf16.msra.mxu0 0
    %943 = vmatprep.subr.bf16.mxu0 0
    %944 = vmatpush1.bf16.msra.mxu0 0
    %945 = vmatprep.subr.bf16.mxu0 0
    %946 = vmatpush1.bf16.msra.mxu0 0
    %947 = vmatprep.mubr.bf16.mxu0 0
    %948 = vmatmul.mubr.bf16.gmra.mrb[0].mxu0 0
    %v949 = vpop.f32.mrb[0].mxu0
    %v950 = vadd.f32 0.0, %v949
    %v951 = vpop.f32.mrb[0].mxu0
    %v952 = vpop.f32.mrb[0].mxu0
    %v953 = vpop.f32.mrb[0].mxu0
    %954 = vdwg.mxu0
    %v955 = vadd.f32 %v866, %v950
    %v956 = vtanh.pop %v955
    %v957 = vld [vmem:[%s372] sm:$0xff]
    %v958 = vpack.c.bf16 %v956, %v956
    %959 = vmatprep.subr.bf16.mxu0 0
    %960 = vmatpush1.bf16.msra.mxu0 %v899
    %961 = vmatprep.subr.bf16.mxu0 0
    %962 = vmatpush1.bf16.msra.mxu0 %v900
    %963 = vmatprep.subr.bf16.mxu0 0
    %964 = vmatpush1.bf16.msra.mxu0 %v901
    %965 = vmatprep.subr.bf16.mxu0 0
    %966 = vmatpush1.bf16.msra.mxu0 %v902
    %967 = vmatprep.subr.bf16.mxu0 0
    %968 = vmatpush1.bf16.msra.mxu0 %v903
    %969 = vmatprep.subr.bf16.mxu0 0
    %970 = vmatpush1.bf16.msra.mxu0 %v904
    %971 = vmatprep.subr.bf16.mxu0 0
    %972 = vmatpush1.bf16.msra.mxu0 %v905
    %973 = vmatprep.subr.bf16.mxu0 0
    %974 = vmatpush1.bf16.msra.mxu0 %v906
    %975 = vmatprep.subr.bf16.mxu0 0
    %976 = vmatpush1.bf16.msra.mxu0 0
    %977 = vmatprep.subr.bf16.mxu0 0
    %978 = vmatpush1.bf16.msra.mxu0 0
    %979 = vmatprep.subr.bf16.mxu0 0
    %980 = vmatpush1.bf16.msra.mxu0 0
    %981 = vmatprep.subr.bf16.mxu0 0
    %982 = vmatpush1.bf16.msra.mxu0 0
    %983 = vmatprep.subr.bf16.mxu0 0
    %984 = vmatpush1.bf16.msra.mxu0 0
    %985 = vmatprep.subr.bf16.mxu0 0
    %986 = vmatpush1.bf16.msra.mxu0 0
    %987 = vmatprep.subr.bf16.mxu0 0
    %988 = vmatpush1.bf16.msra.mxu0 0
    %989 = vmatprep.subr.bf16.mxu0 0
    %990 = vmatpush1.bf16.msra.mxu0 0
    %991 = vmatprep.mubr.bf16.mxu0 0
    %992 = vmatmul.mubr.bf16.gmra.mrb[0].mxu0 %v958
    %v993 = vpop.f32.mrb[0].mxu0
    %v994 = vadd.f32 0.0, %v993
    %v995 = vpop.f32.mrb[0].mxu0
    %v996 = vpop.f32.mrb[0].mxu0
    %v997 = vpop.f32.mrb[0].mxu0
    %998 = vdwg.mxu0
    %v999 = vadd.f32 %v957, %v994
    %v1000 = vtanh.pop %v999
    %v1001 = vld [vmem:[%s418] sm:$0xff]
    %v1002 = vpack.c.bf16 %v1000, %v1000
    %1003 = vmatprep.subr.bf16.mxu0 0
    %1004 = vmatpush1.bf16.msra.mxu0 %v899
    %1005 = vmatprep.subr.bf16.mxu0 0
    %1006 = vmatpush1.bf16.msra.mxu0 %v900
    %1007 = vmatprep.subr.bf16.mxu0 0
    %1008 = vmatpush1.bf16.msra.mxu0 %v901
    %1009 = vmatprep.subr.bf16.mxu0 0
    %1010 = vmatpush1.bf16.msra.mxu0 %v902
    %1011 = vmatprep.subr.bf16.mxu0 0
    %1012 = vmatpush1.bf16.msra.mxu0 %v903
    %1013 = vmatprep.subr.bf16.mxu0 0
    %1014 = vmatpush1.bf16.msra.mxu0 %v904
    %1015 = vmatprep.subr.bf16.mxu0 0
    %1016 = vmatpush1.bf16.msra.mxu0 %v905
    %1017 = vmatprep.subr.bf16.mxu0 0
    %1018 = vmatpush1.bf16.msra.mxu0 %v906
    %1019 = vmatprep.subr.bf16.mxu0 0
    %1020 = vmatpush1.bf16.msra.mxu0 0
    %1021 = vmatprep.subr.bf16.mxu0 0
    %1022 = vmatpush1.bf16.msra.mxu0 0
    %1023 = vmatprep.subr.bf16.mxu0 0
    %1024 = vmatpush1.bf16.msra.mxu0 0
    %1025 = vmatprep.subr.bf16.mxu0 0
    %1026 = vmatpush1.bf16.msra.mxu0 0
    %1027 = vmatprep.subr.bf16.mxu0 0
    %1028 = vmatpush1.bf16.msra.mxu0 0
    %1029 = vmatprep.subr.bf16.mxu0 0
    %1030 = vmatpush1.bf16.msra.mxu0 0
    %1031 = vmatprep.subr.bf16.mxu0 0
    %1032 = vmatpush1.bf16.msra.mxu0 0
    %1033 = vmatprep.subr.bf16.mxu0 0
    %1034 = vmatpush1.bf16.msra.mxu0 0
    %1035 = vmatprep.mubr.bf16.mxu0 0
    %1036 = vmatmul.mubr.bf16.gmra.mrb[0].mxu0 %v1002
    %v1037 = vpop.f32.mrb[0].mxu0
    %v1038 = vadd.f32 0.0, %v1037
    %v1039 = vpop.f32.mrb[0].mxu0
    %v1040 = vpop.f32.mrb[0].mxu0
    %v1041 = vpop.f32.mrb[0].mxu0
    %1042 = vdwg.mxu0
    %v1043 = vadd.f32 %v1001, %v1038
    %v1044 = vtanh.pop %v1043
    %v1045 = vld [vmem:[%s464] sm:$0xff]
    %v1046 = vpack.c.bf16 %v1044, %v1044
    %1047 = vmatprep.subr.bf16.mxu0 0
    %1048 = vmatpush1.bf16.msra.mxu0 %v899
    %1049 = vmatprep.subr.bf16.mxu0 0
    %1050 = vmatpush1.bf16.msra.mxu0 %v900
    %1051 = vmatprep.subr.bf16.mxu0 0
    %1052 = vmatpush1.bf16.msra.mxu0 %v901
    %1053 = vmatprep.subr.bf16.mxu0 0
    %1054 = vmatpush1.bf16.msra.mxu0 %v902
    %1055 = vmatprep.subr.bf16.mxu0 0
    %1056 = vmatpush1.bf16.msra.mxu0 %v903
    %1057 = vmatprep.subr.bf16.mxu0 0
    %1058 = vmatpush1.bf16.msra.mxu0 %v904
    %1059 = vmatprep.subr.bf16.mxu0 0
    %1060 = vmatpush1.bf16.msra.mxu0 %v905
    %1061 = vmatprep.subr.bf16.mxu0 0
    %1062 = vmatpush1.bf16.msra.mxu0 %v906
    %1063 = vmatprep.subr.bf16.mxu0 0
    %1064 = vmatpush1.bf16.msra.mxu0 0
    %1065 = vmatprep.subr.bf16.mxu0 0
    %1066 = vmatpush1.bf16.msra.mxu0 0
    %1067 = vmatprep.subr.bf16.mxu0 0
    %1068 = vmatpush1.bf16.msra.mxu0 0
    %1069 = vmatprep.subr.bf16.mxu0 0
    %1070 = vmatpush1.bf16.msra.mxu0 0
    %1071 = vmatprep.subr.bf16.mxu0 0
    %1072 = vmatpush1.bf16.msra.mxu0 0
    %1073 = vmatprep.subr.bf16.mxu0 0
    %1074 = vmatpush1.bf16.msra.mxu0 0
    %1075 = vmatprep.subr.bf16.mxu0 0
    %1076 = vmatpush1.bf16.msra.mxu0 0
    %1077 = vmatprep.subr.bf16.mxu0 0
    %1078 = vmatpush1.bf16.msra.mxu0 0
    %1079 = vmatprep.mubr.bf16.mxu0 0
    %1080 = vmatmul.mubr.bf16.gmra.mrb[0].mxu0 %v1046
    %v1081 = vpop.f32.mrb[0].mxu0
    %v1082 = vadd.f32 0.0, %v1081
    %v1083 = vpop.f32.mrb[0].mxu0
    %v1084 = vpop.f32.mrb[0].mxu0
    %v1085 = vpop.f32.mrb[0].mxu0
    %1086 = vdwg.mxu0
    %v1087 = vadd.f32 %v1045, %v1082
    %v1088 = vtanh.pop %v1087
    %v1089 = vld [vmem:[%s510] sm:$0xff]
    %v1090 = vpack.c.bf16 %v1088, %v1088
    %1091 = vmatprep.subr.bf16.mxu0 0
    %1092 = vmatpush1.bf16.msra.mxu0 %v899
    %1093 = vmatprep.subr.bf16.mxu0 0
    %1094 = vmatpush1.bf16.msra.mxu0 %v900
    %1095 = vmatprep.subr.bf16.mxu0 0
    %1096 = vmatpush1.bf16.msra.mxu0 %v901
    %1097 = vmatprep.subr.bf16.mxu0 0
    %1098 = vmatpush1.bf16.msra.mxu0 %v902
    %1099 = vmatprep.subr.bf16.mxu0 0
    %1100 = vmatpush1.bf16.msra.mxu0 %v903
    %1101 = vmatprep.subr.bf16.mxu0 0
    %1102 = vmatpush1.bf16.msra.mxu0 %v904
    %1103 = vmatprep.subr.bf16.mxu0 0
    %1104 = vmatpush1.bf16.msra.mxu0 %v905
    %1105 = vmatprep.subr.bf16.mxu0 0
    %1106 = vmatpush1.bf16.msra.mxu0 %v906
    %1107 = vmatprep.subr.bf16.mxu0 0
    %1108 = vmatpush1.bf16.msra.mxu0 0
    %1109 = vmatprep.subr.bf16.mxu0 0
    %1110 = vmatpush1.bf16.msra.mxu0 0
    %1111 = vmatprep.subr.bf16.mxu0 0
    %1112 = vmatpush1.bf16.msra.mxu0 0
    %1113 = vmatprep.subr.bf16.mxu0 0
    %1114 = vmatpush1.bf16.msra.mxu0 0
    %1115 = vmatprep.subr.bf16.mxu0 0
    %1116 = vmatpush1.bf16.msra.mxu0 0
    %1117 = vmatprep.subr.bf16.mxu0 0
    %1118 = vmatpush1.bf16.msra.mxu0 0
    %1119 = vmatprep.subr.bf16.mxu0 0
    %1120 = vmatpush1.bf16.msra.mxu0 0
    %1121 = vmatprep.subr.bf16.mxu0 0
    %1122 = vmatpush1.bf16.msra.mxu0 0
    %1123 = vmatprep.mubr.bf16.mxu0 0
    %1124 = vmatmul.mubr.bf16.gmra.mrb[0].mxu0 %v1090
    %v1125 = vpop.f32.mrb[0].mxu0
    %v1126 = vadd.f32 0.0, %v1125
    %v1127 = vpop.f32.mrb[0].mxu0
    %v1128 = vpop.f32.mrb[0].mxu0
    %v1129 = vpop.f32.mrb[0].mxu0
    %1130 = vdwg.mxu0
    %v1131 = vadd.f32 %v1089, %v1126
    %v1132 = vtanh.pop %v1131
    %v1133 = vld [vmem:[%s556] sm:$0xff]
    %v1134 = vpack.c.bf16 %v1132, %v1132
    %1135 = vmatprep.subr.bf16.mxu0 0
    %1136 = vmatpush1.bf16.msra.mxu0 %v899
    %1137 = vmatprep.subr.bf16.mxu0 0
    %1138 = vmatpush1.bf16.msra.mxu0 %v900
    %1139 = vmatprep.subr.bf16.mxu0 0
    %1140 = vmatpush1.bf16.msra.mxu0 %v901
    %1141 = vmatprep.subr.bf16.mxu0 0
    %1142 = vmatpush1.bf16.msra.mxu0 %v902
    %1143 = vmatprep.subr.bf16.mxu0 0
    %1144 = vmatpush1.bf16.msra.mxu0 %v903
    %1145 = vmatprep.subr.bf16.mxu0 0
    %1146 = vmatpush1.bf16.msra.mxu0 %v904
    %1147 = vmatprep.subr.bf16.mxu0 0
    %1148 = vmatpush1.bf16.msra.mxu0 %v905
    %1149 = vmatprep.subr.bf16.mxu0 0
    %1150 = vmatpush1.bf16.msra.mxu0 %v906
    %1151 = vmatprep.subr.bf16.mxu0 0
    %1152 = vmatpush1.bf16.msra.mxu0 0
    %1153 = vmatprep.subr.bf16.mxu0 0
    %1154 = vmatpush1.bf16.msra.mxu0 0
    %1155 = vmatprep.subr.bf16.mxu0 0
    %1156 = vmatpush1.bf16.msra.mxu0 0
    %1157 = vmatprep.subr.bf16.mxu0 0
    %1158 = vmatpush1.bf16.msra.mxu0 0
    %1159 = vmatprep.subr.bf16.mxu0 0
    %1160 = vmatpush1.bf16.msra.mxu0 0
    %1161 = vmatprep.subr.bf16.mxu0 0
    %1162 = vmatpush1.bf16.msra.mxu0 0
    %1163 = vmatprep.subr.bf16.mxu0 0
    %1164 = vmatpush1.bf16.msra.mxu0 0
    %1165 = vmatprep.subr.bf16.mxu0 0
    %1166 = vmatpush1.bf16.msra.mxu0 0
    %1167 = vmatprep.mubr.bf16.mxu0 0
    %1168 = vmatmul.mubr.bf16.gmra.mrb[0].mxu0 %v1134
    %v1169 = vpop.f32.mrb[0].mxu0
    %v1170 = vadd.f32 0.0, %v1169
    %v1171 = vpop.f32.mrb[0].mxu0
    %v1172 = vpop.f32.mrb[0].mxu0
    %v1173 = vpop.f32.mrb[0].mxu0
    %1174 = vdwg.mxu0
    %v1175 = vadd.f32 %v1133, %v1170
    %v1176 = vtanh.pop %v1175
    %v1177 = vld [vmem:[%s602] sm:$0xff]
    %v1178 = vpack.c.bf16 %v1176, %v1176
    %1179 = vmatprep.subr.bf16.mxu0 0
    %1180 = vmatpush1.bf16.msra.mxu0 %v899
    %1181 = vmatprep.subr.bf16.mxu0 0
    %1182 = vmatpush1.bf16.msra.mxu0 %v900
    %1183 = vmatprep.subr.bf16.mxu0 0
    %1184 = vmatpush1.bf16.msra.mxu0 %v901
    %1185 = vmatprep.subr.bf16.mxu0 0
    %1186 = vmatpush1.bf16.msra.mxu0 %v902
    %1187 = vmatprep.subr.bf16.mxu0 0
    %1188 = vmatpush1.bf16.msra.mxu0 %v903
    %1189 = vmatprep.subr.bf16.mxu0 0
    %1190 = vmatpush1.bf16.msra.mxu0 %v904
    %1191 = vmatprep.subr.bf16.mxu0 0
    %1192 = vmatpush1.bf16.msra.mxu0 %v905
    %1193 = vmatprep.subr.bf16.mxu0 0
    %1194 = vmatpush1.bf16.msra.mxu0 %v906
    %1195 = vmatprep.subr.bf16.mxu0 0
    %1196 = vmatpush1.bf16.msra.mxu0 0
    %1197 = vmatprep.subr.bf16.mxu0 0
    %1198 = vmatpush1.bf16.msra.mxu0 0
    %1199 = vmatprep.subr.bf16.mxu0 0
    %1200 = vmatpush1.bf16.msra.mxu0 0
    %1201 = vmatprep.subr.bf16.mxu0 0
    %1202 = vmatpush1.bf16.msra.mxu0 0
    %1203 = vmatprep.subr.bf16.mxu0 0
    %1204 = vmatpush1.bf16.msra.mxu0 0
    %1205 = vmatprep.subr.bf16.mxu0 0
    %1206 = vmatpush1.bf16.msra.mxu0 0
    %1207 = vmatprep.subr.bf16.mxu0 0
    %1208 = vmatpush1.bf16.msra.mxu0 0
    %1209 = vmatprep.subr.bf16.mxu0 0
    %1210 = vmatpush1.bf16.msra.mxu0 0
    %1211 = vmatprep.mubr.bf16.mxu0 0
    %1212 = vmatmul.mubr.bf16.gmra.mrb[0].mxu0 %v1178
    %v1213 = vpop.f32.mrb[0].mxu0
    %v1214 = vadd.f32 0.0, %v1213
    %v1215 = vpop.f32.mrb[0].mxu0
    %v1216 = vpop.f32.mrb[0].mxu0
    %v1217 = vpop.f32.mrb[0].mxu0
    %1218 = vdwg.mxu0
    %v1219 = vadd.f32 %v1177, %v1214
    %v1220 = vtanh.pop %v1219
    %v1221 = vld [vmem:[%s648] sm:$0xff]
    %v1222 = vpack.c.bf16 %v1220, %v1220
    %1223 = vmatprep.subr.bf16.mxu0 0
    %1224 = vmatpush1.bf16.msra.mxu0 %v899
    %1225 = vmatprep.subr.bf16.mxu0 0
    %1226 = vmatpush1.bf16.msra.mxu0 %v900
    %1227 = vmatprep.subr.bf16.mxu0 0
    %1228 = vmatpush1.bf16.msra.mxu0 %v901
    %1229 = vmatprep.subr.bf16.mxu0 0
    %1230 = vmatpush1.bf16.msra.mxu0 %v902
    %1231 = vmatprep.subr.bf16.mxu0 0
    %1232 = vmatpush1.bf16.msra.mxu0 %v903
    %1233 = vmatprep.subr.bf16.mxu0 0
    %1234 = vmatpush1.bf16.msra.mxu0 %v904
    %1235 = vmatprep.subr.bf16.mxu0 0
    %1236 = vmatpush1.bf16.msra.mxu0 %v905
    %1237 = vmatprep.subr.bf16.mxu0 0
    %1238 = vmatpush1.bf16.msra.mxu0 %v906
    %1239 = vmatprep.subr.bf16.mxu0 0
    %1240 = vmatpush1.bf16.msra.mxu0 0
    %1241 = vmatprep.subr.bf16.mxu0 0
    %1242 = vmatpush1.bf16.msra.mxu0 0
    %1243 = vmatprep.subr.bf16.mxu0 0
    %1244 = vmatpush1.bf16.msra.mxu0 0
    %1245 = vmatprep.subr.bf16.mxu0 0
    %1246 = vmatpush1.bf16.msra.mxu0 0
    %1247 = vmatprep.subr.bf16.mxu0 0
    %1248 = vmatpush1.bf16.msra.mxu0 0
    %1249 = vmatprep.subr.bf16.mxu0 0
    %1250 = vmatpush1.bf16.msra.mxu0 0
    %1251 = vmatprep.subr.bf16.mxu0 0
    %1252 = vmatpush1.bf16.msra.mxu0 0
    %1253 = vmatprep.subr.bf16.mxu0 0
    %1254 = vmatpush1.bf16.msra.mxu0 0
    %1255 = vmatprep.mubr.bf16.mxu0 0
    %1256 = vmatmul.mubr.bf16.gmra.mrb[0].mxu0 %v1222
    %v1257 = vpop.f32.mrb[0].mxu0
    %v1258 = vadd.f32 0.0, %v1257
    %v1259 = vpop.f32.mrb[0].mxu0
    %v1260 = vpop.f32.mrb[0].mxu0
    %v1261 = vpop.f32.mrb[0].mxu0
    %1262 = vdwg.mxu0
    %v1263 = vadd.f32 %v1221, %v1258
    %v1264 = vtanh.pop %v1263
    %v1265 = vpack.c.bf16 %v1264, %v1264
    %v1266 = vld [vmem:[#allocation8] sm:$0xf]
    %v1267 = vld [vmem:[#allocation8 + $0x4] sm:$0xf]
    %v1268 = vld [vmem:[#allocation8 + $0x8] sm:$0xf]
    %v1269 = vld [vmem:[#allocation8 + $0xc] sm:$0xf]
    %v1270 = vld [vmem:[#allocation8 + $0x10] sm:$0xf]
    %v1271 = vld [vmem:[#allocation8 + $0x14] sm:$0xf]
    %v1272 = vld [vmem:[#allocation8 + $0x18] sm:$0xf]
    %v1273 = vld [vmem:[#allocation8 + $0x1c] sm:$0xf]
    %v1274 = vld [vmem:[#allocation8 + $0x20] sm:$0xf]
    %v1275 = vld [vmem:[#allocation8 + $0x24] sm:$0xf]
    %v1276 = vld [vmem:[#allocation8 + $0x28] sm:$0xf]
    %v1277 = vld [vmem:[#allocation8 + $0x2c] sm:$0xf]
    %v1278 = vld [vmem:[#allocation8 + $0x30] sm:$0xf]
    %v1279 = vld [vmem:[#allocation8 + $0x34] sm:$0xf]
    %v1280 = vld [vmem:[#allocation8 + $0x38] sm:$0xf]
    %v1281 = vld [vmem:[#allocation8 + $0x3c] sm:$0xf]
    %v1282 = vld [vmem:[%s8] sm:$0x1]
    %v1284 = vlaneseq
    %v1285 = vshrl.u32 %v1284, 7
    %v1286 = vsub.s32 0, %v1285
    %v1287 = vrot.slane %v1282, %v1286
    %v1305 = vunpack.c.l.b16 %v1266
    %v1306 = vunpack.c.l.b16 %v1267
    %v1307 = vunpack.c.l.b16 %v1268
    %v1308 = vunpack.c.l.b16 %v1269
    %v1309 = vunpack.c.l.b16 %v1270
    %v1310 = vunpack.c.l.b16 %v1271
    %v1311 = vunpack.c.l.b16 %v1272
    %v1312 = vunpack.c.l.b16 %v1273
    %v1313 = vunpack.c.l.b16 %v1274
    %v1314 = vunpack.c.l.b16 %v1275
    %v1315 = vunpack.c.l.b16 %v1276
    %v1316 = vunpack.c.l.b16 %v1277
    %v1317 = vunpack.c.l.b16 %v1278
    %v1318 = vunpack.c.l.b16 %v1279
    %v1319 = vunpack.c.l.b16 %v1280
    %v1320 = vunpack.c.l.b16 %v1281
    %v1321 = vpack.c.b16 %v1306, %v1305
    %v1322 = vpack.c.b16 %v1308, %v1307
    %v1323 = vpack.c.b16 %v1310, %v1309
    %v1324 = vpack.c.b16 %v1312, %v1311
    %v1325 = vpack.c.b16 %v1314, %v1313
    %v1326 = vpack.c.b16 %v1316, %v1315
    %v1327 = vpack.c.b16 %v1318, %v1317
    %v1328 = vpack.c.b16 %v1320, %v1319
    %1337 = vmatprep.subr.bf16.mxu0 0
    %1338 = vmatpush1.bf16.msra.mxu0 %v1321
    %1339 = vmatprep.subr.bf16.mxu0 0
    %1340 = vmatpush1.bf16.msra.mxu0 %v1322
    %1341 = vmatprep.subr.bf16.mxu0 0
    %1342 = vmatpush1.bf16.msra.mxu0 %v1323
    %1343 = vmatprep.subr.bf16.mxu0 0
    %1344 = vmatpush1.bf16.msra.mxu0 %v1324
    %1345 = vmatprep.subr.bf16.mxu0 0
    %1346 = vmatpush1.bf16.msra.mxu0 %v1325
    %1347 = vmatprep.subr.bf16.mxu0 0
    %1348 = vmatpush1.bf16.msra.mxu0 %v1326
    %1349 = vmatprep.subr.bf16.mxu0 0
    %1350 = vmatpush1.bf16.msra.mxu0 %v1327
    %1351 = vmatprep.subr.bf16.mxu0 0
    %1352 = vmatpush1.bf16.msra.mxu0 %v1328
    %1353 = vmatprep.subr.bf16.mxu0 0
    %1354 = vmatpush1.bf16.msra.mxu0 0
    %1355 = vmatprep.subr.bf16.mxu0 0
    %1356 = vmatpush1.bf16.msra.mxu0 0
    %1357 = vmatprep.subr.bf16.mxu0 0
    %1358 = vmatpush1.bf16.msra.mxu0 0
    %1359 = vmatprep.subr.bf16.mxu0 0
    %1360 = vmatpush1.bf16.msra.mxu0 0
    %1361 = vmatprep.subr.bf16.mxu0 0
    %1362 = vmatpush1.bf16.msra.mxu0 0
    %1363 = vmatprep.subr.bf16.mxu0 0
    %1364 = vmatpush1.bf16.msra.mxu0 0
    %1365 = vmatprep.subr.bf16.mxu0 0
    %1366 = vmatpush1.bf16.msra.mxu0 0
    %1367 = vmatprep.subr.bf16.mxu0 0
    %1368 = vmatpush1.bf16.msra.mxu0 0
    %1369 = vmatprep.mubr.bf16.mxu0 0
    %1370 = vmatmul.mubr.bf16.gmra.mrb[0].mxu0 %v1265
    %v1371 = vpop.f32.mrb[0].mxu0
    %v1372 = vadd.f32 %v1287, %v1371
    %v1373 = vpop.f32.mrb[0].mxu0
    %v1374 = vpop.f32.mrb[0].mxu0
    %v1375 = vpop.f32.mrb[0].mxu0
    %1376 = vdwg.mxu0
    %1377 = vst [vmem:[%s9] sm:$0xff] %v1372
    // Predicated region
    $region54: #{rnn_forward.1} parent=1 // pred_check
      _
    $region55: #{rnn_forward.1} parent=1 // pred_check_branch
      %1379 = sbr.rel (0) target = $region57
    $region56: #{rnn_forward.1} parent=1 // pred_region
      _
    $region57: #{rnn_forward.1} parent=1 // pred_fallthru
      _
    // Predicated region
    $region58: #{rnn_forward.1} parent=1 // pred_check
      _
    $region59: #{rnn_forward.1} parent=1 // pred_check_branch
      %1381 = sbr.rel (0) target = $region61
    $region60: #{rnn_forward.1} parent=1 // pred_region
      _
    $region61: #{rnn_forward.1} parent=1 // pred_fallthru
      _
    %1382 = vsyncpa [#allocation4], 1
    %1383 = vsyncpa [#allocation6], 1
    %1384 = vsyncpa [#allocation9], 1

// kernel: rnn_forward.1
$region0: #{rnn_forward.1}
  #allocation0 [shape = 'u32[]', space=smem, size = 0x4, offset = 0x4, fixed_abs, tag = 'smem constant byte address 0x4 - core index']
  #allocation1 [shape = 'u32[144,128]{1,0:T(1,128)}', space=vmem, size = 0x12000, scoped, tag = 'internal scratch']
  #allocation2 [shape = 'f32[8,8,128]{2,1,0:T(8,128)}', space=vmem, size = 0x8000, scoped, tag = 'scratch operand']
  %s0 = inlined_call_operand.vmem [shape: bf16[8,8,128], index: 0, kind: input, shape index: {}]
  %s1 = inlined_call_operand.vmem [shape: bf16[128,128], index: 1, kind: input, shape index: {}]
  %s2 = inlined_call_operand.hbm [shape: bf16[128,128], index: 2, kind: input, shape index: {}]
  %s3 = inlined_call_operand.vmem [shape: f32[1,128], index: 3, kind: input, shape index: {}]
  %s4 = inlined_call_operand.hbm [shape: bf16[128,128], index: 4, kind: input, shape index: {}]
  %s5 = inlined_call_operand.hbm [shape: bf16[128,128], index: 5, kind: input, shape index: {}]
  %s6 = inlined_call_operand.vmem [shape: f32[1,128], index: 6, kind: input, shape index: {}]
  %s7 = inlined_call_operand.hbm [shape: bf16[128,128], index: 7, kind: input, shape index: {}]
  %s8 = inlined_call_operand.vmem [shape: f32[1,128], index: 8, kind: input, shape index: {}]
  %s9 = inlined_call_operand.vmem [shape: f32[8,128], index: 9, kind: output, shape index: {}]
  %s10 = sld [smem:[#allocation0]]
  $region62: #{rnn_forward.1} parent=0
    _
  %s12 = ssub.s32 1, %s10
  %s13 = scalar_select 0, %s12, %s10
  $region1: #{rnn_forward.1} parent=0
    #allocation3 [shape = 'u8[32768]{0}', space=vmem, size = 0x8000, scoped, tag = 'input window, operand 2, single buffered']
    #allocation4 [shape = 's32[1]{0}', space=sflag, size = 0x4, scoped, tag = 'scoped memory for rnn_forward.1']
    #allocation5 [shape = 'u8[32768]{0}', space=vmem, size = 0x8000, scoped, tag = 'input window, operand 4, single buffered']
    #allocation6 [shape = 's32[1]{0}', space=sflag, size = 0x4, scoped, tag = 'scoped memory for rnn_forward.1']
    #allocation7 [shape = 'u8[32768]{0}', space=vmem, size = 0x8000, scoped, tag = 'input window, operand 5, single buffered']
    #allocation8 [shape = 'u8[32768]{0}', space=vmem, size = 0x8000, scoped, tag = 'input window, operand 7, single buffered']
    #allocation9 [shape = 's32[1]{0}', space=sflag, size = 0x4, scoped, tag = 'scoped memory for rnn_forward.1']
    %14 = vsyncpa [#allocation4], 0
    %15 = vsyncpa [#allocation6], 0
    %16 = vsyncpa [#allocation9], 0
    // Predicated region
    $region2: #{rnn_forward.1} parent=1 // pred_check
      _
    $region3: #{rnn_forward.1} parent=1 // pred_check_branch
      %18 = sbr.rel (0) target = $region5
    $region4: #{rnn_forward.1} parent=1 // pred_region
      _
    $region5: #{rnn_forward.1} parent=1 // pred_fallthru
      _
    // Predicated region
    $region6: #{rnn_forward.1} parent=1 // pred_check
      _
    $region7: #{rnn_forward.1} parent=1 // pred_check_branch
      %20 = sbr.rel (0) target = $region9
    $region8: #{rnn_forward.1} parent=1 // pred_region
      _
    $region9: #{rnn_forward.1} parent=1 // pred_fallthru
      _
    // Predicated region
    $region10: #{rnn_forward.1} parent=1 // pred_check
      _
    $region11: #{rnn_forward.1} parent=1 // pred_check_branch
      %22 = sbr.rel (0) target = $region13
    $region12: #{rnn_forward.1} parent=1 // pred_region
      %s24 = ssub.s32 1024, 1024
      %25 = vsyncadd [#allocation4], %s24
      %s26 = sshll.u32 [#allocation3], 4
      %s27 = int_to_ptr.vmem [resolvable:$true] %s26
      %32 = dma.hbm_to_vmem [thread:$0]  %s2, 1024, %s27, [#allocation4], 64, 64, 4
    $region13: #{rnn_forward.1} parent=1 // pred_fallthru
      _
    // Predicated region
    $region14: #{rnn_forward.1} parent=1 // pred_check
      _
    $region15: #{rnn_forward.1} parent=1 // pred_check_branch
      %34 = sbr.rel (0) target = $region17
    $region16: #{rnn_forward.1} parent=1 // pred_region
      _
    $region17: #{rnn_forward.1} parent=1 // pred_fallthru
      _
    // Predicated region
    $region18: #{rnn_forward.1} parent=1 // pred_check
      _
    $region19: #{rnn_forward.1} parent=1 // pred_check_branch
      %36 = sbr.rel (0) target = $region21
    $region20: #{rnn_forward.1} parent=1 // pred_region
      %s38 = ssub.s32 1024, 1024
      %39 = vsyncadd [#allocation6], %s38
      %s40 = sshll.u32 [#allocation5], 4
      %s41 = int_to_ptr.vmem [resolvable:$true] %s40
      %46 = dma.hbm_to_vmem [thread:$0]  %s4, 1024, %s41, [#allocation6], 64, 64, 4
    $region21: #{rnn_forward.1} parent=1 // pred_fallthru
      _
    // Predicated region
    $region22: #{rnn_forward.1} parent=1 // pred_check
      _
    $region23: #{rnn_forward.1} parent=1 // pred_check_branch
      %48 = sbr.rel (0) target = $region25
    $region24: #{rnn_forward.1} parent=1 // pred_region
      %s50 = ssub.s32 1024, 1024
      %51 = vsyncadd [#allocation6], %s50
      %s52 = sshll.u32 [#allocation7], 4
      %s53 = int_to_ptr.vmem [resolvable:$true] %s52
      %58 = dma.hbm_to_vmem [thread:$0]  %s5, 1024, %s53, [#allocation6], 64, 64, 4
    $region25: #{rnn_forward.1} parent=1 // pred_fallthru
      _
    // Predicated region
    $region26: #{rnn_forward.1} parent=1 // pred_check
      _
    $region27: #{rnn_forward.1} parent=1 // pred_check_branch
      %60 = sbr.rel (0) target = $region29
    $region28: #{rnn_forward.1} parent=1 // pred_region
      _
    $region29: #{rnn_forward.1} parent=1 // pred_fallthru
      _
    // Predicated region
    $region30: #{rnn_forward.1} parent=1 // pred_check
      _
    $region31: #{rnn_forward.1} parent=1 // pred_check_branch
      %62 = sbr.rel (0) target = $region33
    $region32: #{rnn_forward.1} parent=1 // pred_region
      %s64 = ssub.s32 1024, 1024
      %65 = vsyncadd [#allocation9], %s64
      %s66 = sshll.u32 [#allocation8], 4
      %s67 = int_to_ptr.vmem [resolvable:$true] %s66
      %72 = dma.hbm_to_vmem [thread:$0]  %s7, 1024, %s67, [#allocation9], 64, 64, 4
    $region33: #{rnn_forward.1} parent=1 // pred_fallthru
      _
    // Predicated region
    $region34: #{rnn_forward.1} parent=1 // pred_check
      _
    $region35: #{rnn_forward.1} parent=1 // pred_check_branch
      %74 = sbr.rel (0) target = $region37
    $region36: #{rnn_forward.1} parent=1 // pred_region
      _
    $region37: #{rnn_forward.1} parent=1 // pred_fallthru
      _
    // Predicated region
    $region38: #{rnn_forward.1} parent=1 // pred_check
      _
    $region39: #{rnn_forward.1} parent=1 // pred_check_branch
      %76 = sbr.rel (0) target = $region41
    $region40: #{rnn_forward.1} parent=1 // pred_region
      %77 = dma.done [#allocation4], 1024
    $region41: #{rnn_forward.1} parent=1 // pred_fallthru
      _
    // Predicated region
    $region42: #{rnn_forward.1} parent=1 // pred_check
      _
    $region43: #{rnn_forward.1} parent=1 // pred_check_branch
      %79 = sbr.rel (0) target = $region45
    $region44: #{rnn_forward.1} parent=1 // pred_region
      %80 = dma.done [#allocation6], 1024
    $region45: #{rnn_forward.1} parent=1 // pred_fallthru
      _
    // Predicated region
    $region46: #{rnn_forward.1} parent=1 // pred_check
      _
    $region47: #{rnn_forward.1} parent=1 // pred_check_branch
      %82 = sbr.rel (0) target = $region49
    $region48: #{rnn_forward.1} parent=1 // pred_region
      %83 = dma.done [#allocation6], 1024
    $region49: #{rnn_forward.1} parent=1 // pred_fallthru
      _
    // Predicated region
    $region50: #{rnn_forward.1} parent=1 // pred_check
      _
    $region51: #{rnn_forward.1} parent=1 // pred_check_branch
      %85 = sbr.rel (0) target = $region53
    $region52: #{rnn_forward.1} parent=1 // pred_region
      %86 = dma.done [#allocation9], 1024
    $region53: #{rnn_forward.1} parent=1 // pred_fallthru
      _
    %v88 = vld [vmem:[%s1] sm:$0xf]
    %v89 = vld [vmem:[%s1 + $0x4] sm:$0xf]
    %v90 = vld [vmem:[%s1 + $0x8] sm:$0xf]
    %v91 = vld [vmem:[%s1 + $0xc] sm:$0xf]
    %v92 = vld [vmem:[%s1 + $0x10] sm:$0xf]
    %v93 = vld [vmem:[%s1 + $0x14] sm:$0xf]
    %v94 = vld [vmem:[%s1 + $0x18] sm:$0xf]
    %v95 = vld [vmem:[%s1 + $0x1c] sm:$0xf]
    %v96 = vld [vmem:[%s1 + $0x20] sm:$0xf]
    %v97 = vld [vmem:[%s1 + $0x24] sm:$0xf]
    %v98 = vld [vmem:[%s1 + $0x28] sm:$0xf]
    %v99 = vld [vmem:[%s1 + $0x2c] sm:$0xf]
    %v100 = vld [vmem:[%s1 + $0x30] sm:$0xf]
    %v101 = vld [vmem:[%s1 + $0x34] sm:$0xf]
    %v102 = vld [vmem:[%s1 + $0x38] sm:$0xf]
    %v103 = vld [vmem:[%s1 + $0x3c] sm:$0xf]
    %v104 = vld [vmem:[%s3] sm:$0x1]
    %v105 = vld [vmem:[%s0] sm:$0xf]
    %v106 = vld [vmem:[%s0 + $0x4] sm:$0xf]
    %v107 = vld [vmem:[%s0 + $0x8] sm:$0xf]
    %v108 = vld [vmem:[%s0 + $0xc] sm:$0xf]
    %v109 = vld [vmem:[%s0 + $0x10] sm:$0xf]
    %v110 = vld [vmem:[%s0 + $0x14] sm:$0xf]
    %v111 = vld [vmem:[%s0 + $0x18] sm:$0xf]
    %v112 = vld [vmem:[%s0 + $0x1c] sm:$0xf]
    %v114 = vlaneseq
    %v115 = vshrl.u32 %v114, 7
    %v116 = vsub.s32 0, %v115
    %v117 = vrot.slane %v104, %v116
    %v127 = vunpack.c.l.b16 %v105
    %v128 = vunpack.c.l.b16 %v106
    %v129 = vunpack.c.l.b16 %v107
    %v130 = vunpack.c.l.b16 %v108
    %v131 = vunpack.c.l.b16 %v109
    %v132 = vunpack.c.l.b16 %v110
    %v133 = vunpack.c.l.b16 %v111
    %v134 = vunpack.c.l.b16 %v112
    %v135 = vpack.c.b16 %v128, %v127
    %v136 = vpack.c.b16 %v130, %v129
    %v137 = vpack.c.b16 %v132, %v131
    %v138 = vpack.c.b16 %v134, %v133
    %v159 = vunpack.c.l.b16 %v88
    %v160 = vunpack.c.l.b16 %v89
    %v161 = vunpack.c.l.b16 %v90
    %v162 = vunpack.c.l.b16 %v91
    %v163 = vunpack.c.l.b16 %v92
    %v164 = vunpack.c.l.b16 %v93
    %v165 = vunpack.c.l.b16 %v94
    %v166 = vunpack.c.l.b16 %v95
    %v167 = vunpack.c.l.b16 %v96
    %v168 = vunpack.c.l.b16 %v97
    %v169 = vunpack.c.l.b16 %v98
    %v170 = vunpack.c.l.b16 %v99
    %v171 = vunpack.c.l.b16 %v100
    %v172 = vunpack.c.l.b16 %v101
    %v173 = vunpack.c.l.b16 %v102
    %v174 = vunpack.c.l.b16 %v103
    %v175 = vpack.c.b16 %v160, %v159
    %v176 = vpack.c.b16 %v162, %v161
    %v177 = vpack.c.b16 %v164, %v163
    %v178 = vpack.c.b16 %v166, %v165
    %v179 = vpack.c.b16 %v168, %v167
    %v180 = vpack.c.b16 %v170, %v169
    %v181 = vpack.c.b16 %v172, %v171
    %v182 = vpack.c.b16 %v174, %v173
    %191 = vmatprep.subr.bf16.mxu0 0
    %192 = vmatpush1.bf16.msra.mxu0 %v175
    %193 = vmatprep.subr.bf16.mxu0 0
    %194 = vmatpush1.bf16.msra.mxu0 %v176
    %195 = vmatprep.subr.bf16.mxu0 0
    %196 = vmatpush1.bf16.msra.mxu0 %v177
    %197 = vmatprep.subr.bf16.mxu0 0
    %198 = vmatpush1.bf16.msra.mxu0 %v178
    %199 = vmatprep.subr.bf16.mxu0 0
    %200 = vmatpush1.bf16.msra.mxu0 %v179
    %201 = vmatprep.subr.bf16.mxu0 0
    %202 = vmatpush1.bf16.msra.mxu0 %v180
    %203 = vmatprep.subr.bf16.mxu0 0
    %204 = vmatpush1.bf16.msra.mxu0 %v181
    %205 = vmatprep.subr.bf16.mxu0 0
    %206 = vmatpush1.bf16.msra.mxu0 %v182
    %207 = vmatprep.subr.bf16.mxu0 0
    %208 = vmatpush1.bf16.msra.mxu0 0
    %209 = vmatprep.subr.bf16.mxu0 0
    %210 = vmatpush1.bf16.msra.mxu0 0
    %211 = vmatprep.subr.bf16.mxu0 0
    %212 = vmatpush1.bf16.msra.mxu0 0
    %213 = vmatprep.subr.bf16.mxu0 0
    %214 = vmatpush1.bf16.msra.mxu0 0
    %215 = vmatprep.subr.bf16.mxu0 0
    %216 = vmatpush1.bf16.msra.mxu0 0
    %217 = vmatprep.subr.bf16.mxu0 0
    %218 = vmatpush1.bf16.msra.mxu0 0
    %219 = vmatprep.subr.bf16.mxu0 0
    %220 = vmatpush1.bf16.msra.mxu0 0
    %221 = vmatprep.subr.bf16.mxu0 0
    %222 = vmatpush1.bf16.msra.mxu0 0
    %223 = vmatprep.mubr.bf16.mxu0 0
    %224 = vmatmul.mubr.bf16.gmra.mrb[0].mxu0 %v135
    %v225 = vpop.f32.mrb[0].mxu0
    %v226 = vadd.f32 %v117, %v225
    %v227 = vpop.f32.mrb[0].mxu0
    %v228 = vpop.f32.mrb[0].mxu0
    %v229 = vadd.f32 %v117, %v228
    %v230 = vpop.f32.mrb[0].mxu0
    %231 = vmatprep.mubr.bf16.mxu0 0
    %232 = vmatmul.mubr.bf16.gmra.mrb[0].mxu0 %v136
    %v233 = vpop.f32.mrb[0].mxu0
    %v234 = vadd.f32 %v117, %v233
    %v235 = vpop.f32.mrb[0].mxu0
    %v236 = vpop.f32.mrb[0].mxu0
    %v237 = vadd.f32 %v117, %v236
    %v238 = vpop.f32.mrb[0].mxu0
    %239 = vmatprep.mubr.bf16.mxu0 0
    %240 = vmatmul.mubr.bf16.gmra.mrb[0].mxu0 %v137
    %v241 = vpop.f32.mrb[0].mxu0
    %v242 = vadd.f32 %v117, %v241
    %v243 = vpop.f32.mrb[0].mxu0
    %v244 = vpop.f32.mrb[0].mxu0
    %v245 = vadd.f32 %v117, %v244
    %v246 = vpop.f32.mrb[0].mxu0
    %247 = vmatprep.mubr.bf16.mxu0 0
    %248 = vmatmul.mubr.bf16.gmra.mrb[0].mxu0 %v138
    %v249 = vpop.f32.mrb[0].mxu0
    %v250 = vadd.f32 %v117, %v249
    %v251 = vpop.f32.mrb[0].mxu0
    %v252 = vpop.f32.mrb[0].mxu0
    %v253 = vadd.f32 %v117, %v252
    %v254 = vpop.f32.mrb[0].mxu0
    %255 = vdwg.mxu0
    %256 = vst [vmem:[#allocation2] sm:$0xff] %v226
    %257 = vst [vmem:[#allocation2 + $0x8] sm:$0xff] %v229
    %258 = vst [vmem:[#allocation2 + $0x10] sm:$0xff] %v234
    %259 = vst [vmem:[#allocation2 + $0x18] sm:$0xff] %v237
    %260 = vst [vmem:[#allocation2 + $0x20] sm:$0xff] %v242
    %261 = vst [vmem:[#allocation2 + $0x28] sm:$0xff] %v245
    %262 = vst [vmem:[#allocation2 + $0x30] sm:$0xff] %v250
    %263 = vst [vmem:[#allocation2 + $0x38] sm:$0xff] %v253
    %v264 = vld [vmem:[#allocation3] sm:$0xf]
    %v265 = vld [vmem:[#allocation3 + $0x4] sm:$0xf]
    %v266 = vld [vmem:[#allocation3 + $0x8] sm:$0xf]
    %v267 = vld [vmem:[#allocation3 + $0xc] sm:$0xf]
    %v268 = vld [vmem:[#allocation3 + $0x10] sm:$0xf]
    %v269 = vld [vmem:[#allocation3 + $0x14] sm:$0xf]
    %v270 = vld [vmem:[#allocation3 + $0x18] sm:$0xf]
    %v271 = vld [vmem:[#allocation3 + $0x1c] sm:$0xf]
    %v272 = vld [vmem:[#allocation3 + $0x20] sm:$0xf]
    %v273 = vld [vmem:[#allocation3 + $0x24] sm:$0xf]
    %v274 = vld [vmem:[#allocation3 + $0x28] sm:$0xf]
    %v275 = vld [vmem:[#allocation3 + $0x2c] sm:$0xf]
    %v276 = vld [vmem:[#allocation3 + $0x30] sm:$0xf]
    %v277 = vld [vmem:[#allocation3 + $0x34] sm:$0xf]
    %v278 = vld [vmem:[#allocation3 + $0x38] sm:$0xf]
    %v279 = vld [vmem:[#allocation3 + $0x3c] sm:$0xf]
    %v280 = vld [vmem:[#allocation2] sm:$0xff]
    %v297 = vunpack.c.l.b16 %v264
    %v298 = vunpack.c.l.b16 %v265
    %v299 = vunpack.c.l.b16 %v266
    %v300 = vunpack.c.l.b16 %v267
    %v301 = vunpack.c.l.b16 %v268
    %v302 = vunpack.c.l.b16 %v269
    %v303 = vunpack.c.l.b16 %v270
    %v304 = vunpack.c.l.b16 %v271
    %v305 = vunpack.c.l.b16 %v272
    %v306 = vunpack.c.l.b16 %v273
    %v307 = vunpack.c.l.b16 %v274
    %v308 = vunpack.c.l.b16 %v275
    %v309 = vunpack.c.l.b16 %v276
    %v310 = vunpack.c.l.b16 %v277
    %v311 = vunpack.c.l.b16 %v278
    %v312 = vunpack.c.l.b16 %v279
    %v313 = vpack.c.b16 %v298, %v297
    %v314 = vpack.c.b16 %v300, %v299
    %v315 = vpack.c.b16 %v302, %v301
    %v316 = vpack.c.b16 %v304, %v303
    %v317 = vpack.c.b16 %v306, %v305
    %v318 = vpack.c.b16 %v308, %v307
    %v319 = vpack.c.b16 %v310, %v309
    %v320 = vpack.c.b16 %v312, %v311
    %329 = vmatprep.subr.bf16.mxu0 0
    %330 = vmatpush1.bf16.msra.mxu0 %v313
    %331 = vmatprep.subr.bf16.mxu0 0
    %332 = vmatpush1.bf16.msra.mxu0 %v314
    %333 = vmatprep.subr.bf16.mxu0 0
    %334 = vmatpush1.bf16.msra.mxu0 %v315
    %335 = vmatprep.subr.bf16.mxu0 0
    %336 = vmatpush1.bf16.msra.mxu0 %v316
    %337 = vmatprep.subr.bf16.mxu0 0
    %338 = vmatpush1.bf16.msra.mxu0 %v317
    %339 = vmatprep.subr.bf16.mxu0 0
    %340 = vmatpush1.bf16.msra.mxu0 %v318
    %341 = vmatprep.subr.bf16.mxu0 0
    %342 = vmatpush1.bf16.msra.mxu0 %v319
    %343 = vmatprep.subr.bf16.mxu0 0
    %344 = vmatpush1.bf16.msra.mxu0 %v320
    %345 = vmatprep.subr.bf16.mxu0 0
    %346 = vmatpush1.bf16.msra.mxu0 0
    %347 = vmatprep.subr.bf16.mxu0 0
    %348 = vmatpush1.bf16.msra.mxu0 0
    %349 = vmatprep.subr.bf16.mxu0 0
    %350 = vmatpush1.bf16.msra.mxu0 0
    %351 = vmatprep.subr.bf16.mxu0 0
    %352 = vmatpush1.bf16.msra.mxu0 0
    %353 = vmatprep.subr.bf16.mxu0 0
    %354 = vmatpush1.bf16.msra.mxu0 0
    %355 = vmatprep.subr.bf16.mxu0 0
    %356 = vmatpush1.bf16.msra.mxu0 0
    %357 = vmatprep.subr.bf16.mxu0 0
    %358 = vmatpush1.bf16.msra.mxu0 0
    %359 = vmatprep.subr.bf16.mxu0 0
    %360 = vmatpush1.bf16.msra.mxu0 0
    %361 = vmatprep.mubr.bf16.mxu0 0
    %362 = vmatmul.mubr.bf16.gmra.mrb[0].mxu0 0
    %v363 = vpop.f32.mrb[0].mxu0
    %v364 = vadd.f32 0.0, %v363
    %v365 = vpop.f32.mrb[0].mxu0
    %v366 = vpop.f32.mrb[0].mxu0
    %v367 = vpop.f32.mrb[0].mxu0
    %368 = vdwg.mxu0
    %v369 = vadd.f32 %v280, %v364
    %v370 = vtanh.pop %v369
    %371 = vst [vmem:[#allocation2] sm:$0xff] %v370
    %s372 = scalar_lea.vmem [#allocation2], 8
    %v373 = vld [vmem:[%s372] sm:$0xff]
    %v374 = vpack.c.bf16 %v370, %v370
    %375 = vmatprep.subr.bf16.mxu0 0
    %376 = vmatpush1.bf16.msra.mxu0 %v313
    %377 = vmatprep.subr.bf16.mxu0 0
    %378 = vmatpush1.bf16.msra.mxu0 %v314
    %379 = vmatprep.subr.bf16.mxu0 0
    %380 = vmatpush1.bf16.msra.mxu0 %v315
    %381 = vmatprep.subr.bf16.mxu0 0
    %382 = vmatpush1.bf16.msra.mxu0 %v316
    %383 = vmatprep.subr.bf16.mxu0 0
    %384 = vmatpush1.bf16.msra.mxu0 %v317
    %385 = vmatprep.subr.bf16.mxu0 0
    %386 = vmatpush1.bf16.msra.mxu0 %v318
    %387 = vmatprep.subr.bf16.mxu0 0
    %388 = vmatpush1.bf16.msra.mxu0 %v319
    %389 = vmatprep.subr.bf16.mxu0 0
    %390 = vmatpush1.bf16.msra.mxu0 %v320
    %391 = vmatprep.subr.bf16.mxu0 0
    %392 = vmatpush1.bf16.msra.mxu0 0
    %393 = vmatprep.subr.bf16.mxu0 0
    %394 = vmatpush1.bf16.msra.mxu0 0
    %395 = vmatprep.subr.bf16.mxu0 0
    %396 = vmatpush1.bf16.msra.mxu0 0
    %397 = vmatprep.subr.bf16.mxu0 0
    %398 = vmatpush1.bf16.msra.mxu0 0
    %399 = vmatprep.subr.bf16.mxu0 0
    %400 = vmatpush1.bf16.msra.mxu0 0
    %401 = vmatprep.subr.bf16.mxu0 0
    %402 = vmatpush1.bf16.msra.mxu0 0
    %403 = vmatprep.subr.bf16.mxu0 0
    %404 = vmatpush1.bf16.msra.mxu0 0
    %405 = vmatprep.subr.bf16.mxu0 0
    %406 = vmatpush1.bf16.msra.mxu0 0
    %407 = vmatprep.mubr.bf16.mxu0 0
    %408 = vmatmul.mubr.bf16.gmra.mrb[0].mxu0 %v374
    %v409 = vpop.f32.mrb[0].mxu0
    %v410 = vadd.f32 0.0, %v409
    %v411 = vpop.f32.mrb[0].mxu0
    %v412 = vpop.f32.mrb[0].mxu0
    %v413 = vpop.f32.mrb[0].mxu0
    %414 = vdwg.mxu0
    %v415 = vadd.f32 %v373, %v410
    %v416 = vtanh.pop %v415
    %417 = vst [vmem:[%s372] sm:$0xff] %v416
    %s418 = scalar_lea.vmem [#allocation2], 16
    %v419 = vld [vmem:[%s418] sm:$0xff]
    %v420 = vpack.c.bf16 %v416, %v416
    %421 = vmatprep.subr.bf16.mxu0 0
    %422 = vmatpush1.bf16.msra.mxu0 %v313
    %423 = vmatprep.subr.bf16.mxu0 0
    %424 = vmatpush1.bf16.msra.mxu0 %v314
    %425 = vmatprep.subr.bf16.mxu0 0
    %426 = vmatpush1.bf16.msra.mxu0 %v315
    %427 = vmatprep.subr.bf16.mxu0 0
    %428 = vmatpush1.bf16.msra.mxu0 %v316
    %429 = vmatprep.subr.bf16.mxu0 0
    %430 = vmatpush1.bf16.msra.mxu0 %v317
    %431 = vmatprep.subr.bf16.mxu0 0
    %432 = vmatpush1.bf16.msra.mxu0 %v318
    %433 = vmatprep.subr.bf16.mxu0 0
    %434 = vmatpush1.bf16.msra.mxu0 %v319
    %435 = vmatprep.subr.bf16.mxu0 0
    %436 = vmatpush1.bf16.msra.mxu0 %v320
    %437 = vmatprep.subr.bf16.mxu0 0
    %438 = vmatpush1.bf16.msra.mxu0 0
    %439 = vmatprep.subr.bf16.mxu0 0
    %440 = vmatpush1.bf16.msra.mxu0 0
    %441 = vmatprep.subr.bf16.mxu0 0
    %442 = vmatpush1.bf16.msra.mxu0 0
    %443 = vmatprep.subr.bf16.mxu0 0
    %444 = vmatpush1.bf16.msra.mxu0 0
    %445 = vmatprep.subr.bf16.mxu0 0
    %446 = vmatpush1.bf16.msra.mxu0 0
    %447 = vmatprep.subr.bf16.mxu0 0
    %448 = vmatpush1.bf16.msra.mxu0 0
    %449 = vmatprep.subr.bf16.mxu0 0
    %450 = vmatpush1.bf16.msra.mxu0 0
    %451 = vmatprep.subr.bf16.mxu0 0
    %452 = vmatpush1.bf16.msra.mxu0 0
    %453 = vmatprep.mubr.bf16.mxu0 0
    %454 = vmatmul.mubr.bf16.gmra.mrb[0].mxu0 %v420
    %v455 = vpop.f32.mrb[0].mxu0
    %v456 = vadd.f32 0.0, %v455
    %v457 = vpop.f32.mrb[0].mxu0
    %v458 = vpop.f32.mrb[0].mxu0
    %v459 = vpop.f32.mrb[0].mxu0
    %460 = vdwg.mxu0
    %v461 = vadd.f32 %v419, %v456
    %v462 = vtanh.pop %v461
    %463 = vst [vmem:[%s418] sm:$0xff] %v462
    %s464 = scalar_lea.vmem [#allocation2], 24
    %v465 = vld [vmem:[%s464] sm:$0xff]
    %v466 = vpack.c.bf16 %v462, %v462
    %467 = vmatprep.subr.bf16.mxu0 0
    %468 = vmatpush1.bf16.msra.mxu0 %v313
    %469 = vmatprep.subr.bf16.mxu0 0
    %470 = vmatpush1.bf16.msra.mxu0 %v314
    %471 = vmatprep.subr.bf16.mxu0 0
    %472 = vmatpush1.bf16.msra.mxu0 %v315
    %473 = vmatprep.subr.bf16.mxu0 0
    %474 = vmatpush1.bf16.msra.mxu0 %v316
    %475 = vmatprep.subr.bf16.mxu0 0
    %476 = vmatpush1.bf16.msra.mxu0 %v317
    %477 = vmatprep.subr.bf16.mxu0 0
    %478 = vmatpush1.bf16.msra.mxu0 %v318
    %479 = vmatprep.subr.bf16.mxu0 0
    %480 = vmatpush1.bf16.msra.mxu0 %v319
    %481 = vmatprep.subr.bf16.mxu0 0
    %482 = vmatpush1.bf16.msra.mxu0 %v320
    %483 = vmatprep.subr.bf16.mxu0 0
    %484 = vmatpush1.bf16.msra.mxu0 0
    %485 = vmatprep.subr.bf16.mxu0 0
    %486 = vmatpush1.bf16.msra.mxu0 0
    %487 = vmatprep.subr.bf16.mxu0 0
    %488 = vmatpush1.bf16.msra.mxu0 0
    %489 = vmatprep.subr.bf16.mxu0 0
    %490 = vmatpush1.bf16.msra.mxu0 0
    %491 = vmatprep.subr.bf16.mxu0 0
    %492 = vmatpush1.bf16.msra.mxu0 0
    %493 = vmatprep.subr.bf16.mxu0 0
    %494 = vmatpush1.bf16.msra.mxu0 0
    %495 = vmatprep.subr.bf16.mxu0 0
    %496 = vmatpush1.bf16.msra.mxu0 0
    %497 = vmatprep.subr.bf16.mxu0 0
    %498 = vmatpush1.bf16.msra.mxu0 0
    %499 = vmatprep.mubr.bf16.mxu0 0
    %500 = vmatmul.mubr.bf16.gmra.mrb[0].mxu0 %v466
    %v501 = vpop.f32.mrb[0].mxu0
    %v502 = vadd.f32 0.0, %v501
    %v503 = vpop.f32.mrb[0].mxu0
    %v504 = vpop.f32.mrb[0].mxu0
    %v505 = vpop.f32.mrb[0].mxu0
    %506 = vdwg.mxu0
    %v507 = vadd.f32 %v465, %v502
    %v508 = vtanh.pop %v507
    %509 = vst [vmem:[%s464] sm:$0xff] %v508
    %s510 = scalar_lea.vmem [#allocation2], 32
    %v511 = vld [vmem:[%s510] sm:$0xff]
    %v512 = vpack.c.bf16 %v508, %v508
    %513 = vmatprep.subr.bf16.mxu0 0
    %514 = vmatpush1.bf16.msra.mxu0 %v313
    %515 = vmatprep.subr.bf16.mxu0 0
    %516 = vmatpush1.bf16.msra.mxu0 %v314
    %517 = vmatprep.subr.bf16.mxu0 0
    %518 = vmatpush1.bf16.msra.mxu0 %v315
    %519 = vmatprep.subr.bf16.mxu0 0
    %520 = vmatpush1.bf16.msra.mxu0 %v316
    %521 = vmatprep.subr.bf16.mxu0 0
    %522 = vmatpush1.bf16.msra.mxu0 %v317
    %523 = vmatprep.subr.bf16.mxu0 0
    %524 = vmatpush1.bf16.msra.mxu0 %v318
    %525 = vmatprep.subr.bf16.mxu0 0
    %526 = vmatpush1.bf16.msra.mxu0 %v319
    %527 = vmatprep.subr.bf16.mxu0 0
    %528 = vmatpush1.bf16.msra.mxu0 %v320
    %529 = vmatprep.subr.bf16.mxu0 0
    %530 = vmatpush1.bf16.msra.mxu0 0
    %531 = vmatprep.subr.bf16.mxu0 0
    %532 = vmatpush1.bf16.msra.mxu0 0
    %533 = vmatprep.subr.bf16.mxu0 0
    %534 = vmatpush1.bf16.msra.mxu0 0
    %535 = vmatprep.subr.bf16.mxu0 0
    %536 = vmatpush1.bf16.msra.mxu0 0
    %537 = vmatprep.subr.bf16.mxu0 0
    %538 = vmatpush1.bf16.msra.mxu0 0
    %539 = vmatprep.subr.bf16.mxu0 0
    %540 = vmatpush1.bf16.msra.mxu0 0
    %541 = vmatprep.subr.bf16.mxu0 0
    %542 = vmatpush1.bf16.msra.mxu0 0
    %543 = vmatprep.subr.bf16.mxu0 0
    %544 = vmatpush1.bf16.msra.mxu0 0
    %545 = vmatprep.mubr.bf16.mxu0 0
    %546 = vmatmul.mubr.bf16.gmra.mrb[0].mxu0 %v512
    %v547 = vpop.f32.mrb[0].mxu0
    %v548 = vadd.f32 0.0, %v547
    %v549 = vpop.f32.mrb[0].mxu0
    %v550 = vpop.f32.mrb[0].mxu0
    %v551 = vpop.f32.mrb[0].mxu0
    %552 = vdwg.mxu0
    %v553 = vadd.f32 %v511, %v548
    %v554 = vtanh.pop %v553
    %555 = vst [vmem:[%s510] sm:$0xff] %v554
    %s556 = scalar_lea.vmem [#allocation2], 40
    %v557 = vld [vmem:[%s556] sm:$0xff]
    %v558 = vpack.c.bf16 %v554, %v554
    %559 = vmatprep.subr.bf16.mxu0 0
    %560 = vmatpush1.bf16.msra.mxu0 %v313
    %561 = vmatprep.subr.bf16.mxu0 0
    %562 = vmatpush1.bf16.msra.mxu0 %v314
    %563 = vmatprep.subr.bf16.mxu0 0
    %564 = vmatpush1.bf16.msra.mxu0 %v315
    %565 = vmatprep.subr.bf16.mxu0 0
    %566 = vmatpush1.bf16.msra.mxu0 %v316
    %567 = vmatprep.subr.bf16.mxu0 0
    %568 = vmatpush1.bf16.msra.mxu0 %v317
    %569 = vmatprep.subr.bf16.mxu0 0
    %570 = vmatpush1.bf16.msra.mxu0 %v318
    %571 = vmatprep.subr.bf16.mxu0 0
    %572 = vmatpush1.bf16.msra.mxu0 %v319
    %573 = vmatprep.subr.bf16.mxu0 0
    %574 = vmatpush1.bf16.msra.mxu0 %v320
    %575 = vmatprep.subr.bf16.mxu0 0
    %576 = vmatpush1.bf16.msra.mxu0 0
    %577 = vmatprep.subr.bf16.mxu0 0
    %578 = vmatpush1.bf16.msra.mxu0 0
    %579 = vmatprep.subr.bf16.mxu0 0
    %580 = vmatpush1.bf16.msra.mxu0 0
    %581 = vmatprep.subr.bf16.mxu0 0
    %582 = vmatpush1.bf16.msra.mxu0 0
    %583 = vmatprep.subr.bf16.mxu0 0
    %584 = vmatpush1.bf16.msra.mxu0 0
    %585 = vmatprep.subr.bf16.mxu0 0
    %586 = vmatpush1.bf16.msra.mxu0 0
    %587 = vmatprep.subr.bf16.mxu0 0
    %588 = vmatpush1.bf16.msra.mxu0 0
    %589 = vmatprep.subr.bf16.mxu0 0
    %590 = vmatpush1.bf16.msra.mxu0 0
    %591 = vmatprep.mubr.bf16.mxu0 0
    %592 = vmatmul.mubr.bf16.gmra.mrb[0].mxu0 %v558
    %v593 = vpop.f32.mrb[0].mxu0
    %v594 = vadd.f32 0.0, %v593
    %v595 = vpop.f32.mrb[0].mxu0
    %v596 = vpop.f32.mrb[0].mxu0
    %v597 = vpop.f32.mrb[0].mxu0
    %598 = vdwg.mxu0
    %v599 = vadd.f32 %v557, %v594
    %v600 = vtanh.pop %v599
    %601 = vst [vmem:[%s556] sm:$0xff] %v600
    %s602 = scalar_lea.vmem [#allocation2], 48
    %v603 = vld [vmem:[%s602] sm:$0xff]
    %v604 = vpack.c.bf16 %v600, %v600
    %605 = vmatprep.subr.bf16.mxu0 0
    %606 = vmatpush1.bf16.msra.mxu0 %v313
    %607 = vmatprep.subr.bf16.mxu0 0
    %608 = vmatpush1.bf16.msra.mxu0 %v314
    %609 = vmatprep.subr.bf16.mxu0 0
    %610 = vmatpush1.bf16.msra.mxu0 %v315
    %611 = vmatprep.subr.bf16.mxu0 0
    %612 = vmatpush1.bf16.msra.mxu0 %v316
    %613 = vmatprep.subr.bf16.mxu0 0
    %614 = vmatpush1.bf16.msra.mxu0 %v317
    %615 = vmatprep.subr.bf16.mxu0 0
    %616 = vmatpush1.bf16.msra.mxu0 %v318
    %617 = vmatprep.subr.bf16.mxu0 0
    %618 = vmatpush1.bf16.msra.mxu0 %v319
    %619 = vmatprep.subr.bf16.mxu0 0
    %620 = vmatpush1.bf16.msra.mxu0 %v320
    %621 = vmatprep.subr.bf16.mxu0 0
    %622 = vmatpush1.bf16.msra.mxu0 0
    %623 = vmatprep.subr.bf16.mxu0 0
    %624 = vmatpush1.bf16.msra.mxu0 0
    %625 = vmatprep.subr.bf16.mxu0 0
    %626 = vmatpush1.bf16.msra.mxu0 0
    %627 = vmatprep.subr.bf16.mxu0 0
    %628 = vmatpush1.bf16.msra.mxu0 0
    %629 = vmatprep.subr.bf16.mxu0 0
    %630 = vmatpush1.bf16.msra.mxu0 0
    %631 = vmatprep.subr.bf16.mxu0 0
    %632 = vmatpush1.bf16.msra.mxu0 0
    %633 = vmatprep.subr.bf16.mxu0 0
    %634 = vmatpush1.bf16.msra.mxu0 0
    %635 = vmatprep.subr.bf16.mxu0 0
    %636 = vmatpush1.bf16.msra.mxu0 0
    %637 = vmatprep.mubr.bf16.mxu0 0
    %638 = vmatmul.mubr.bf16.gmra.mrb[0].mxu0 %v604
    %v639 = vpop.f32.mrb[0].mxu0
    %v640 = vadd.f32 0.0, %v639
    %v641 = vpop.f32.mrb[0].mxu0
    %v642 = vpop.f32.mrb[0].mxu0
    %v643 = vpop.f32.mrb[0].mxu0
    %644 = vdwg.mxu0
    %v645 = vadd.f32 %v603, %v640
    %v646 = vtanh.pop %v645
    %647 = vst [vmem:[%s602] sm:$0xff] %v646
    %s648 = scalar_lea.vmem [#allocation2], 56
    %v649 = vld [vmem:[%s648] sm:$0xff]
    %v650 = vpack.c.bf16 %v646, %v646
    %651 = vmatprep.subr.bf16.mxu0 0
    %652 = vmatpush1.bf16.msra.mxu0 %v313
    %653 = vmatprep.subr.bf16.mxu0 0
    %654 = vmatpush1.bf16.msra.mxu0 %v314
    %655 = vmatprep.subr.bf16.mxu0 0
    %656 = vmatpush1.bf16.msra.mxu0 %v315
    %657 = vmatprep.subr.bf16.mxu0 0
    %658 = vmatpush1.bf16.msra.mxu0 %v316
    %659 = vmatprep.subr.bf16.mxu0 0
    %660 = vmatpush1.bf16.msra.mxu0 %v317
    %661 = vmatprep.subr.bf16.mxu0 0
    %662 = vmatpush1.bf16.msra.mxu0 %v318
    %663 = vmatprep.subr.bf16.mxu0 0
    %664 = vmatpush1.bf16.msra.mxu0 %v319
    %665 = vmatprep.subr.bf16.mxu0 0
    %666 = vmatpush1.bf16.msra.mxu0 %v320
    %667 = vmatprep.subr.bf16.mxu0 0
    %668 = vmatpush1.bf16.msra.mxu0 0
    %669 = vmatprep.subr.bf16.mxu0 0
    %670 = vmatpush1.bf16.msra.mxu0 0
    %671 = vmatprep.subr.bf16.mxu0 0
    %672 = vmatpush1.bf16.msra.mxu0 0
    %673 = vmatprep.subr.bf16.mxu0 0
    %674 = vmatpush1.bf16.msra.mxu0 0
    %675 = vmatprep.subr.bf16.mxu0 0
    %676 = vmatpush1.bf16.msra.mxu0 0
    %677 = vmatprep.subr.bf16.mxu0 0
    %678 = vmatpush1.bf16.msra.mxu0 0
    %679 = vmatprep.subr.bf16.mxu0 0
    %680 = vmatpush1.bf16.msra.mxu0 0
    %681 = vmatprep.subr.bf16.mxu0 0
    %682 = vmatpush1.bf16.msra.mxu0 0
    %683 = vmatprep.mubr.bf16.mxu0 0
    %684 = vmatmul.mubr.bf16.gmra.mrb[0].mxu0 %v650
    %v685 = vpop.f32.mrb[0].mxu0
    %v686 = vadd.f32 0.0, %v685
    %v687 = vpop.f32.mrb[0].mxu0
    %v688 = vpop.f32.mrb[0].mxu0
    %v689 = vpop.f32.mrb[0].mxu0
    %690 = vdwg.mxu0
    %v691 = vadd.f32 %v649, %v686
    %v692 = vtanh.pop %v691
    %693 = vst [vmem:[%s648] sm:$0xff] %v692
    %v694 = vld [vmem:[#allocation5] sm:$0xf]
    %v695 = vld [vmem:[#allocation5 + $0x4] sm:$0xf]
    %v696 = vld [vmem:[#allocation5 + $0x8] sm:$0xf]
    %v697 = vld [vmem:[#allocation5 + $0xc] sm:$0xf]
    %v698 = vld [vmem:[#allocation5 + $0x10] sm:$0xf]
    %v699 = vld [vmem:[#allocation5 + $0x14] sm:$0xf]
    %v700 = vld [vmem:[#allocation5 + $0x18] sm:$0xf]
    %v701 = vld [vmem:[#allocation5 + $0x1c] sm:$0xf]
    %v702 = vld [vmem:[#allocation5 + $0x20] sm:$0xf]
    %v703 = vld [vmem:[#allocation5 + $0x24] sm:$0xf]
    %v704 = vld [vmem:[#allocation5 + $0x28] sm:$0xf]
    %v705 = vld [vmem:[#allocation5 + $0x2c] sm:$0xf]
    %v706 = vld [vmem:[#allocation5 + $0x30] sm:$0xf]
    %v707 = vld [vmem:[#allocation5 + $0x34] sm:$0xf]
    %v708 = vld [vmem:[#allocation5 + $0x38] sm:$0xf]
    %v709 = vld [vmem:[#allocation5 + $0x3c] sm:$0xf]
    %v710 = vld [vmem:[%s6] sm:$0x1]
    %v711 = vld [vmem:[#allocation2] sm:$0xff]
    %v712 = vld [vmem:[#allocation2 + $0x8] sm:$0xff]
    %v713 = vld [vmem:[#allocation2 + $0x10] sm:$0xff]
    %v714 = vld [vmem:[#allocation2 + $0x18] sm:$0xff]
    %v715 = vld [vmem:[#allocation2 + $0x20] sm:$0xff]
    %v716 = vld [vmem:[#allocation2 + $0x28] sm:$0xff]
    %v717 = vld [vmem:[#allocation2 + $0x30] sm:$0xff]
    %v718 = vld [vmem:[#allocation2 + $0x38] sm:$0xff]
    %v719 = vpack.c.bf16 %v712, %v711
    %v720 = vpack.c.bf16 %v714, %v713
    %v721 = vpack.c.bf16 %v716, %v715
    %v722 = vpack.c.bf16 %v718, %v717
    %v724 = vlaneseq
    %v725 = vshrl.u32 %v724, 7
    %v726 = vsub.s32 0, %v725
    %v727 = vrot.slane %v710, %v726
    %v745 = vunpack.c.l.b16 %v694
    %v746 = vunpack.c.l.b16 %v695
    %v747 = vunpack.c.l.b16 %v696
    %v748 = vunpack.c.l.b16 %v697
    %v749 = vunpack.c.l.b16 %v698
    %v750 = vunpack.c.l.b16 %v699
    %v751 = vunpack.c.l.b16 %v700
    %v752 = vunpack.c.l.b16 %v701
    %v753 = vunpack.c.l.b16 %v702
    %v754 = vunpack.c.l.b16 %v703
    %v755 = vunpack.c.l.b16 %v704
    %v756 = vunpack.c.l.b16 %v705
    %v757 = vunpack.c.l.b16 %v706
    %v758 = vunpack.c.l.b16 %v707
    %v759 = vunpack.c.l.b16 %v708
    %v760 = vunpack.c.l.b16 %v709
    %v761 = vpack.c.b16 %v746, %v745
    %v762 = vpack.c.b16 %v748, %v747
    %v763 = vpack.c.b16 %v750, %v749
    %v764 = vpack.c.b16 %v752, %v751
    %v765 = vpack.c.b16 %v754, %v753
    %v766 = vpack.c.b16 %v756, %v755
    %v767 = vpack.c.b16 %v758, %v757
    %v768 = vpack.c.b16 %v760, %v759
    %777 = vmatprep.subr.bf16.mxu0 0
    %778 = vmatpush1.bf16.msra.mxu0 %v761
    %779 = vmatprep.subr.bf16.mxu0 0
    %780 = vmatpush1.bf16.msra.mxu0 %v762
    %781 = vmatprep.subr.bf16.mxu0 0
    %782 = vmatpush1.bf16.msra.mxu0 %v763
    %783 = vmatprep.subr.bf16.mxu0 0
    %784 = vmatpush1.bf16.msra.mxu0 %v764
    %785 = vmatprep.subr.bf16.mxu0 0
    %786 = vmatpush1.bf16.msra.mxu0 %v765
    %787 = vmatprep.subr.bf16.mxu0 0
    %788 = vmatpush1.bf16.msra.mxu0 %v766
    %789 = vmatprep.subr.bf16.mxu0 0
    %790 = vmatpush1.bf16.msra.mxu0 %v767
    %791 = vmatprep.subr.bf16.mxu0 0
    %792 = vmatpush1.bf16.msra.mxu0 %v768
    %793 = vmatprep.subr.bf16.mxu0 0
    %794 = vmatpush1.bf16.msra.mxu0 0
    %795 = vmatprep.subr.bf16.mxu0 0
    %796 = vmatpush1.bf16.msra.mxu0 0
    %797 = vmatprep.subr.bf16.mxu0 0
    %798 = vmatpush1.bf16.msra.mxu0 0
    %799 = vmatprep.subr.bf16.mxu0 0
    %800 = vmatpush1.bf16.msra.mxu0 0
    %801 = vmatprep.subr.bf16.mxu0 0
    %802 = vmatpush1.bf16.msra.mxu0 0
    %803 = vmatprep.subr.bf16.mxu0 0
    %804 = vmatpush1.bf16.msra.mxu0 0
    %805 = vmatprep.subr.bf16.mxu0 0
    %806 = vmatpush1.bf16.msra.mxu0 0
    %807 = vmatprep.subr.bf16.mxu0 0
    %808 = vmatpush1.bf16.msra.mxu0 0
    %809 = vmatprep.mubr.bf16.mxu0 0
    %810 = vmatmul.mubr.bf16.gmra.mrb[0].mxu0 %v719
    %v811 = vpop.f32.mrb[0].mxu0
    %v812 = vadd.f32 %v727, %v811
    %v813 = vpop.f32.mrb[0].mxu0
    %v814 = vpop.f32.mrb[0].mxu0
    %v815 = vadd.f32 %v727, %v814
    %v816 = vpop.f32.mrb[0].mxu0
    %817 = vmatprep.mubr.bf16.mxu0 0
    %818 = vmatmul.mubr.bf16.gmra.mrb[0].mxu0 %v720
    %v819 = vpop.f32.mrb[0].mxu0
    %v820 = vadd.f32 %v727, %v819
    %v821 = vpop.f32.mrb[0].mxu0
    %v822 = vpop.f32.mrb[0].mxu0
    %v823 = vadd.f32 %v727, %v822
    %v824 = vpop.f32.mrb[0].mxu0
    %825 = vmatprep.mubr.bf16.mxu0 0
    %826 = vmatmul.mubr.bf16.gmra.mrb[0].mxu0 %v721
    %v827 = vpop.f32.mrb[0].mxu0
    %v828 = vadd.f32 %v727, %v827
    %v829 = vpop.f32.mrb[0].mxu0
    %v830 = vpop.f32.mrb[0].mxu0
    %v831 = vadd.f32 %v727, %v830
    %v832 = vpop.f32.mrb[0].mxu0
    %833 = vmatprep.mubr.bf16.mxu0 0
    %834 = vmatmul.mubr.bf16.gmra.mrb[0].mxu0 %v722
    %v835 = vpop.f32.mrb[0].mxu0
    %v836 = vadd.f32 %v727, %v835
    %v837 = vpop.f32.mrb[0].mxu0
    %v838 = vpop.f32.mrb[0].mxu0
    %v839 = vadd.f32 %v727, %v838
    %v840 = vpop.f32.mrb[0].mxu0
    %841 = vdwg.mxu0
    %842 = vst [vmem:[#allocation2] sm:$0xff] %v812
    %843 = vst [vmem:[#allocation2 + $0x8] sm:$0xff] %v815
    %844 = vst [vmem:[#allocation2 + $0x10] sm:$0xff] %v820
    %845 = vst [vmem:[#allocation2 + $0x18] sm:$0xff] %v823
    %846 = vst [vmem:[#allocation2 + $0x20] sm:$0xff] %v828
    %847 = vst [vmem:[#allocation2 + $0x28] sm:$0xff] %v831
    %848 = vst [vmem:[#allocation2 + $0x30] sm:$0xff] %v836
    %849 = vst [vmem:[#allocation2 + $0x38] sm:$0xff] %v839
    %v850 = vld [vmem:[#allocation7] sm:$0xf]
    %v851 = vld [vmem:[#allocation7 + $0x4] sm:$0xf]
    %v852 = vld [vmem:[#allocation7 + $0x8] sm:$0xf]
    %v853 = vld [vmem:[#allocation7 + $0xc] sm:$0xf]
    %v854 = vld [vmem:[#allocation7 + $0x10] sm:$0xf]
    %v855 = vld [vmem:[#allocation7 + $0x14] sm:$0xf]
    %v856 = vld [vmem:[#allocation7 + $0x18] sm:$0xf]
    %v857 = vld [vmem:[#allocation7 + $0x1c] sm:$0xf]
    %v858 = vld [vmem:[#allocation7 + $0x20] sm:$0xf]
    %v859 = vld [vmem:[#allocation7 + $0x24] sm:$0xf]
    %v860 = vld [vmem:[#allocation7 + $0x28] sm:$0xf]
    %v861 = vld [vmem:[#allocation7 + $0x2c] sm:$0xf]
    %v862 = vld [vmem:[#allocation7 + $0x30] sm:$0xf]
    %v863 = vld [vmem:[#allocation7 + $0x34] sm:$0xf]
    %v864 = vld [vmem:[#allocation7 + $0x38] sm:$0xf]
    %v865 = vld [vmem:[#allocation7 + $0x3c] sm:$0xf]
    %v866 = vld [vmem:[#allocation2] sm:$0xff]
    %v883 = vunpack.c.l.b16 %v850
    %v884 = vunpack.c.l.b16 %v851
    %v885 = vunpack.c.l.b16 %v852
    %v886 = vunpack.c.l.b16 %v853
    %v887 = vunpack.c.l.b16 %v854
    %v888 = vunpack.c.l.b16 %v855
    %v889 = vunpack.c.l.b16 %v856
    %v890 = vunpack.c.l.b16 %v857
    %v891 = vunpack.c.l.b16 %v858
    %v892 = vunpack.c.l.b16 %v859
    %v893 = vunpack.c.l.b16 %v860
    %v894 = vunpack.c.l.b16 %v861
    %v895 = vunpack.c.l.b16 %v862
    %v896 = vunpack.c.l.b16 %v863
    %v897 = vunpack.c.l.b16 %v864
    %v898 = vunpack.c.l.b16 %v865
    %v899 = vpack.c.b16 %v884, %v883
    %v900 = vpack.c.b16 %v886, %v885
    %v901 = vpack.c.b16 %v888, %v887
    %v902 = vpack.c.b16 %v890, %v889
    %v903 = vpack.c.b16 %v892, %v891
    %v904 = vpack.c.b16 %v894, %v893
    %v905 = vpack.c.b16 %v896, %v895
    %v906 = vpack.c.b16 %v898, %v897
    %915 = vmatprep.subr.bf16.mxu0 0
    %916 = vmatpush1.bf16.msra.mxu0 %v899
    %917 = vmatprep.subr.bf16.mxu0 0
    %918 = vmatpush1.bf16.msra.mxu0 %v900
    %919 = vmatprep.subr.bf16.mxu0 0
    %920 = vmatpush1.bf16.msra.mxu0 %v901
    %921 = vmatprep.subr.bf16.mxu0 0
    %922 = vmatpush1.bf16.msra.mxu0 %v902
    %923 = vmatprep.subr.bf16.mxu0 0
    %924 = vmatpush1.bf16.msra.mxu0 %v903
    %925 = vmatprep.subr.bf16.mxu0 0
    %926 = vmatpush1.bf16.msra.mxu0 %v904
    %927 = vmatprep.subr.bf16.mxu0 0
    %928 = vmatpush1.bf16.msra.mxu0 %v905
    %929 = vmatprep.subr.bf16.mxu0 0
    %930 = vmatpush1.bf16.msra.mxu0 %v906
    %931 = vmatprep.subr.bf16.mxu0 0
    %932 = vmatpush1.bf16.msra.mxu0 0
    %933 = vmatprep.subr.bf16.mxu0 0
    %934 = vmatpush1.bf16.msra.mxu0 0
    %935 = vmatprep.subr.bf16.mxu0 0
    %936 = vmatpush1.bf16.msra.mxu0 0
    %937 = vmatprep.subr.bf16.mxu0 0
    %938 = vmatpush1.bf16.msra.mxu0 0
    %939 = vmatprep.subr.bf16.mxu0 0
    %940 = vmatpush1.bf16.msra.mxu0 0
    %941 = vmatprep.subr.bf16.mxu0 0
    %942 = vmatpush1.bf16.msra.mxu0 0
    %943 = vmatprep.subr.bf16.mxu0 0
    %944 = vmatpush1.bf16.msra.mxu0 0
    %945 = vmatprep.subr.bf16.mxu0 0
    %946 = vmatpush1.bf16.msra.mxu0 0
    %947 = vmatprep.mubr.bf16.mxu0 0
    %948 = vmatmul.mubr.bf16.gmra.mrb[0].mxu0 0
    %v949 = vpop.f32.mrb[0].mxu0
    %v950 = vadd.f32 0.0, %v949
    %v951 = vpop.f32.mrb[0].mxu0
    %v952 = vpop.f32.mrb[0].mxu0
    %v953 = vpop.f32.mrb[0].mxu0
    %954 = vdwg.mxu0
    %v955 = vadd.f32 %v866, %v950
    %v956 = vtanh.pop %v955
    %v957 = vld [vmem:[%s372] sm:$0xff]
    %v958 = vpack.c.bf16 %v956, %v956
    %959 = vmatprep.subr.bf16.mxu0 0
    %960 = vmatpush1.bf16.msra.mxu0 %v899
    %961 = vmatprep.subr.bf16.mxu0 0
    %962 = vmatpush1.bf16.msra.mxu0 %v900
    %963 = vmatprep.subr.bf16.mxu0 0
    %964 = vmatpush1.bf16.msra.mxu0 %v901
    %965 = vmatprep.subr.bf16.mxu0 0
    %966 = vmatpush1.bf16.msra.mxu0 %v902
    %967 = vmatprep.subr.bf16.mxu0 0
    %968 = vmatpush1.bf16.msra.mxu0 %v903
    %969 = vmatprep.subr.bf16.mxu0 0
    %970 = vmatpush1.bf16.msra.mxu0 %v904
    %971 = vmatprep.subr.bf16.mxu0 0
    %972 = vmatpush1.bf16.msra.mxu0 %v905
    %973 = vmatprep.subr.bf16.mxu0 0
    %974 = vmatpush1.bf16.msra.mxu0 %v906
    %975 = vmatprep.subr.bf16.mxu0 0
    %976 = vmatpush1.bf16.msra.mxu0 0
    %977 = vmatprep.subr.bf16.mxu0 0
    %978 = vmatpush1.bf16.msra.mxu0 0
    %979 = vmatprep.subr.bf16.mxu0 0
    %980 = vmatpush1.bf16.msra.mxu0 0
    %981 = vmatprep.subr.bf16.mxu0 0
    %982 = vmatpush1.bf16.msra.mxu0 0
    %983 = vmatprep.subr.bf16.mxu0 0
    %984 = vmatpush1.bf16.msra.mxu0 0
    %985 = vmatprep.subr.bf16.mxu0 0
    %986 = vmatpush1.bf16.msra.mxu0 0
    %987 = vmatprep.subr.bf16.mxu0 0
    %988 = vmatpush1.bf16.msra.mxu0 0
    %989 = vmatprep.subr.bf16.mxu0 0
    %990 = vmatpush1.bf16.msra.mxu0 0
    %991 = vmatprep.mubr.bf16.mxu0 0
    %992 = vmatmul.mubr.bf16.gmra.mrb[0].mxu0 %v958
    %v993 = vpop.f32.mrb[0].mxu0
    %v994 = vadd.f32 0.0, %v993
    %v995 = vpop.f32.mrb[0].mxu0
    %v996 = vpop.f32.mrb[0].mxu0
    %v997 = vpop.f32.mrb[0].mxu0
    %998 = vdwg.mxu0
    %v999 = vadd.f32 %v957, %v994
    %v1000 = vtanh.pop %v999
    %v1001 = vld [vmem:[%s418] sm:$0xff]
    %v1002 = vpack.c.bf16 %v1000, %v1000
    %1003 = vmatprep.subr.bf16.mxu0 0
    %1004 = vmatpush1.bf16.msra.mxu0 %v899
    %1005 = vmatprep.subr.bf16.mxu0 0
    %1006 = vmatpush1.bf16.msra.mxu0 %v900
    %1007 = vmatprep.subr.bf16.mxu0 0
    %1008 = vmatpush1.bf16.msra.mxu0 %v901
    %1009 = vmatprep.subr.bf16.mxu0 0
    %1010 = vmatpush1.bf16.msra.mxu0 %v902
    %1011 = vmatprep.subr.bf16.mxu0 0
    %1012 = vmatpush1.bf16.msra.mxu0 %v903
    %1013 = vmatprep.subr.bf16.mxu0 0
    %1014 = vmatpush1.bf16.msra.mxu0 %v904
    %1015 = vmatprep.subr.bf16.mxu0 0
    %1016 = vmatpush1.bf16.msra.mxu0 %v905
    %1017 = vmatprep.subr.bf16.mxu0 0
    %1018 = vmatpush1.bf16.msra.mxu0 %v906
    %1019 = vmatprep.subr.bf16.mxu0 0
    %1020 = vmatpush1.bf16.msra.mxu0 0
    %1021 = vmatprep.subr.bf16.mxu0 0
    %1022 = vmatpush1.bf16.msra.mxu0 0
    %1023 = vmatprep.subr.bf16.mxu0 0
    %1024 = vmatpush1.bf16.msra.mxu0 0
    %1025 = vmatprep.subr.bf16.mxu0 0
    %1026 = vmatpush1.bf16.msra.mxu0 0
    %1027 = vmatprep.subr.bf16.mxu0 0
    %1028 = vmatpush1.bf16.msra.mxu0 0
    %1029 = vmatprep.subr.bf16.mxu0 0
    %1030 = vmatpush1.bf16.msra.mxu0 0
    %1031 = vmatprep.subr.bf16.mxu0 0
    %1032 = vmatpush1.bf16.msra.mxu0 0
    %1033 = vmatprep.subr.bf16.mxu0 0
    %1034 = vmatpush1.bf16.msra.mxu0 0
    %1035 = vmatprep.mubr.bf16.mxu0 0
    %1036 = vmatmul.mubr.bf16.gmra.mrb[0].mxu0 %v1002
    %v1037 = vpop.f32.mrb[0].mxu0
    %v1038 = vadd.f32 0.0, %v1037
    %v1039 = vpop.f32.mrb[0].mxu0
    %v1040 = vpop.f32.mrb[0].mxu0
    %v1041 = vpop.f32.mrb[0].mxu0
    %1042 = vdwg.mxu0
    %v1043 = vadd.f32 %v1001, %v1038
    %v1044 = vtanh.pop %v1043
    %v1045 = vld [vmem:[%s464] sm:$0xff]
    %v1046 = vpack.c.bf16 %v1044, %v1044
    %1047 = vmatprep.subr.bf16.mxu0 0
    %1048 = vmatpush1.bf16.msra.mxu0 %v899
    %1049 = vmatprep.subr.bf16.mxu0 0
    %1050 = vmatpush1.bf16.msra.mxu0 %v900
    %1051 = vmatprep.subr.bf16.mxu0 0
    %1052 = vmatpush1.bf16.msra.mxu0 %v901
    %1053 = vmatprep.subr.bf16.mxu0 0
    %1054 = vmatpush1.bf16.msra.mxu0 %v902
    %1055 = vmatprep.subr.bf16.mxu0 0
    %1056 = vmatpush1.bf16.msra.mxu0 %v903
    %1057 = vmatprep.subr.bf16.mxu0 0
    %1058 = vmatpush1.bf16.msra.mxu0 %v904
    %1059 = vmatprep.subr.bf16.mxu0 0
    %1060 = vmatpush1.bf16.msra.mxu0 %v905
    %1061 = vmatprep.subr.bf16.mxu0 0
    %1062 = vmatpush1.bf16.msra.mxu0 %v906
    %1063 = vmatprep.subr.bf16.mxu0 0
    %1064 = vmatpush1.bf16.msra.mxu0 0
    %1065 = vmatprep.subr.bf16.mxu0 0
    %1066 = vmatpush1.bf16.msra.mxu0 0
    %1067 = vmatprep.subr.bf16.mxu0 0
    %1068 = vmatpush1.bf16.msra.mxu0 0
    %1069 = vmatprep.subr.bf16.mxu0 0
    %1070 = vmatpush1.bf16.msra.mxu0 0
    %1071 = vmatprep.subr.bf16.mxu0 0
    %1072 = vmatpush1.bf16.msra.mxu0 0
    %1073 = vmatprep.subr.bf16.mxu0 0
    %1074 = vmatpush1.bf16.msra.mxu0 0
    %1075 = vmatprep.subr.bf16.mxu0 0
    %1076 = vmatpush1.bf16.msra.mxu0 0
    %1077 = vmatprep.subr.bf16.mxu0 0
    %1078 = vmatpush1.bf16.msra.mxu0 0
    %1079 = vmatprep.mubr.bf16.mxu0 0
    %1080 = vmatmul.mubr.bf16.gmra.mrb[0].mxu0 %v1046
    %v1081 = vpop.f32.mrb[0].mxu0
    %v1082 = vadd.f32 0.0, %v1081
    %v1083 = vpop.f32.mrb[0].mxu0
    %v1084 = vpop.f32.mrb[0].mxu0
    %v1085 = vpop.f32.mrb[0].mxu0
    %1086 = vdwg.mxu0
    %v1087 = vadd.f32 %v1045, %v1082
    %v1088 = vtanh.pop %v1087
    %v1089 = vld [vmem:[%s510] sm:$0xff]
    %v1090 = vpack.c.bf16 %v1088, %v1088
    %1091 = vmatprep.subr.bf16.mxu0 0
    %1092 = vmatpush1.bf16.msra.mxu0 %v899
    %1093 = vmatprep.subr.bf16.mxu0 0
    %1094 = vmatpush1.bf16.msra.mxu0 %v900
    %1095 = vmatprep.subr.bf16.mxu0 0
    %1096 = vmatpush1.bf16.msra.mxu0 %v901
    %1097 = vmatprep.subr.bf16.mxu0 0
    %1098 = vmatpush1.bf16.msra.mxu0 %v902
    %1099 = vmatprep.subr.bf16.mxu0 0
    %1100 = vmatpush1.bf16.msra.mxu0 %v903
    %1101 = vmatprep.subr.bf16.mxu0 0
    %1102 = vmatpush1.bf16.msra.mxu0 %v904
    %1103 = vmatprep.subr.bf16.mxu0 0
    %1104 = vmatpush1.bf16.msra.mxu0 %v905
    %1105 = vmatprep.subr.bf16.mxu0 0
    %1106 = vmatpush1.bf16.msra.mxu0 %v906
    %1107 = vmatprep.subr.bf16.mxu0 0
    %1108 = vmatpush1.bf16.msra.mxu0 0
    %1109 = vmatprep.subr.bf16.mxu0 0
    %1110 = vmatpush1.bf16.msra.mxu0 0
    %1111 = vmatprep.subr.bf16.mxu0 0
    %1112 = vmatpush1.bf16.msra.mxu0 0
    %1113 = vmatprep.subr.bf16.mxu0 0
    %1114 = vmatpush1.bf16.msra.mxu0 0
    %1115 = vmatprep.subr.bf16.mxu0 0
    %1116 = vmatpush1.bf16.msra.mxu0 0
    %1117 = vmatprep.subr.bf16.mxu0 0
    %1118 = vmatpush1.bf16.msra.mxu0 0
    %1119 = vmatprep.subr.bf16.mxu0 0
    %1120 = vmatpush1.bf16.msra.mxu0 0
    %1121 = vmatprep.subr.bf16.mxu0 0
    %1122 = vmatpush1.bf16.msra.mxu0 0
    %1123 = vmatprep.mubr.bf16.mxu0 0
    %1124 = vmatmul.mubr.bf16.gmra.mrb[0].mxu0 %v1090
    %v1125 = vpop.f32.mrb[0].mxu0
    %v1126 = vadd.f32 0.0, %v1125
    %v1127 = vpop.f32.mrb[0].mxu0
    %v1128 = vpop.f32.mrb[0].mxu0
    %v1129 = vpop.f32.mrb[0].mxu0
    %1130 = vdwg.mxu0
    %v1131 = vadd.f32 %v1089, %v1126
    %v1132 = vtanh.pop %v1131
    %v1133 = vld [vmem:[%s556] sm:$0xff]
    %v1134 = vpack.c.bf16 %v1132, %v1132
    %1135 = vmatprep.subr.bf16.mxu0 0
    %1136 = vmatpush1.bf16.msra.mxu0 %v899
    %1137 = vmatprep.subr.bf16.mxu0 0
    %1138 = vmatpush1.bf16.msra.mxu0 %v900
    %1139 = vmatprep.subr.bf16.mxu0 0
    %1140 = vmatpush1.bf16.msra.mxu0 %v901
    %1141 = vmatprep.subr.bf16.mxu0 0
    %1142 = vmatpush1.bf16.msra.mxu0 %v902
    %1143 = vmatprep.subr.bf16.mxu0 0
    %1144 = vmatpush1.bf16.msra.mxu0 %v903
    %1145 = vmatprep.subr.bf16.mxu0 0
    %1146 = vmatpush1.bf16.msra.mxu0 %v904
    %1147 = vmatprep.subr.bf16.mxu0 0
    %1148 = vmatpush1.bf16.msra.mxu0 %v905
    %1149 = vmatprep.subr.bf16.mxu0 0
    %1150 = vmatpush1.bf16.msra.mxu0 %v906
    %1151 = vmatprep.subr.bf16.mxu0 0
    %1152 = vmatpush1.bf16.msra.mxu0 0
    %1153 = vmatprep.subr.bf16.mxu0 0
    %1154 = vmatpush1.bf16.msra.mxu0 0
    %1155 = vmatprep.subr.bf16.mxu0 0
    %1156 = vmatpush1.bf16.msra.mxu0 0
    %1157 = vmatprep.subr.bf16.mxu0 0
    %1158 = vmatpush1.bf16.msra.mxu0 0
    %1159 = vmatprep.subr.bf16.mxu0 0
    %1160 = vmatpush1.bf16.msra.mxu0 0
    %1161 = vmatprep.subr.bf16.mxu0 0
    %1162 = vmatpush1.bf16.msra.mxu0 0
    %1163 = vmatprep.subr.bf16.mxu0 0
    %1164 = vmatpush1.bf16.msra.mxu0 0
    %1165 = vmatprep.subr.bf16.mxu0 0
    %1166 = vmatpush1.bf16.msra.mxu0 0
    %1167 = vmatprep.mubr.bf16.mxu0 0
    %1168 = vmatmul.mubr.bf16.gmra.mrb[0].mxu0 %v1134
    %v1169 = vpop.f32.mrb[0].mxu0
    %v1170 = vadd.f32 0.0, %v1169
    %v1171 = vpop.f32.mrb[0].mxu0
    %v1172 = vpop.f32.mrb[0].mxu0
    %v1173 = vpop.f32.mrb[0].mxu0
    %1174 = vdwg.mxu0
    %v1175 = vadd.f32 %v1133, %v1170
    %v1176 = vtanh.pop %v1175
    %v1177 = vld [vmem:[%s602] sm:$0xff]
    %v1178 = vpack.c.bf16 %v1176, %v1176
    %1179 = vmatprep.subr.bf16.mxu0 0
    %1180 = vmatpush1.bf16.msra.mxu0 %v899
    %1181 = vmatprep.subr.bf16.mxu0 0
    %1182 = vmatpush1.bf16.msra.mxu0 %v900
    %1183 = vmatprep.subr.bf16.mxu0 0
    %1184 = vmatpush1.bf16.msra.mxu0 %v901
    %1185 = vmatprep.subr.bf16.mxu0 0
    %1186 = vmatpush1.bf16.msra.mxu0 %v902
    %1187 = vmatprep.subr.bf16.mxu0 0
    %1188 = vmatpush1.bf16.msra.mxu0 %v903
    %1189 = vmatprep.subr.bf16.mxu0 0
    %1190 = vmatpush1.bf16.msra.mxu0 %v904
    %1191 = vmatprep.subr.bf16.mxu0 0
    %1192 = vmatpush1.bf16.msra.mxu0 %v905
    %1193 = vmatprep.subr.bf16.mxu0 0
    %1194 = vmatpush1.bf16.msra.mxu0 %v906
    %1195 = vmatprep.subr.bf16.mxu0 0
    %1196 = vmatpush1.bf16.msra.mxu0 0
    %1197 = vmatprep.subr.bf16.mxu0 0
    %1198 = vmatpush1.bf16.msra.mxu0 0
    %1199 = vmatprep.subr.bf16.mxu0 0
    %1200 = vmatpush1.bf16.msra.mxu0 0
    %1201 = vmatprep.subr.bf16.mxu0 0
    %1202 = vmatpush1.bf16.msra.mxu0 0
    %1203 = vmatprep.subr.bf16.mxu0 0
    %1204 = vmatpush1.bf16.msra.mxu0 0
    %1205 = vmatprep.subr.bf16.mxu0 0
    %1206 = vmatpush1.bf16.msra.mxu0 0
    %1207 = vmatprep.subr.bf16.mxu0 0
    %1208 = vmatpush1.bf16.msra.mxu0 0
    %1209 = vmatprep.subr.bf16.mxu0 0
    %1210 = vmatpush1.bf16.msra.mxu0 0
    %1211 = vmatprep.mubr.bf16.mxu0 0
    %1212 = vmatmul.mubr.bf16.gmra.mrb[0].mxu0 %v1178
    %v1213 = vpop.f32.mrb[0].mxu0
    %v1214 = vadd.f32 0.0, %v1213
    %v1215 = vpop.f32.mrb[0].mxu0
    %v1216 = vpop.f32.mrb[0].mxu0
    %v1217 = vpop.f32.mrb[0].mxu0
    %1218 = vdwg.mxu0
    %v1219 = vadd.f32 %v1177, %v1214
    %v1220 = vtanh.pop %v1219
    %v1221 = vld [vmem:[%s648] sm:$0xff]
    %v1222 = vpack.c.bf16 %v1220, %v1220
    %1223 = vmatprep.subr.bf16.mxu0 0
    %1224 = vmatpush1.bf16.msra.mxu0 %v899
    %1225 = vmatprep.subr.bf16.mxu0 0
    %1226 = vmatpush1.bf16.msra.mxu0 %v900
    %1227 = vmatprep.subr.bf16.mxu0 0
    %1228 = vmatpush1.bf16.msra.mxu0 %v901
    %1229 = vmatprep.subr.bf16.mxu0 0
    %1230 = vmatpush1.bf16.msra.mxu0 %v902
    %1231 = vmatprep.subr.bf16.mxu0 0
    %1232 = vmatpush1.bf16.msra.mxu0 %v903
    %1233 = vmatprep.subr.bf16.mxu0 0
    %1234 = vmatpush1.bf16.msra.mxu0 %v904
    %1235 = vmatprep.subr.bf16.mxu0 0
    %1236 = vmatpush1.bf16.msra.mxu0 %v905
    %1237 = vmatprep.subr.bf16.mxu0 0
    %1238 = vmatpush1.bf16.msra.mxu0 %v906
    %1239 = vmatprep.subr.bf16.mxu0 0
    %1240 = vmatpush1.bf16.msra.mxu0 0
    %1241 = vmatprep.subr.bf16.mxu0 0
    %1242 = vmatpush1.bf16.msra.mxu0 0
    %1243 = vmatprep.subr.bf16.mxu0 0
    %1244 = vmatpush1.bf16.msra.mxu0 0
    %1245 = vmatprep.subr.bf16.mxu0 0
    %1246 = vmatpush1.bf16.msra.mxu0 0
    %1247 = vmatprep.subr.bf16.mxu0 0
    %1248 = vmatpush1.bf16.msra.mxu0 0
    %1249 = vmatprep.subr.bf16.mxu0 0
    %1250 = vmatpush1.bf16.msra.mxu0 0
    %1251 = vmatprep.subr.bf16.mxu0 0
    %1252 = vmatpush1.bf16.msra.mxu0 0
    %1253 = vmatprep.subr.bf16.mxu0 0
    %1254 = vmatpush1.bf16.msra.mxu0 0
    %1255 = vmatprep.mubr.bf16.mxu0 0
    %1256 = vmatmul.mubr.bf16.gmra.mrb[0].mxu0 %v1222
    %v1257 = vpop.f32.mrb[0].mxu0
    %v1258 = vadd.f32 0.0, %v1257
    %v1259 = vpop.f32.mrb[0].mxu0
    %v1260 = vpop.f32.mrb[0].mxu0
    %v1261 = vpop.f32.mrb[0].mxu0
    %1262 = vdwg.mxu0
    %v1263 = vadd.f32 %v1221, %v1258
    %v1264 = vtanh.pop %v1263
    %v1265 = vpack.c.bf16 %v1264, %v1264
    %v1266 = vld [vmem:[#allocation8] sm:$0xf]
    %v1267 = vld [vmem:[#allocation8 + $0x4] sm:$0xf]
    %v1268 = vld [vmem:[#allocation8 + $0x8] sm:$0xf]
    %v1269 = vld [vmem:[#allocation8 + $0xc] sm:$0xf]
    %v1270 = vld [vmem:[#allocation8 + $0x10] sm:$0xf]
    %v1271 = vld [vmem:[#allocation8 + $0x14] sm:$0xf]
    %v1272 = vld [vmem:[#allocation8 + $0x18] sm:$0xf]
    %v1273 = vld [vmem:[#allocation8 + $0x1c] sm:$0xf]
    %v1274 = vld [vmem:[#allocation8 + $0x20] sm:$0xf]
    %v1275 = vld [vmem:[#allocation8 + $0x24] sm:$0xf]
    %v1276 = vld [vmem:[#allocation8 + $0x28] sm:$0xf]
    %v1277 = vld [vmem:[#allocation8 + $0x2c] sm:$0xf]
    %v1278 = vld [vmem:[#allocation8 + $0x30] sm:$0xf]
    %v1279 = vld [vmem:[#allocation8 + $0x34] sm:$0xf]
    %v1280 = vld [vmem:[#allocation8 + $0x38] sm:$0xf]
    %v1281 = vld [vmem:[#allocation8 + $0x3c] sm:$0xf]
    %v1282 = vld [vmem:[%s8] sm:$0x1]
    %v1284 = vlaneseq
    %v1285 = vshrl.u32 %v1284, 7
    %v1286 = vsub.s32 0, %v1285
    %v1287 = vrot.slane %v1282, %v1286
    %v1305 = vunpack.c.l.b16 %v1266
    %v1306 = vunpack.c.l.b16 %v1267
    %v1307 = vunpack.c.l.b16 %v1268
    %v1308 = vunpack.c.l.b16 %v1269
    %v1309 = vunpack.c.l.b16 %v1270
    %v1310 = vunpack.c.l.b16 %v1271
    %v1311 = vunpack.c.l.b16 %v1272
    %v1312 = vunpack.c.l.b16 %v1273
    %v1313 = vunpack.c.l.b16 %v1274
    %v1314 = vunpack.c.l.b16 %v1275
    %v1315 = vunpack.c.l.b16 %v1276
    %v1316 = vunpack.c.l.b16 %v1277
    %v1317 = vunpack.c.l.b16 %v1278
    %v1318 = vunpack.c.l.b16 %v1279
    %v1319 = vunpack.c.l.b16 %v1280
    %v1320 = vunpack.c.l.b16 %v1281
    %v1321 = vpack.c.b16 %v1306, %v1305
    %v1322 = vpack.c.b16 %v1308, %v1307
    %v1323 = vpack.c.b16 %v1310, %v1309
    %v1324 = vpack.c.b16 %v1312, %v1311
    %v1325 = vpack.c.b16 %v1314, %v1313
    %v1326 = vpack.c.b16 %v1316, %v1315
    %v1327 = vpack.c.b16 %v1318, %v1317
    %v1328 = vpack.c.b16 %v1320, %v1319
    %1337 = vmatprep.subr.bf16.mxu0 0
    %1338 = vmatpush1.bf16.msra.mxu0 %v1321
    %1339 = vmatprep.subr.bf16.mxu0 0
    %1340 = vmatpush1.bf16.msra.mxu0 %v1322
    %1341 = vmatprep.subr.bf16.mxu0 0
    %1342 = vmatpush1.bf16.msra.mxu0 %v1323
    %1343 = vmatprep.subr.bf16.mxu0 0
    %1344 = vmatpush1.bf16.msra.mxu0 %v1324
    %1345 = vmatprep.subr.bf16.mxu0 0
    %1346 = vmatpush1.bf16.msra.mxu0 %v1325
    %1347 = vmatprep.subr.bf16.mxu0 0
    %1348 = vmatpush1.bf16.msra.mxu0 %v1326
    %1349 = vmatprep.subr.bf16.mxu0 0
    %1350 = vmatpush1.bf16.msra.mxu0 %v1327
    %1351 = vmatprep.subr.bf16.mxu0 0
    %1352 = vmatpush1.bf16.msra.mxu0 %v1328
    %1353 = vmatprep.subr.bf16.mxu0 0
    %1354 = vmatpush1.bf16.msra.mxu0 0
    %1355 = vmatprep.subr.bf16.mxu0 0
    %1356 = vmatpush1.bf16.msra.mxu0 0
    %1357 = vmatprep.subr.bf16.mxu0 0
    %1358 = vmatpush1.bf16.msra.mxu0 0
    %1359 = vmatprep.subr.bf16.mxu0 0
    %1360 = vmatpush1.bf16.msra.mxu0 0
    %1361 = vmatprep.subr.bf16.mxu0 0
    %1362 = vmatpush1.bf16.msra.mxu0 0
    %1363 = vmatprep.subr.bf16.mxu0 0
    %1364 = vmatpush1.bf16.msra.mxu0 0
    %1365 = vmatprep.subr.bf16.mxu0 0
    %1366 = vmatpush1.bf16.msra.mxu0 0
    %1367 = vmatprep.subr.bf16.mxu0 0
    %1368 = vmatpush1.bf16.msra.mxu0 0
    %1369 = vmatprep.mubr.bf16.mxu0 0
    %1370 = vmatmul.mubr.bf16.gmra.mrb[0].mxu0 %v1265
    %v1371 = vpop.f32.mrb[0].mxu0
    %v1372 = vadd.f32 %v1287, %v1371
    %v1373 = vpop.f32.mrb[0].mxu0
    %v1374 = vpop.f32.mrb[0].mxu0
    %v1375 = vpop.f32.mrb[0].mxu0
    %1376 = vdwg.mxu0
    %1377 = vst [vmem:[%s9] sm:$0xff] %v1372
    // Predicated region
    $region54: #{rnn_forward.1} parent=1 // pred_check
      _
    $region55: #{rnn_forward.1} parent=1 // pred_check_branch
      %1379 = sbr.rel (0) target = $region57
    $region56: #{rnn_forward.1} parent=1 // pred_region
      _
    $region57: #{rnn_forward.1} parent=1 // pred_fallthru
      _
    // Predicated region
    $region58: #{rnn_forward.1} parent=1 // pred_check
      _
    $region59: #{rnn_forward.1} parent=1 // pred_check_branch
      %1381 = sbr.rel (0) target = $region61
    $region60: #{rnn_forward.1} parent=1 // pred_region
      _
    $region61: #{rnn_forward.1} parent=1 // pred_fallthru
      _
    %1382 = vsyncpa [#allocation4], 1
    %1383 = vsyncpa [#allocation6], 1
    %1384 = vsyncpa [#allocation9], 1

</llo_original>
